<compile_context>
chip_gen: v6e
topology: v6e:2x2x1
jax: 0.10.0
libtpu: 0.0.40
codegen_flags: <defaults>
</compile_context>

<pallas_src>
import functools
import math

import jax
import jax.numpy as jnp
from jax.experimental import pallas as pl
from jax.experimental.pallas import tpu as pltpu

EPS = 1e-5                      # torch.nn.LayerNorm default eps
_VMEM_LIMIT = 32 * 1024 * 1024  # generous for these tiny tiles, safe on v7x (64 MiB)


def _round_up(x, m):
    return ((x + m - 1) // m) * m


def _const_spec(shape):
    """Full-array block with a constant index map (fetched once across the grid)."""
    nd = len(shape)
    return pl.BlockSpec(shape, lambda i, _nd=nd: (0,) * _nd)


def _layernorm(x, gamma, beta):
    mu = jnp.mean(x, axis=-1, keepdims=True)
    var = jnp.mean((x - mu) ** 2, axis=-1, keepdims=True)
    return (x - mu) * jax.lax.rsqrt(var + EPS) * gamma + beta


# --------------------------------------------------------------------------
# Generic path: row-tiled linear kernel (used for project_in / project_out
# when `fn` is an arbitrary JAX callable that cannot live inside the kernel).
# --------------------------------------------------------------------------
def _linear_kernel(x_ref, w_ref, b_ref, o_ref):
    y = jnp.dot(x_ref[...].astype(jnp.bfloat16), w_ref[...],
                preferred_element_type=jnp.float32)
    o_ref[...] = (y + b_ref[...]).astype(o_ref.dtype)


def pallas_linear(x, w_bf16, b, *, block_rows=256):
    """y = x @ W + b over the flattened leading dims, row-tiled and lane-dense."""
    *lead, d_in = x.shape
    d_out = w_bf16.shape[1]
    rows = int(math.prod(lead)) if lead else 1
    x2 = x.reshape(rows, d_in)
    tm = min(block_rows, _round_up(rows, 8))
    padded = _round_up(rows, tm)
    if padded != rows:
        x2 = jnp.pad(x2, ((0, padded - rows), (0, 0)))
    out = pl.pallas_call(
        _linear_kernel,
        out_shape=jax.ShapeDtypeStruct((padded, d_out), x.dtype),
        grid=(padded // tm,),
        in_specs=[
            pl.BlockSpec((tm, d_in), lambda i: (i, 0)),
            _const_spec((d_in, d_out)),
            _const_spec((1, d_out)),
        ],
        out_specs=pl.BlockSpec((tm, d_out), lambda i: (i, 0)),
        compiler_params=pltpu.CompilerParams(
            dimension_semantics=("parallel",),
            vmem_limit_bytes=_VMEM_LIMIT),
    )(x2, w_bf16, b)
    return out[:rows].reshape(*lead, d_out)


def project_in_out(x, proj_params, fn, *fn_args, **fn_kwargs):
    """Direct translation of ProjectInOut.forward (generic, unfused path)."""
    if proj_params is None:                       # dim_in == dim_out -> Identity
        return fn(x, *fn_args, **fn_kwargs)
    x = pallas_linear(x, proj_params["w_in_bf16"], proj_params["b_in"])
    # TODO(synk): arbitrary `fn` nn.Modules run as plain JAX here; only tile-local
    # fns can take the fused single-kernel path below.
    x = fn(x, *fn_args, **fn_kwargs)
    x = pallas_linear(x, proj_params["w_out_bf16"], proj_params["b_out"])
    return x


# --------------------------------------------------------------------------
# Fused path: project_in -> fn(tile, *extras) -> project_out in ONE kernel.
# --------------------------------------------------------------------------
def _fused_kernel(x_ref, w_in_ref, b_in_ref, w_out_ref, b_out_ref, *rest, fn):
    extra_refs, o_ref = rest[:-1], rest[-1]
    x = x_ref[0]                                                     # (n, d_in) f32
    h = jnp.dot(x.astype(jnp.bfloat16), w_in_ref[...],
                preferred_element_type=jnp.float32) + b_in_ref[...]  # (n, d_out)
    h = fn(h, *(r[...] for r in extra_refs))                         # stays in VMEM
    y = jnp.dot(h.astype(jnp.bfloat16), w_out_ref[...],
                preferred_element_type=jnp.float32) + b_out_ref[...]
    o_ref[0] = y.astype(o_ref.dtype)


def fused_project_in_out(x, proj_params, fn_kernel, extras):
    b, n, d_in = x.shape
    w_in, b_in = proj_params["w_in_bf16"], proj_params["b_in"]
    w_out, b_out = proj_params["w_out_bf16"], proj_params["b_out"]
    in_specs = [pl.BlockSpec((1, n, d_in), lambda i: (i, 0, 0)),
                _const_spec(w_in.shape), _const_spec(b_in.shape),
                _const_spec(w_out.shape), _const_spec(b_out.shape)]
    in_specs += [_const_spec(e.shape) for e in extras]
    return pl.pallas_call(
        functools.partial(_fused_kernel, fn=fn_kernel),
        out_shape=jax.ShapeDtypeStruct((b, n, d_in), x.dtype),
        grid=(b,),                                  # >= 2 blocks -> both v7x TCs
        in_specs=in_specs,
        out_specs=pl.BlockSpec((1, n, d_in), lambda i: (i, 0, 0)),
        compiler_params=pltpu.CompilerParams(
            dimension_semantics=("parallel",),
            vmem_limit_bytes=_VMEM_LIMIT),
    )(x, w_in, b_in, w_out, b_out, *extras)


def kernel_prenorm_attention(h, g, beta, wq_h, wk_h, wv_h, wo_h, bo):
    """Tile-local fn = PreNorm(Attention) as used by ProjectInOut in med_crossvit.

    h: (n, d) f32.  Weights are pre-split per head with a LEADING head axis so all
    contractions are head-batched 3-D einsums (no per-head loop, no lane slicing,
    no transposes/concatenate inside the kernel).  Scale is folded into wq_h.
    """
    heads = wq_h.shape[0]
    n, d = h.shape
    xn = _layernorm(h, g, beta)                                       # f32
    xb = jnp.broadcast_to(xn.astype(jnp.bfloat16), (heads, n, d))     # (H, n, d)
    q = jnp.einsum('hnd,hde->hne', xb, wq_h, preferred_element_type=jnp.float32)
    k = jnp.einsum('hnd,hde->hne', xb, wk_h, preferred_element_type=jnp.float32)
    v = jnp.einsum('hnd,hde->hne', xb, wv_h, preferred_element_type=jnp.float32)
    dots = jnp.einsum('hne,hme->hnm', q.astype(jnp.bfloat16), k.astype(jnp.bfloat16),
                      preferred_element_type=jnp.float32)             # (H, n, n)
    dots = dots - jnp.max(dots, axis=-1, keepdims=True)
    e = jnp.exp(dots)
    attn = e * pl.reciprocal(jnp.sum(e, axis=-1, keepdims=True), approx=True)
    out = jnp.einsum('hnm,hme->hne', attn.astype(jnp.bfloat16), v.astype(jnp.bfloat16),
                     preferred_element_type=jnp.float32)              # (H, n, dh)
    y = jnp.einsum('hne,heo->hno', out.astype(jnp.bfloat16), wo_h,
                   preferred_element_type=jnp.float32)                # (H, n, d)
    return jnp.sum(y, axis=0) + bo                                    # combine heads


# --------------------------------------------------------------------------
# Pure-JAX f32 reference (independent formulation).
# --------------------------------------------------------------------------
def ref_prenorm_attention(h, ap, *, heads, dim_head):
    b, n, d = h.shape
    inner = heads * dim_head
    xn = _layernorm(h, ap["g"], ap["beta"])
    q = xn @ ap["wq"]
    kv = xn @ ap["wkv"]
    k, v = kv[..., :inner], kv[..., inner:]

    def split(t):
        return t.reshape(b, n, heads, dim_head).transpose(0, 2, 1, 3)

    q, k, v = split(q), split(k), split(v)
    dots = jnp.einsum('bhid,bhjd->bhij', q, k) * (dim_head ** -0.5)
    attn = jax.nn.softmax(dots, axis=-1)
    out = jnp.einsum('bhij,bhjd->bhid', attn, v)
    out = out.transpose(0, 2, 1, 3).reshape(b, n, inner)
    return out @ ap["wo"] + ap["bo"]


def ref_project_in_out(x, pp, fn):
    h = x @ pp["w_in"] + pp["b_in"]
    h = fn(h)
    return h @ pp["w_out"] + pp["b_out"]


# --------------------------------------------------------------------------
# Params.
# --------------------------------------------------------------------------
def make_params(key, *, dim_in, dim_out, heads, dim_head):
    inner = heads * dim_head
    ks = jax.random.split(key, 10)
    s = 0.05
    pp = {
        "w_in": jax.random.normal(ks[0], (dim_in, dim_out), jnp.float32) * s,
        "b_in": jax.random.normal(ks[1], (1, dim_out), jnp.float32) * s,
        "w_out": jax.random.normal(ks[2], (dim_out, dim_in), jnp.float32) * s,
        "b_out": jax.random.normal(ks[3], (1, dim_in), jnp.float32) * s,
    }
    pp["w_in_bf16"] = pp["w_in"].astype(jnp.bfloat16)
    pp["w_out_bf16"] = pp["w_out"].astype(jnp.bfloat16)
    ap = {
        "g": 1.0 + 0.1 * jax.random.normal(ks[4], (1, dim_out), jnp.float32),
        "beta": 0.1 * jax.random.normal(ks[5], (1, dim_out), jnp.float32),
        "wq": jax.random.normal(ks[6], (dim_out, inner), jnp.float32) * s,
        "wkv": jax.random.normal(ks[7], (dim_out, 2 * inner), jnp.float32) * s,
        "wo": jax.random.normal(ks[8], (inner, dim_out), jnp.float32) * s,
        "bo": jax.random.normal(ks[9], (1, dim_out), jnp.float32) * s,
    }
    return pp, ap


def attention_extras(ap, *, heads, dim_head):
    """Pre-split attention weights per head (leading head axis), scale folded, bf16."""
    d_out = ap["wq"].shape[0]
    inner = heads * dim_head
    scale = dim_head ** -0.5

    def to_heads(w):                                   # (d, inner) -> (heads, d, dh)
        return jnp.transpose(w.reshape(d_out, heads, dim_head), (1, 0, 2))

    wq_h = to_heads(ap["wq"] * scale).astype(jnp.bfloat16)
    wk_h = to_heads(ap["wkv"][:, :inner]).astype(jnp.bfloat16)
    wv_h = to_heads(ap["wkv"][:, inner:]).astype(jnp.bfloat16)
    wo_h = ap["wo"].reshape(heads, dim_head, d_out).astype(jnp.bfloat16)
    return (ap["g"], ap["beta"], wq_h, wk_h, wv_h, wo_h, ap["bo"])


# --------------------------------------------------------------------------
if __name__ == "__main__":
    # Small but lane-dense config (dims multiples of 128 so vregs/stores are full).
    batch, seq = 2, 8
    dim_in, dim_out = 128, 256          # dim_in != dim_out -> projections active
    heads, dim_head = 4, 64

    key = jax.random.PRNGKey(0)
    kx, kp = jax.random.split(key)
    x = jax.random.normal(kx, (batch, seq, dim_in), jnp.float32)
    pp, ap = make_params(kp, dim_in=dim_in, dim_out=dim_out,
                         heads=heads, dim_head=dim_head)
    extras = attention_extras(ap, heads=heads, dim_head=dim_head)

    # Fused path: one pallas_call = project_in -> PreNorm(Attention) -> project_out.
    fused = jax.jit(lambda x_, pp_, ex_: fused_project_in_out(
        x_, pp_, kernel_prenorm_attention, ex_))
    out_fused = jax.block_until_ready(fused(x, pp, extras))

    # Generic path: arbitrary JAX fn between two Pallas linear kernels.
    fn_jax = functools.partial(ref_prenorm_attention, ap=ap,
                               heads=heads, dim_head=dim_head)
    generic = jax.jit(lambda x_: project_in_out(x_, pp, fn_jax))
    out_generic = jax.block_until_ready(generic(x))

    # Identity path (dim_in == dim_out): ProjectInOut reduces to fn(x).
    out_id = project_in_out(x, None, lambda t: t * 2.0)

    # Pure-JAX f32 reference.
    ref = jax.block_until_ready(ref_project_in_out(x, pp, fn_jax))

    assert out_fused.shape == (batch, seq, dim_in) and out_fused.dtype == x.dtype
    # Tolerance loosened vs. a pure-f32 reference because MXU operands are bf16.
    err_f = float(jnp.max(jnp.abs(out_fused - ref)))
    assert jnp.allclose(out_fused, ref, rtol=3e-2, atol=3e-2), \
        f"fused path max abs err {err_f}"
    err_g = float(jnp.max(jnp.abs(out_generic - ref)))
    assert jnp.allclose(out_generic, ref, rtol=3e-2, atol=3e-2), \
        f"generic path max abs err {err_g}"
    assert jnp.allclose(out_id, x * 2.0)

    print("KERNEL_OK")
</pallas_src>

<mosaic_0001>
module attributes {stable_mosaic.version = 11 : i64} {
  func.func @_fused_kernel(%arg0: i32, %arg1: memref<1x8x128xf32, #tpu.memory_space<vmem>>, %arg2: memref<128x256xbf16, #tpu.memory_space<vmem>>, %arg3: memref<1x256xf32, #tpu.memory_space<vmem>>, %arg4: memref<256x128xbf16, #tpu.memory_space<vmem>>, %arg5: memref<1x128xf32, #tpu.memory_space<vmem>>, %arg6: memref<1x256xf32, #tpu.memory_space<vmem>>, %arg7: memref<1x256xf32, #tpu.memory_space<vmem>>, %arg8: memref<4x256x64xbf16, #tpu.memory_space<vmem>>, %arg9: memref<4x256x64xbf16, #tpu.memory_space<vmem>>, %arg10: memref<4x256x64xbf16, #tpu.memory_space<vmem>>, %arg11: memref<4x64x256xbf16, #tpu.memory_space<vmem>>, %arg12: memref<1x256xf32, #tpu.memory_space<vmem>>, %arg13: memref<1x8x128xf32, #tpu.memory_space<vmem>>) attributes {dimension_semantics = [#tpu.dimension_semantics<parallel>], iteration_bounds = array<i64: 2>, scalar_prefetch = 0 : i64, scratch_operands = 0 : i64, tpu.core_type = #tpu.core_type<tc>, window_params = [{transform_indices = @transform_0, window_bounds = array<i64: 1, 8, 128>}, {pipeline_mode = #tpu.pipeline_mode<synchronous>, transform_indices = @transform_1, window_bounds = array<i64: 128, 256>}, {pipeline_mode = #tpu.pipeline_mode<synchronous>, transform_indices = @transform_2, window_bounds = array<i64: 1, 256>}, {pipeline_mode = #tpu.pipeline_mode<synchronous>, transform_indices = @transform_3, window_bounds = array<i64: 256, 128>}, {pipeline_mode = #tpu.pipeline_mode<synchronous>, transform_indices = @transform_4, window_bounds = array<i64: 1, 128>}, {pipeline_mode = #tpu.pipeline_mode<synchronous>, transform_indices = @transform_5, window_bounds = array<i64: 1, 256>}, {pipeline_mode = #tpu.pipeline_mode<synchronous>, transform_indices = @transform_6, window_bounds = array<i64: 1, 256>}, {pipeline_mode = #tpu.pipeline_mode<synchronous>, transform_indices = @transform_7, window_bounds = array<i64: 4, 256, 64>}, {pipeline_mode = #tpu.pipeline_mode<synchronous>, transform_indices = @transform_8, window_bounds = array<i64: 4, 256, 64>}, {pipeline_mode = #tpu.pipeline_mode<synchronous>, transform_indices = @transform_9, window_bounds = array<i64: 4, 256, 64>}, {pipeline_mode = #tpu.pipeline_mode<synchronous>, transform_indices = @transform_10, window_bounds = array<i64: 4, 64, 256>}, {pipeline_mode = #tpu.pipeline_mode<synchronous>, transform_indices = @transform_11, window_bounds = array<i64: 1, 256>}, {transform_indices = @transform_12, window_bounds = array<i64: 1, 8, 128>}]} {
    %c0 = arith.constant 0 : index
    %c0_0 = arith.constant 0 : index
    %c0_1 = arith.constant 0 : index
    %0 = vector.load %arg1[%c0, %c0_0, %c0_1] : memref<1x8x128xf32, #tpu.memory_space<vmem>>, vector<1x8x128xf32>
    %1 = vector.shape_cast %0 : vector<1x8x128xf32> to vector<8x128xf32>
    %2 = arith.truncf %1 : vector<8x128xf32> to vector<8x128xbf16>
    %c0_2 = arith.constant 0 : index
    %c0_3 = arith.constant 0 : index
    %3 = vector.load %arg2[%c0_2, %c0_3] : memref<128x256xbf16, #tpu.memory_space<vmem>>, vector<128x256xbf16>
    %cst = arith.constant dense<0.000000e+00> : vector<8x256xf32>
    %4 = tpu.matmul %2, %3, %cst {dimension_numbers = #tpu.dot_dimension_numbers<[1], [0], [0], [1], [0, 0, 1, 1], [], []>} : vector<8x128xbf16>, vector<128x256xbf16>, vector<8x256xf32> -> vector<8x256xf32>
    %c0_4 = arith.constant 0 : index
    %c0_5 = arith.constant 0 : index
    %5 = vector.load %arg3[%c0_4, %c0_5] : memref<1x256xf32, #tpu.memory_space<vmem>>, vector<1x256xf32>
    %6 = vector.broadcast %5 : vector<1x256xf32> to vector<8x256xf32>
    %7 = arith.addf %4, %6 : vector<8x256xf32>
    %c0_6 = arith.constant 0 : index
    %c0_7 = arith.constant 0 : index
    %8 = vector.load %arg6[%c0_6, %c0_7] : memref<1x256xf32, #tpu.memory_space<vmem>>, vector<1x256xf32>
    %c0_8 = arith.constant 0 : index
    %c0_9 = arith.constant 0 : index
    %9 = vector.load %arg7[%c0_8, %c0_9] : memref<1x256xf32, #tpu.memory_space<vmem>>, vector<1x256xf32>
    %c0_10 = arith.constant 0 : index
    %c0_11 = arith.constant 0 : index
    %c0_12 = arith.constant 0 : index
    %10 = vector.load %arg8[%c0_10, %c0_11, %c0_12] : memref<4x256x64xbf16, #tpu.memory_space<vmem>>, vector<4x256x64xbf16>
    %c0_13 = arith.constant 0 : index
    %c0_14 = arith.constant 0 : index
    %c0_15 = arith.constant 0 : index
    %11 = vector.load %arg9[%c0_13, %c0_14, %c0_15] : memref<4x256x64xbf16, #tpu.memory_space<vmem>>, vector<4x256x64xbf16>
    %c0_16 = arith.constant 0 : index
    %c0_17 = arith.constant 0 : index
    %c0_18 = arith.constant 0 : index
    %12 = vector.load %arg10[%c0_16, %c0_17, %c0_18] : memref<4x256x64xbf16, #tpu.memory_space<vmem>>, vector<4x256x64xbf16>
    %c0_19 = arith.constant 0 : index
    %c0_20 = arith.constant 0 : index
    %c0_21 = arith.constant 0 : index
    %13 = vector.load %arg11[%c0_19, %c0_20, %c0_21] : memref<4x64x256xbf16, #tpu.memory_space<vmem>>, vector<4x64x256xbf16>
    %c0_22 = arith.constant 0 : index
    %c0_23 = arith.constant 0 : index
    %14 = vector.load %arg12[%c0_22, %c0_23] : memref<1x256xf32, #tpu.memory_space<vmem>>, vector<1x256xf32>
    %cst_24 = arith.constant dense<0.000000e+00> : vector<8xf32>
    %15 = vector.multi_reduction <add>, %7, %cst_24 [1] : vector<8x256xf32> to vector<8xf32>
    %16 = vector.shape_cast %15 : vector<8xf32> to vector<8x1xf32>
    %cst_25 = arith.constant 2.560000e+02 : f32
    %17 = vector.broadcast %cst_25 : f32 to vector<8x1xf32>
    %18 = arith.divf %16, %17 : vector<8x1xf32>
    %19 = vector.broadcast %18 : vector<8x1xf32> to vector<8x256xf32>
    %20 = arith.subf %7, %19 : vector<8x256xf32>
    %21 = arith.mulf %20, %20 : vector<8x256xf32>
    %cst_26 = arith.constant dense<0.000000e+00> : vector<8xf32>
    %22 = vector.multi_reduction <add>, %21, %cst_26 [1] : vector<8x256xf32> to vector<8xf32>
    %23 = vector.shape_cast %22 : vector<8xf32> to vector<8x1xf32>
    %cst_27 = arith.constant 2.560000e+02 : f32
    %24 = vector.broadcast %cst_27 : f32 to vector<8x1xf32>
    %25 = arith.divf %23, %24 : vector<8x1xf32>
    %26 = vector.broadcast %18 : vector<8x1xf32> to vector<8x256xf32>
    %27 = arith.subf %7, %26 : vector<8x256xf32>
    %cst_28 = arith.constant 9.99999974E-6 : f32
    %28 = vector.broadcast %cst_28 : f32 to vector<8x1xf32>
    %29 = arith.addf %25, %28 : vector<8x1xf32>
    %30 = math.rsqrt %29 : vector<8x1xf32>
    %31 = vector.broadcast %30 : vector<8x1xf32> to vector<8x256xf32>
    %32 = arith.mulf %27, %31 : vector<8x256xf32>
    %33 = vector.broadcast %8 : vector<1x256xf32> to vector<8x256xf32>
    %34 = arith.mulf %32, %33 : vector<8x256xf32>
    %35 = vector.broadcast %9 : vector<1x256xf32> to vector<8x256xf32>
    %36 = arith.addf %34, %35 : vector<8x256xf32>
    %37 = arith.truncf %36 : vector<8x256xf32> to vector<8x256xbf16>
    %38 = vector.shape_cast %37 : vector<8x256xbf16> to vector<1x8x256xbf16>
    %39 = vector.broadcast %38 : vector<1x8x256xbf16> to vector<4x8x256xbf16>
    "tpu.trace_start"() <{level = 10 : i32, message = "hnd,hde->hne"}> : () -> ()
    %cst_29 = arith.constant dense<0.000000e+00> : vector<4x8x64xf32>
    %40 = tpu.matmul %39, %10, %cst_29 {dimension_numbers = #tpu.dot_dimension_numbers<[2], [1], [1], [2], [0, 0, 0, 1, 1, 2], [0], [0]>} : vector<4x8x256xbf16>, vector<4x256x64xbf16>, vector<4x8x64xf32> -> vector<4x8x64xf32>
    %cst_30 = arith.constant dense<0.000000e+00> : vector<4x8x64xf32>
    %41 = tpu.matmul %39, %11, %cst_30 {dimension_numbers = #tpu.dot_dimension_numbers<[2], [1], [1], [2], [0, 0, 0, 1, 1, 2], [0], [0]>} : vector<4x8x256xbf16>, vector<4x256x64xbf16>, vector<4x8x64xf32> -> vector<4x8x64xf32>
    %cst_31 = arith.constant dense<0.000000e+00> : vector<4x8x64xf32>
    %42 = tpu.matmul %39, %12, %cst_31 {dimension_numbers = #tpu.dot_dimension_numbers<[2], [1], [1], [2], [0, 0, 0, 1, 1, 2], [0], [0]>} : vector<4x8x256xbf16>, vector<4x256x64xbf16>, vector<4x8x64xf32> -> vector<4x8x64xf32>
    "tpu.trace_stop"() : () -> ()
    %43 = arith.truncf %40 : vector<4x8x64xf32> to vector<4x8x64xbf16>
    %44 = arith.truncf %41 : vector<4x8x64xf32> to vector<4x8x64xbf16>
    "tpu.trace_start"() <{level = 10 : i32, message = "hne,hme->hnm"}> : () -> ()
    %cst_32 = arith.constant dense<0.000000e+00> : vector<4x8x8xf32>
    %45 = tpu.matmul %43, %44, %cst_32 {dimension_numbers = #tpu.dot_dimension_numbers<[2], [2], [1], [1], [0, 0, 0, 1, 1, 1], [0], [0]>} : vector<4x8x64xbf16>, vector<4x8x64xbf16>, vector<4x8x8xf32> -> vector<4x8x8xf32>
    "tpu.trace_stop"() : () -> ()
    %cst_33 = arith.constant dense<0xFF800000> : vector<4x8xf32>
    %46 = vector.multi_reduction <maximumf>, %45, %cst_33 [2] : vector<4x8x8xf32> to vector<4x8xf32>
    %47 = vector.shape_cast %46 : vector<4x8xf32> to vector<4x8x1xf32>
    %48 = vector.broadcast %47 : vector<4x8x1xf32> to vector<4x8x8xf32>
    %49 = arith.subf %45, %48 : vector<4x8x8xf32>
    %50 = math.exp %49 : vector<4x8x8xf32>
    %cst_34 = arith.constant dense<0.000000e+00> : vector<4x8xf32>
    %51 = vector.multi_reduction <add>, %50, %cst_34 [2] : vector<4x8x8xf32> to vector<4x8xf32>
    %52 = vector.shape_cast %51 : vector<4x8xf32> to vector<4x8x1xf32>
    %53 = tpu.reciprocal %52 {approx = true} : vector<4x8x1xf32> -> vector<4x8x1xf32>
    %54 = vector.broadcast %53 : vector<4x8x1xf32> to vector<4x8x8xf32>
    %55 = arith.mulf %50, %54 : vector<4x8x8xf32>
    %56 = arith.truncf %55 : vector<4x8x8xf32> to vector<4x8x8xbf16>
    %57 = arith.truncf %42 : vector<4x8x64xf32> to vector<4x8x64xbf16>
    "tpu.trace_start"() <{level = 10 : i32, message = "hnm,hme->hne"}> : () -> ()
    %cst_35 = arith.constant dense<0.000000e+00> : vector<4x8x64xf32>
    %58 = tpu.matmul %56, %57, %cst_35 {dimension_numbers = #tpu.dot_dimension_numbers<[2], [1], [1], [2], [0, 0, 0, 1, 1, 2], [0], [0]>} : vector<4x8x8xbf16>, vector<4x8x64xbf16>, vector<4x8x64xf32> -> vector<4x8x64xf32>
    "tpu.trace_stop"() : () -> ()
    %59 = arith.truncf %58 : vector<4x8x64xf32> to vector<4x8x64xbf16>
    "tpu.trace_start"() <{level = 10 : i32, message = "hne,heo->hno"}> : () -> ()
    %cst_36 = arith.constant dense<0.000000e+00> : vector<4x8x256xf32>
    %60 = tpu.matmul %59, %13, %cst_36 {dimension_numbers = #tpu.dot_dimension_numbers<[2], [1], [1], [2], [0, 0, 0, 1, 1, 2], [0], [0]>} : vector<4x8x64xbf16>, vector<4x64x256xbf16>, vector<4x8x256xf32> -> vector<4x8x256xf32>
    "tpu.trace_stop"() : () -> ()
    %cst_37 = arith.constant dense<0.000000e+00> : vector<8x256xf32>
    %61 = vector.multi_reduction <add>, %60, %cst_37 [0] : vector<4x8x256xf32> to vector<8x256xf32>
    %62 = vector.broadcast %14 : vector<1x256xf32> to vector<8x256xf32>
    %63 = arith.addf %61, %62 : vector<8x256xf32>
    %64 = arith.truncf %63 : vector<8x256xf32> to vector<8x256xbf16>
    %c0_38 = arith.constant 0 : index
    %c0_39 = arith.constant 0 : index
    %65 = vector.load %arg4[%c0_38, %c0_39] : memref<256x128xbf16, #tpu.memory_space<vmem>>, vector<256x128xbf16>
    %cst_40 = arith.constant dense<0.000000e+00> : vector<8x128xf32>
    %66 = tpu.matmul %64, %65, %cst_40 {dimension_numbers = #tpu.dot_dimension_numbers<[1], [0], [0], [1], [0, 0, 1, 1], [], []>} : vector<8x256xbf16>, vector<256x128xbf16>, vector<8x128xf32> -> vector<8x128xf32>
    %c0_41 = arith.constant 0 : index
    %c0_42 = arith.constant 0 : index
    %67 = vector.load %arg5[%c0_41, %c0_42] : memref<1x128xf32, #tpu.memory_space<vmem>>, vector<1x128xf32>
    %68 = vector.broadcast %67 : vector<1x128xf32> to vector<8x128xf32>
    %69 = arith.addf %66, %68 : vector<8x128xf32>
    %c0_43 = arith.constant 0 : index
    %c0_44 = arith.constant 0 : index
    %c0_45 = arith.constant 0 : index
    %70 = vector.load %arg13[%c0_43, %c0_44, %c0_45] : memref<1x8x128xf32, #tpu.memory_space<vmem>>, vector<1x8x128xf32>
    %71 = vector.shape_cast %70 : vector<1x8x128xf32> to vector<8x128xf32>
    %72 = vector.shape_cast %69 : vector<8x128xf32> to vector<1x8x128xf32>
    tpu.vector_store %arg13[%c0_43, %c0_44, %c0_45], %72 {strides = array<i32>} : memref<1x8x128xf32, #tpu.memory_space<vmem>>, vector<1x8x128xf32>,
    return
  }
  func.func @transform_0(%arg0: i32) -> (i32, i32, i32) {
    %c0_i32 = arith.constant 0 : i32
    %c0_i32_0 = arith.constant 0 : i32
    %c0_i32_1 = arith.constant 0 : i32
    return %arg0, %c0_i32, %c0_i32_0 : i32, i32, i32
  }
  func.func @transform_1(%arg0: i32) -> (i32, i32) {
    %c0_i32 = arith.constant 0 : i32
    %c0_i32_0 = arith.constant 0 : i32
    %c0_i32_1 = arith.constant 0 : i32
    return %c0_i32, %c0_i32_0 : i32, i32
  }
  func.func @transform_2(%arg0: i32) -> (i32, i32) {
    %c0_i32 = arith.constant 0 : i32
    %c0_i32_0 = arith.constant 0 : i32
    %c0_i32_1 = arith.constant 0 : i32
    return %c0_i32, %c0_i32_0 : i32, i32
  }
  func.func @transform_3(%arg0: i32) -> (i32, i32) {
    %c0_i32 = arith.constant 0 : i32
    %c0_i32_0 = arith.constant 0 : i32
    %c0_i32_1 = arith.constant 0 : i32
    return %c0_i32, %c0_i32_0 : i32, i32
  }
  func.func @transform_4(%arg0: i32) -> (i32, i32) {
    %c0_i32 = arith.constant 0 : i32
    %c0_i32_0 = arith.constant 0 : i32
    %c0_i32_1 = arith.constant 0 : i32
    return %c0_i32, %c0_i32_0 : i32, i32
  }
  func.func @transform_5(%arg0: i32) -> (i32, i32) {
    %c0_i32 = arith.constant 0 : i32
    %c0_i32_0 = arith.constant 0 : i32
    %c0_i32_1 = arith.constant 0 : i32
    return %c0_i32, %c0_i32_0 : i32, i32
  }
  func.func @transform_6(%arg0: i32) -> (i32, i32) {
    %c0_i32 = arith.constant 0 : i32
    %c0_i32_0 = arith.constant 0 : i32
    %c0_i32_1 = arith.constant 0 : i32
    return %c0_i32, %c0_i32_0 : i32, i32
  }
  func.func @transform_7(%arg0: i32) -> (i32, i32, i32) {
    %c0_i32 = arith.constant 0 : i32
    %c0_i32_0 = arith.constant 0 : i32
    %c0_i32_1 = arith.constant 0 : i32
    %c0_i32_2 = arith.constant 0 : i32
    return %c0_i32, %c0_i32_0, %c0_i32_1 : i32, i32, i32
  }
  func.func @transform_8(%arg0: i32) -> (i32, i32, i32) {
    %c0_i32 = arith.constant 0 : i32
    %c0_i32_0 = arith.constant 0 : i32
    %c0_i32_1 = arith.constant 0 : i32
    %c0_i32_2 = arith.constant 0 : i32
    return %c0_i32, %c0_i32_0, %c0_i32_1 : i32, i32, i32
  }
  func.func @transform_9(%arg0: i32) -> (i32, i32, i32) {
    %c0_i32 = arith.constant 0 : i32
    %c0_i32_0 = arith.constant 0 : i32
    %c0_i32_1 = arith.constant 0 : i32
    %c0_i32_2 = arith.constant 0 : i32
    return %c0_i32, %c0_i32_0, %c0_i32_1 : i32, i32, i32
  }
  func.func @transform_10(%arg0: i32) -> (i32, i32, i32) {
    %c0_i32 = arith.constant 0 : i32
    %c0_i32_0 = arith.constant 0 : i32
    %c0_i32_1 = arith.constant 0 : i32
    %c0_i32_2 = arith.constant 0 : i32
    return %c0_i32, %c0_i32_0, %c0_i32_1 : i32, i32, i32
  }
  func.func @transform_11(%arg0: i32) -> (i32, i32) {
    %c0_i32 = arith.constant 0 : i32
    %c0_i32_0 = arith.constant 0 : i32
    %c0_i32_1 = arith.constant 0 : i32
    return %c0_i32, %c0_i32_0 : i32, i32
  }
  func.func @transform_12(%arg0: i32) -> (i32, i32, i32) {
    %c0_i32 = arith.constant 0 : i32
    %c0_i32_0 = arith.constant 0 : i32
    %c0_i32_1 = arith.constant 0 : i32
    return %arg0, %c0_i32, %c0_i32_0 : i32, i32, i32
  }
}

</mosaic_0001>

<llo_original>
// kernel: _lambda_.1
$region0: #{_lambda_.1}
  #allocation0 [shape = 'u32[]', space=smem, size = 0x4, offset = 0x4, fixed_abs, tag = 'smem constant byte address 0x4 - core index']
  #allocation1 [shape = 'u32[144,128]{1,0:T(1,128)}', space=vmem, size = 0x12000, scoped, tag = 'internal scratch']
  %s0 = inlined_call_operand.vmem [shape: f32[2,8,128], index: 0, kind: input, shape index: {}]
  %s1 = inlined_call_operand.vmem [shape: bf16[128,256], index: 1, kind: input, shape index: {}]
  %s2 = inlined_call_operand.vmem [shape: f32[1,256], index: 2, kind: input, shape index: {}]
  %s3 = inlined_call_operand.vmem [shape: bf16[256,128], index: 3, kind: input, shape index: {}]
  %s4 = inlined_call_operand.vmem [shape: f32[1,128], index: 4, kind: input, shape index: {}]
  %s5 = inlined_call_operand.vmem [shape: f32[1,256], index: 5, kind: input, shape index: {}]
  %s6 = inlined_call_operand.vmem [shape: f32[1,256], index: 6, kind: input, shape index: {}]
  %s7 = inlined_call_operand.vmem [shape: bf16[4,256,64], index: 7, kind: input, shape index: {}]
  %s8 = inlined_call_operand.vmem [shape: bf16[4,256,64], index: 8, kind: input, shape index: {}]
  %s9 = inlined_call_operand.vmem [shape: bf16[4,256,64], index: 9, kind: input, shape index: {}]
  %s10 = inlined_call_operand.vmem [shape: bf16[4,64,256], index: 10, kind: input, shape index: {}]
  %s11 = inlined_call_operand.vmem [shape: f32[1,256], index: 11, kind: input, shape index: {}]
  %s12 = inlined_call_operand.hbm [shape: f32[2,8,128], index: 12, kind: output, shape index: {}]
  %s13 = sld [smem:[#allocation0]]
  $region81: #{_lambda_.1} parent=0
    _
  %s15 = ssub.s32 1, %s13
  %s16 = scalar_select 0, %s15, %s13
  $region1: #{_lambda_.1} parent=0
    #allocation2 [shape = 'u8[8192]{0}', space=vmem, size = 0x2000, scoped, tag = 'output window, operand 0']
    #allocation3 [shape = 's32[2]{0}', space=sflag, size = 0x8, scoped, tag = 'scoped memory for _lambda_.1']
    %17 = vsyncpa [#allocation3], 0
    %s18 = scalar_lea.sflag [#allocation3], 1
    %19 = vsyncpa %s18, 0
    loop: start=0, step=1, limit=4
    $region2: #{_lambda_.1} parent=1 // loop_pre_header
      _
    $region3: #{_lambda_.1} parent=1 // loop_header
      %s21 = sphi 0, %s25
      %p22 = scmp.ge.s32.totalorder %s21, 4
      %s31 = sphi 0, %s33
      %s34 = sphi 0, %s31
      %s35 = sphi 0, %s34
      %s51 = sphi 0, %s35
      %s55 = sphi 0, %s55
      %s57 = sphi 0, %s55
      %s58 = sphi 0, %s57
      %s72 = sphi 0, %s58
      %s76 = sphi 0, %s76
      %s78 = sphi 0, %s76
      %s79 = sphi 0, %s78
      %s93 = sphi 0, %s79
      %s97 = sphi 0, %s97
      %s99 = sphi 0, %s97
      %s100 = sphi 0, %s99
      %s114 = sphi 0, %s100
      %s118 = sphi 0, %s118
      %s120 = sphi 0, %s118
      %s121 = sphi 0, %s120
      %s135 = sphi 0, %s121
      %s139 = sphi 0, %s139
      %s141 = sphi 0, %s139
      %s142 = sphi 0, %s141
      %s156 = sphi 0, %s142
      %s160 = sphi 0, %s160
      %s162 = sphi 0, %s160
      %s163 = sphi 0, %s162
      %s177 = sphi 0, %s163
      %s181 = sphi 0, %s181
      %s183 = sphi 0, %s181
      %s184 = sphi 0, %s183
      %s198 = sphi 0, %s184
      %s202 = sphi 0, %s202
      %s204 = sphi 0, %s202
      %s205 = sphi 0, %s204
      %s219 = sphi 0, %s205
      %s223 = sphi 0, %s223
      %s225 = sphi 0, %s223
      %s226 = sphi 0, %s225
      %s240 = sphi 0, %s226
      %s244 = sphi 0, %s244
      %s246 = sphi 0, %s244
      %s247 = sphi 0, %s246
      %s261 = sphi 0, %s247
      %s265 = sphi 0, %s265
      %s267 = sphi 0, %s265
      %s268 = sphi 0, %s267
      %s282 = sphi 0, %s268
      %s288 = sphi 0, %s290
      %s291 = sphi 0, %s288
      %s292 = sphi 0, %s291
      %s308 = sphi 0, %s292
    $region4: #{_lambda_.1} parent=1 // loop_header_branch
      %24 = sbr.rel (%p22) target = $region8
    $region5: #{_lambda_.1} parent=1 // loop_body
      %s26 = ssub.s32 %s21, 1
      %s27 = ssub.s32 %s21, 2
      %s28 = sadd.s32 %s21, 1
      %s29 = ssub.s32 %s21, %s28
      %p30 = scmp.eq.s32.totalorder %s29, 0
      %s32 = sadd.s32 %s31, 1
      %s33 = scalar_select %p30, %s31, %s32
      %p36 = pneg %p30
      %p37 = scmp.eq.s32.totalorder %s21, 1
      %p38 = por %p36, %p37
      %p39 = scmp.ne.s32.totalorder %s31, %s34
      %p40 = scmp.eq.s32.totalorder %s21, 0
      %p41 = por %p39, %p40
      %p42 = scmp.ne.s32.totalorder %s31, %s34
      %p43 = scmp.eq.s32.totalorder %s26, 1
      %p44 = por %p42, %p43
      %p45 = scmp.ne.s32.totalorder %s34, %s35
      %p46 = scmp.eq.s32.totalorder %s26, 0
      %p47 = por %p45, %p46
      %p48 = scmp.ne.s32.totalorder %s34, %s35
      %p49 = scmp.eq.s32.totalorder %s27, 1
      %p50 = por %p48, %p49
      %p52 = scmp.ne.s32.totalorder %s35, %s51
      %p53 = scmp.eq.s32.totalorder %s27, 0
      %p54 = por %p52, %p53
      %s56 = sadd.s32 %s55, 1
      %p59 = scmp.eq.s32.totalorder %s21, 1
      %p60 = scmp.ne.s32.totalorder %s55, %s57
      %p61 = scmp.eq.s32.totalorder %s21, 0
      %p62 = por %p60, %p61
      %p63 = scmp.ne.s32.totalorder %s55, %s57
      %p64 = scmp.eq.s32.totalorder %s26, 1
      %p65 = por %p63, %p64
      %p66 = scmp.ne.s32.totalorder %s57, %s58
      %p67 = scmp.eq.s32.totalorder %s26, 0
      %p68 = por %p66, %p67
      %p69 = scmp.ne.s32.totalorder %s57, %s58
      %p70 = scmp.eq.s32.totalorder %s27, 1
      %p71 = por %p69, %p70
      %p73 = scmp.ne.s32.totalorder %s58, %s72
      %p74 = scmp.eq.s32.totalorder %s27, 0
      %p75 = por %p73, %p74
      %s77 = sadd.s32 %s76, 1
      %p80 = scmp.eq.s32.totalorder %s21, 1
      %p81 = scmp.ne.s32.totalorder %s76, %s78
      %p82 = scmp.eq.s32.totalorder %s21, 0
      %p83 = por %p81, %p82
      %p84 = scmp.ne.s32.totalorder %s76, %s78
      %p85 = scmp.eq.s32.totalorder %s26, 1
      %p86 = por %p84, %p85
      %p87 = scmp.ne.s32.totalorder %s78, %s79
      %p88 = scmp.eq.s32.totalorder %s26, 0
      %p89 = por %p87, %p88
      %p90 = scmp.ne.s32.totalorder %s78, %s79
      %p91 = scmp.eq.s32.totalorder %s27, 1
      %p92 = por %p90, %p91
      %p94 = scmp.ne.s32.totalorder %s79, %s93
      %p95 = scmp.eq.s32.totalorder %s27, 0
      %p96 = por %p94, %p95
      %s98 = sadd.s32 %s97, 1
      %p101 = scmp.eq.s32.totalorder %s21, 1
      %p102 = scmp.ne.s32.totalorder %s97, %s99
      %p103 = scmp.eq.s32.totalorder %s21, 0
      %p104 = por %p102, %p103
      %p105 = scmp.ne.s32.totalorder %s97, %s99
      %p106 = scmp.eq.s32.totalorder %s26, 1
      %p107 = por %p105, %p106
      %p108 = scmp.ne.s32.totalorder %s99, %s100
      %p109 = scmp.eq.s32.totalorder %s26, 0
      %p110 = por %p108, %p109
      %p111 = scmp.ne.s32.totalorder %s99, %s100
      %p112 = scmp.eq.s32.totalorder %s27, 1
      %p113 = por %p111, %p112
      %p115 = scmp.ne.s32.totalorder %s100, %s114
      %p116 = scmp.eq.s32.totalorder %s27, 0
      %p117 = por %p115, %p116
      %s119 = sadd.s32 %s118, 1
      %p122 = scmp.eq.s32.totalorder %s21, 1
      %p123 = scmp.ne.s32.totalorder %s118, %s120
      %p124 = scmp.eq.s32.totalorder %s21, 0
      %p125 = por %p123, %p124
      %p126 = scmp.ne.s32.totalorder %s118, %s120
      %p127 = scmp.eq.s32.totalorder %s26, 1
      %p128 = por %p126, %p127
      %p129 = scmp.ne.s32.totalorder %s120, %s121
      %p130 = scmp.eq.s32.totalorder %s26, 0
      %p131 = por %p129, %p130
      %p132 = scmp.ne.s32.totalorder %s120, %s121
      %p133 = scmp.eq.s32.totalorder %s27, 1
      %p134 = por %p132, %p133
      %p136 = scmp.ne.s32.totalorder %s121, %s135
      %p137 = scmp.eq.s32.totalorder %s27, 0
      %p138 = por %p136, %p137
      %s140 = sadd.s32 %s139, 1
      %p143 = scmp.eq.s32.totalorder %s21, 1
      %p144 = scmp.ne.s32.totalorder %s139, %s141
      %p145 = scmp.eq.s32.totalorder %s21, 0
      %p146 = por %p144, %p145
      %p147 = scmp.ne.s32.totalorder %s139, %s141
      %p148 = scmp.eq.s32.totalorder %s26, 1
      %p149 = por %p147, %p148
      %p150 = scmp.ne.s32.totalorder %s141, %s142
      %p151 = scmp.eq.s32.totalorder %s26, 0
      %p152 = por %p150, %p151
      %p153 = scmp.ne.s32.totalorder %s141, %s142
      %p154 = scmp.eq.s32.totalorder %s27, 1
      %p155 = por %p153, %p154
      %p157 = scmp.ne.s32.totalorder %s142, %s156
      %p158 = scmp.eq.s32.totalorder %s27, 0
      %p159 = por %p157, %p158
      %s161 = sadd.s32 %s160, 1
      %p164 = scmp.eq.s32.totalorder %s21, 1
      %p165 = scmp.ne.s32.totalorder %s160, %s162
      %p166 = scmp.eq.s32.totalorder %s21, 0
      %p167 = por %p165, %p166
      %p168 = scmp.ne.s32.totalorder %s160, %s162
      %p169 = scmp.eq.s32.totalorder %s26, 1
      %p170 = por %p168, %p169
      %p171 = scmp.ne.s32.totalorder %s162, %s163
      %p172 = scmp.eq.s32.totalorder %s26, 0
      %p173 = por %p171, %p172
      %p174 = scmp.ne.s32.totalorder %s162, %s163
      %p175 = scmp.eq.s32.totalorder %s27, 1
      %p176 = por %p174, %p175
      %p178 = scmp.ne.s32.totalorder %s163, %s177
      %p179 = scmp.eq.s32.totalorder %s27, 0
      %p180 = por %p178, %p179
      %s182 = sadd.s32 %s181, 1
      %p185 = scmp.eq.s32.totalorder %s21, 1
      %p186 = scmp.ne.s32.totalorder %s181, %s183
      %p187 = scmp.eq.s32.totalorder %s21, 0
      %p188 = por %p186, %p187
      %p189 = scmp.ne.s32.totalorder %s181, %s183
      %p190 = scmp.eq.s32.totalorder %s26, 1
      %p191 = por %p189, %p190
      %p192 = scmp.ne.s32.totalorder %s183, %s184
      %p193 = scmp.eq.s32.totalorder %s26, 0
      %p194 = por %p192, %p193
      %p195 = scmp.ne.s32.totalorder %s183, %s184
      %p196 = scmp.eq.s32.totalorder %s27, 1
      %p197 = por %p195, %p196
      %p199 = scmp.ne.s32.totalorder %s184, %s198
      %p200 = scmp.eq.s32.totalorder %s27, 0
      %p201 = por %p199, %p200
      %s203 = sadd.s32 %s202, 1
      %p206 = scmp.eq.s32.totalorder %s21, 1
      %p207 = scmp.ne.s32.totalorder %s202, %s204
      %p208 = scmp.eq.s32.totalorder %s21, 0
      %p209 = por %p207, %p208
      %p210 = scmp.ne.s32.totalorder %s202, %s204
      %p211 = scmp.eq.s32.totalorder %s26, 1
      %p212 = por %p210, %p211
      %p213 = scmp.ne.s32.totalorder %s204, %s205
      %p214 = scmp.eq.s32.totalorder %s26, 0
      %p215 = por %p213, %p214
      %p216 = scmp.ne.s32.totalorder %s204, %s205
      %p217 = scmp.eq.s32.totalorder %s27, 1
      %p218 = por %p216, %p217
      %p220 = scmp.ne.s32.totalorder %s205, %s219
      %p221 = scmp.eq.s32.totalorder %s27, 0
      %p222 = por %p220, %p221
      %s224 = sadd.s32 %s223, 1
      %p227 = scmp.eq.s32.totalorder %s21, 1
      %p228 = scmp.ne.s32.totalorder %s223, %s225
      %p229 = scmp.eq.s32.totalorder %s21, 0
      %p230 = por %p228, %p229
      %p231 = scmp.ne.s32.totalorder %s223, %s225
      %p232 = scmp.eq.s32.totalorder %s26, 1
      %p233 = por %p231, %p232
      %p234 = scmp.ne.s32.totalorder %s225, %s226
      %p235 = scmp.eq.s32.totalorder %s26, 0
      %p236 = por %p234, %p235
      %p237 = scmp.ne.s32.totalorder %s225, %s226
      %p238 = scmp.eq.s32.totalorder %s27, 1
      %p239 = por %p237, %p238
      %p241 = scmp.ne.s32.totalorder %s226, %s240
      %p242 = scmp.eq.s32.totalorder %s27, 0
      %p243 = por %p241, %p242
      %s245 = sadd.s32 %s244, 1
      %p248 = scmp.eq.s32.totalorder %s21, 1
      %p249 = scmp.ne.s32.totalorder %s244, %s246
      %p250 = scmp.eq.s32.totalorder %s21, 0
      %p251 = por %p249, %p250
      %p252 = scmp.ne.s32.totalorder %s244, %s246
      %p253 = scmp.eq.s32.totalorder %s26, 1
      %p254 = por %p252, %p253
      %p255 = scmp.ne.s32.totalorder %s246, %s247
      %p256 = scmp.eq.s32.totalorder %s26, 0
      %p257 = por %p255, %p256
      %p258 = scmp.ne.s32.totalorder %s246, %s247
      %p259 = scmp.eq.s32.totalorder %s27, 1
      %p260 = por %p258, %p259
      %p262 = scmp.ne.s32.totalorder %s247, %s261
      %p263 = scmp.eq.s32.totalorder %s27, 0
      %p264 = por %p262, %p263
      %s266 = sadd.s32 %s265, 1
      %p269 = scmp.eq.s32.totalorder %s21, 1
      %p270 = scmp.ne.s32.totalorder %s265, %s267
      %p271 = scmp.eq.s32.totalorder %s21, 0
      %p272 = por %p270, %p271
      %p273 = scmp.ne.s32.totalorder %s265, %s267
      %p274 = scmp.eq.s32.totalorder %s26, 1
      %p275 = por %p273, %p274
      %p276 = scmp.ne.s32.totalorder %s267, %s268
      %p277 = scmp.eq.s32.totalorder %s26, 0
      %p278 = por %p276, %p277
      %p279 = scmp.ne.s32.totalorder %s267, %s268
      %p280 = scmp.eq.s32.totalorder %s27, 1
      %p281 = por %p279, %p280
      %p283 = scmp.ne.s32.totalorder %s268, %s282
      %p284 = scmp.eq.s32.totalorder %s27, 0
      %p285 = por %p283, %p284
      %s286 = ssub.s32 %s21, %s28
      %p287 = scmp.eq.s32.totalorder %s286, 0
      %s289 = sadd.s32 %s288, 1
      %s290 = scalar_select %p287, %s288, %s289
      %p293 = pneg %p287
      %p294 = scmp.eq.s32.totalorder %s21, 1
      %p295 = por %p293, %p294
      %p296 = scmp.ne.s32.totalorder %s288, %s291
      %p297 = scmp.eq.s32.totalorder %s21, 0
      %p298 = por %p296, %p297
      %p299 = scmp.ne.s32.totalorder %s288, %s291
      %p300 = scmp.eq.s32.totalorder %s26, 1
      %p301 = por %p299, %p300
      %p302 = scmp.ne.s32.totalorder %s291, %s292
      %p303 = scmp.eq.s32.totalorder %s26, 0
      %p304 = por %p302, %p303
      %p305 = scmp.ne.s32.totalorder %s291, %s292
      %p306 = scmp.eq.s32.totalorder %s27, 1
      %p307 = por %p305, %p306
      %p309 = scmp.ne.s32.totalorder %s292, %s308
      %p310 = scmp.eq.s32.totalorder %s27, 0
      %p311 = por %p309, %p310
      %p312 = scmp.le.s32.totalorder 1, %s21
      %p313 = scmp.lt.s32.totalorder %s21, 3
      %p314 = pnand %p312, %p313
      %p315 = pneg %p314
      // Predicated region
      $region9: #{_lambda_.1} parent=5 // pred_check
        _
      $region10: #{_lambda_.1} parent=5 // pred_check_branch
        %317 = sbr.rel (%p314) target = $region12
      $region11: #{_lambda_.1} parent=5 // pred_region
        %s318 = ssub.s32 %s21, 1
        // Predicated region
        $region13: #{_lambda_.1} parent=11 // pred_check
          %p319 = pneg %p68
        $region14: #{_lambda_.1} parent=11 // pred_check_branch
          %321 = sbr.rel (%p319) target = $region16
        $region15: #{_lambda_.1} parent=11 // pred_region
          _
        $region16: #{_lambda_.1} parent=11 // pred_fallthru
          _
        // Predicated region
        $region17: #{_lambda_.1} parent=11 // pred_check
          %p322 = pneg %p89
        $region18: #{_lambda_.1} parent=11 // pred_check_branch
          %324 = sbr.rel (%p322) target = $region20
        $region19: #{_lambda_.1} parent=11 // pred_region
          _
        $region20: #{_lambda_.1} parent=11 // pred_fallthru
          _
        // Predicated region
        $region21: #{_lambda_.1} parent=11 // pred_check
          %p325 = pneg %p110
        $region22: #{_lambda_.1} parent=11 // pred_check_branch
          %327 = sbr.rel (%p325) target = $region24
        $region23: #{_lambda_.1} parent=11 // pred_region
          _
        $region24: #{_lambda_.1} parent=11 // pred_fallthru
          _
        // Predicated region
        $region25: #{_lambda_.1} parent=11 // pred_check
          %p328 = pneg %p131
        $region26: #{_lambda_.1} parent=11 // pred_check_branch
          %330 = sbr.rel (%p328) target = $region28
        $region27: #{_lambda_.1} parent=11 // pred_region
          _
        $region28: #{_lambda_.1} parent=11 // pred_fallthru
          _
        // Predicated region
        $region29: #{_lambda_.1} parent=11 // pred_check
          %p331 = pneg %p152
        $region30: #{_lambda_.1} parent=11 // pred_check_branch
          %333 = sbr.rel (%p331) target = $region32
        $region31: #{_lambda_.1} parent=11 // pred_region
          _
        $region32: #{_lambda_.1} parent=11 // pred_fallthru
          _
        // Predicated region
        $region33: #{_lambda_.1} parent=11 // pred_check
          %p334 = pneg %p173
        $region34: #{_lambda_.1} parent=11 // pred_check_branch
          %336 = sbr.rel (%p334) target = $region36
        $region35: #{_lambda_.1} parent=11 // pred_region
          _
        $region36: #{_lambda_.1} parent=11 // pred_fallthru
          _
        // Predicated region
        $region37: #{_lambda_.1} parent=11 // pred_check
          %p337 = pneg %p194
        $region38: #{_lambda_.1} parent=11 // pred_check_branch
          %339 = sbr.rel (%p337) target = $region40
        $region39: #{_lambda_.1} parent=11 // pred_region
          _
        $region40: #{_lambda_.1} parent=11 // pred_fallthru
          _
        // Predicated region
        $region41: #{_lambda_.1} parent=11 // pred_check
          %p340 = pneg %p215
        $region42: #{_lambda_.1} parent=11 // pred_check_branch
          %342 = sbr.rel (%p340) target = $region44
        $region43: #{_lambda_.1} parent=11 // pred_region
          _
        $region44: #{_lambda_.1} parent=11 // pred_fallthru
          _
        // Predicated region
        $region45: #{_lambda_.1} parent=11 // pred_check
          %p343 = pneg %p236
        $region46: #{_lambda_.1} parent=11 // pred_check_branch
          %345 = sbr.rel (%p343) target = $region48
        $region47: #{_lambda_.1} parent=11 // pred_region
          _
        $region48: #{_lambda_.1} parent=11 // pred_fallthru
          _
        // Predicated region
        $region49: #{_lambda_.1} parent=11 // pred_check
          %p346 = pneg %p257
        $region50: #{_lambda_.1} parent=11 // pred_check_branch
          %348 = sbr.rel (%p346) target = $region52
        $region51: #{_lambda_.1} parent=11 // pred_region
          _
        $region52: #{_lambda_.1} parent=11 // pred_fallthru
          _
        // Predicated region
        $region53: #{_lambda_.1} parent=11 // pred_check
          %p349 = pneg %p278
        $region54: #{_lambda_.1} parent=11 // pred_check_branch
          %351 = sbr.rel (%p349) target = $region56
        $region55: #{_lambda_.1} parent=11 // pred_region
          _
        $region56: #{_lambda_.1} parent=11 // pred_fallthru
          _
      $region12: #{_lambda_.1} parent=5 // pred_fallthru
        _
      %p352 = scmp.lt.s32.totalorder %s21, 2
      // Predicated region
      $region57: #{_lambda_.1} parent=5 // pred_check
        %p353 = pneg %p352
      $region58: #{_lambda_.1} parent=5 // pred_check_branch
        %355 = sbr.rel (%p353) target = $region60
      $region59: #{_lambda_.1} parent=5 // pred_region
        // Predicated region
        $region61: #{_lambda_.1} parent=59 // pred_check
          %p356 = pneg %p41
        $region62: #{_lambda_.1} parent=59 // pred_check_branch
          %358 = sbr.rel (%p356) target = $region64
        $region63: #{_lambda_.1} parent=59 // pred_region
          %p359 = scmp.lt.s32.totalorder %s21, 1
          %s360 = scalar_select %p359, %s21, 1
          %s361 = smul.addr %s360, 8
          %s362 = scalar_lea.vmem %s0, %s361
        $region64: #{_lambda_.1} parent=59 // pred_fallthru
          _
      $region60: #{_lambda_.1} parent=5 // pred_fallthru
        _
      %p363 = scmp.le.s32.totalorder 1, %s21
      %p364 = scmp.lt.s32.totalorder %s21, 3
      %p365 = pnand %p363, %p364
      %p366 = pneg %p365
      // Predicated region
      $region65: #{_lambda_.1} parent=5 // pred_check
        _
      $region66: #{_lambda_.1} parent=5 // pred_check_branch
        %368 = sbr.rel (%p365) target = $region68
      $region67: #{_lambda_.1} parent=5 // pred_region
        %s369 = ssub.s32 %s21, 1
        %p370 = scmp.lt.s32.totalorder %s26, 1
        %s371 = scalar_select %p370, %s26, 1
        %s372 = smul.addr %s371, 8
        %s373 = scalar_lea.vmem %s0, %s372
        %p374 = pneg %p47
        %p375 = pneg %p44
        %p376 = pneg %p68
        %p377 = pneg %p65
        %p378 = pneg %p89
        %p379 = pneg %p86
        %p380 = pneg %p110
        %p381 = pneg %p107
        %p382 = pneg %p131
        %p383 = pneg %p128
        %p384 = pneg %p152
        %p385 = pneg %p149
        %p386 = pneg %p173
        %p387 = pneg %p170
        %p388 = pneg %p194
        %p389 = pneg %p191
        %p390 = pneg %p215
        %p391 = pneg %p212
        %p392 = pneg %p236
        %p393 = pneg %p233
        %p394 = pneg %p257
        %p395 = pneg %p254
        %p396 = pneg %p278
        %p397 = pneg %p275
        %p398 = pneg %p304
        %p399 = pneg %p301
        %s400 = sand.u32 %s291, 1
        %s401 = scalar_lea.sflag [#allocation3], %s400
        %s402 = sand.u32 %s291, 1
        %s403 = smul.addr %s402, 8
        %s404 = scalar_lea.vmem [#allocation2], %s403
        %p405 = scmp.lt.s32.totalorder %s26, 1
        %s406 = scalar_select %p405, %s26, 1
        %s407 = smul.addr %s406, 8
        %s408 = scalar_lea.vmem %s0, %s407
        %v410 = vld [vmem:[%s408] sm:$0xff]
        %v411 = vpack.c.bf16 %v410, %v410
        %v412 = vld [vmem:[%s1] sm:$0xff]
        %v413 = vld [vmem:[%s1 + $0x8] sm:$0xff]
        %v414 = vld [vmem:[%s1 + $0x10] sm:$0xff]
        %v415 = vld [vmem:[%s1 + $0x18] sm:$0xff]
        %v416 = vld [vmem:[%s1 + $0x20] sm:$0xff]
        %v417 = vld [vmem:[%s1 + $0x28] sm:$0xff]
        %v418 = vld [vmem:[%s1 + $0x30] sm:$0xff]
        %v419 = vld [vmem:[%s1 + $0x38] sm:$0xff]
        %v420 = vld [vmem:[%s1 + $0x40] sm:$0xff]
        %v421 = vld [vmem:[%s1 + $0x48] sm:$0xff]
        %v422 = vld [vmem:[%s1 + $0x50] sm:$0xff]
        %v423 = vld [vmem:[%s1 + $0x58] sm:$0xff]
        %v424 = vld [vmem:[%s1 + $0x60] sm:$0xff]
        %v425 = vld [vmem:[%s1 + $0x68] sm:$0xff]
        %v426 = vld [vmem:[%s1 + $0x70] sm:$0xff]
        %v427 = vld [vmem:[%s1 + $0x78] sm:$0xff]
        %v428 = vld [vmem:[%s2] sm:$0x3]
        %v430 = vlaneseq
        %v431 = vshrl.u32 %v430, 7
        %v432 = vsub.s32 0, %v431
        %v433 = vrot.slane %v428, %v432
        %v434 = vlaneseq
        %v435 = vshrl.u32 %v434, 7
        %v436 = vsub.s32 1, %v435
        %v437 = vrot.slane %v428, %v436
        %v456 = vunpack.c.l.b16 %v412
        %v457 = vunpack.c.h.b16 %v412
        %v458 = vunpack.c.l.b16 %v413
        %v459 = vunpack.c.h.b16 %v413
        %v460 = vunpack.c.l.b16 %v414
        %v461 = vunpack.c.h.b16 %v414
        %v462 = vunpack.c.l.b16 %v415
        %v463 = vunpack.c.h.b16 %v415
        %v464 = vunpack.c.l.b16 %v416
        %v465 = vunpack.c.h.b16 %v416
        %v466 = vunpack.c.l.b16 %v417
        %v467 = vunpack.c.h.b16 %v417
        %v468 = vunpack.c.l.b16 %v418
        %v469 = vunpack.c.h.b16 %v418
        %v470 = vunpack.c.l.b16 %v419
        %v471 = vunpack.c.h.b16 %v419
        %v472 = vunpack.c.l.b16 %v420
        %v473 = vunpack.c.h.b16 %v420
        %v474 = vunpack.c.l.b16 %v421
        %v475 = vunpack.c.h.b16 %v421
        %v476 = vunpack.c.l.b16 %v422
        %v477 = vunpack.c.h.b16 %v422
        %v478 = vunpack.c.l.b16 %v423
        %v479 = vunpack.c.h.b16 %v423
        %v480 = vunpack.c.l.b16 %v424
        %v481 = vunpack.c.h.b16 %v424
        %v482 = vunpack.c.l.b16 %v425
        %v483 = vunpack.c.h.b16 %v425
        %v484 = vunpack.c.l.b16 %v426
        %v485 = vunpack.c.h.b16 %v426
        %v486 = vunpack.c.l.b16 %v427
        %v487 = vunpack.c.h.b16 %v427
        %v488 = vpack.c.b16 %v458, %v456
        %v489 = vpack.c.b16 %v459, %v457
        %v490 = vpack.c.b16 %v462, %v460
        %v491 = vpack.c.b16 %v463, %v461
        %v492 = vpack.c.b16 %v466, %v464
        %v493 = vpack.c.b16 %v467, %v465
        %v494 = vpack.c.b16 %v470, %v468
        %v495 = vpack.c.b16 %v471, %v469
        %v496 = vpack.c.b16 %v474, %v472
        %v497 = vpack.c.b16 %v475, %v473
        %v498 = vpack.c.b16 %v478, %v476
        %v499 = vpack.c.b16 %v479, %v477
        %v500 = vpack.c.b16 %v482, %v480
        %v501 = vpack.c.b16 %v483, %v481
        %v502 = vpack.c.b16 %v486, %v484
        %v503 = vpack.c.b16 %v487, %v485
        %520 = vmatprep.subr.bf16.mxu0 %v503
        %521 = vmatpush1.bf16.msra.mxu0 %v502
        %522 = vmatprep.subr.bf16.mxu0 %v501
        %523 = vmatpush1.bf16.msra.mxu0 %v500
        %524 = vmatprep.subr.bf16.mxu0 %v499
        %525 = vmatpush1.bf16.msra.mxu0 %v498
        %526 = vmatprep.subr.bf16.mxu0 %v497
        %527 = vmatpush1.bf16.msra.mxu0 %v496
        %528 = vmatprep.subr.bf16.mxu0 %v495
        %529 = vmatpush1.bf16.msra.mxu0 %v494
        %530 = vmatprep.subr.bf16.mxu0 %v493
        %531 = vmatpush1.bf16.msra.mxu0 %v492
        %532 = vmatprep.subr.bf16.mxu0 %v491
        %533 = vmatpush1.bf16.msra.mxu0 %v490
        %534 = vmatprep.subr.bf16.mxu0 %v489
        %535 = vmatpush1.bf16.msra.mxu0 %v488
        %536 = vmatprep.subr.bf16.mxu0 0
        %537 = vmatpush2.bf16.msra.mxu0 0
        %538 = vmatprep.subr.bf16.mxu0 0
        %539 = vmatpush2.bf16.msra.mxu0 0
        %540 = vmatprep.subr.bf16.mxu0 0
        %541 = vmatpush2.bf16.msra.mxu0 0
        %542 = vmatprep.subr.bf16.mxu0 0
        %543 = vmatpush2.bf16.msra.mxu0 0
        %544 = vmatprep.subr.bf16.mxu0 0
        %545 = vmatpush2.bf16.msra.mxu0 0
        %546 = vmatprep.subr.bf16.mxu0 0
        %547 = vmatpush2.bf16.msra.mxu0 0
        %548 = vmatprep.subr.bf16.mxu0 0
        %549 = vmatpush2.bf16.msra.mxu0 0
        %550 = vmatprep.subr.bf16.mxu0 0
        %551 = vmatpush2.bf16.msra.mxu0 0
        %552 = vmatprep.mubr.bf16.mxu0 0
        %553 = vmatmul.mubr.bf16.gmra.mxu0 %v411
        %v554 = vpop.f32.mrf.mxu0
        %v555 = vadd.f32 %v433, %v554
        %v556 = vpop.f32.mrf.mxu0
        %v557 = vadd.f32 %v437, %v556
        %v558 = vpop.f32.mrf.mxu0
        %v559 = vpop.f32.mrf.mxu0
        %560 = vdwg.mxu0
        %v561 = vld [vmem:[%s5] sm:$0x3]
        %v562 = vld [vmem:[%s6] sm:$0x3]
        %v563 = vld [vmem:[%s7] sm:$0xf]
        %v564 = vld [vmem:[%s7 + $0x4] sm:$0xf]
        %v565 = vld [vmem:[%s7 + $0x8] sm:$0xf]
        %v566 = vld [vmem:[%s7 + $0xc] sm:$0xf]
        %v567 = vld [vmem:[%s7 + $0x10] sm:$0xf]
        %v568 = vld [vmem:[%s7 + $0x14] sm:$0xf]
        %v569 = vld [vmem:[%s7 + $0x18] sm:$0xf]
        %v570 = vld [vmem:[%s7 + $0x1c] sm:$0xf]
        %v571 = vld [vmem:[%s7 + $0x20] sm:$0xf]
        %v572 = vld [vmem:[%s7 + $0x24] sm:$0xf]
        %v573 = vld [vmem:[%s7 + $0x28] sm:$0xf]
        %v574 = vld [vmem:[%s7 + $0x2c] sm:$0xf]
        %v575 = vld [vmem:[%s7 + $0x30] sm:$0xf]
        %v576 = vld [vmem:[%s7 + $0x34] sm:$0xf]
        %v577 = vld [vmem:[%s7 + $0x38] sm:$0xf]
        %v578 = vld [vmem:[%s7 + $0x3c] sm:$0xf]
        %v579 = vld [vmem:[%s7 + $0x40] sm:$0xf]
        %v580 = vld [vmem:[%s7 + $0x44] sm:$0xf]
        %v581 = vld [vmem:[%s7 + $0x48] sm:$0xf]
        %v582 = vld [vmem:[%s7 + $0x4c] sm:$0xf]
        %v583 = vld [vmem:[%s7 + $0x50] sm:$0xf]
        %v584 = vld [vmem:[%s7 + $0x54] sm:$0xf]
        %v585 = vld [vmem:[%s7 + $0x58] sm:$0xf]
        %v586 = vld [vmem:[%s7 + $0x5c] sm:$0xf]
        %v587 = vld [vmem:[%s7 + $0x60] sm:$0xf]
        %v588 = vld [vmem:[%s7 + $0x64] sm:$0xf]
        %v589 = vld [vmem:[%s7 + $0x68] sm:$0xf]
        %v590 = vld [vmem:[%s7 + $0x6c] sm:$0xf]
        %v591 = vld [vmem:[%s7 + $0x70] sm:$0xf]
        %v592 = vld [vmem:[%s7 + $0x74] sm:$0xf]
        %v593 = vld [vmem:[%s7 + $0x78] sm:$0xf]
        %v594 = vld [vmem:[%s7 + $0x7c] sm:$0xf]
        %v595 = vld [vmem:[%s7 + $0x80] sm:$0xf]
        %v596 = vld [vmem:[%s7 + $0x84] sm:$0xf]
        %v597 = vld [vmem:[%s7 + $0x88] sm:$0xf]
        %v598 = vld [vmem:[%s7 + $0x8c] sm:$0xf]
        %v599 = vld [vmem:[%s7 + $0x90] sm:$0xf]
        %v600 = vld [vmem:[%s7 + $0x94] sm:$0xf]
        %v601 = vld [vmem:[%s7 + $0x98] sm:$0xf]
        %v602 = vld [vmem:[%s7 + $0x9c] sm:$0xf]
        %v603 = vld [vmem:[%s7 + $0xa0] sm:$0xf]
        %v604 = vld [vmem:[%s7 + $0xa4] sm:$0xf]
        %v605 = vld [vmem:[%s7 + $0xa8] sm:$0xf]
        %v606 = vld [vmem:[%s7 + $0xac] sm:$0xf]
        %v607 = vld [vmem:[%s7 + $0xb0] sm:$0xf]
        %v608 = vld [vmem:[%s7 + $0xb4] sm:$0xf]
        %v609 = vld [vmem:[%s7 + $0xb8] sm:$0xf]
        %v610 = vld [vmem:[%s7 + $0xbc] sm:$0xf]
        %v611 = vld [vmem:[%s7 + $0xc0] sm:$0xf]
        %v612 = vld [vmem:[%s7 + $0xc4] sm:$0xf]
        %v613 = vld [vmem:[%s7 + $0xc8] sm:$0xf]
        %v614 = vld [vmem:[%s7 + $0xcc] sm:$0xf]
        %v615 = vld [vmem:[%s7 + $0xd0] sm:$0xf]
        %v616 = vld [vmem:[%s7 + $0xd4] sm:$0xf]
        %v617 = vld [vmem:[%s7 + $0xd8] sm:$0xf]
        %v618 = vld [vmem:[%s7 + $0xdc] sm:$0xf]
        %v619 = vld [vmem:[%s7 + $0xe0] sm:$0xf]
        %v620 = vld [vmem:[%s7 + $0xe4] sm:$0xf]
        %v621 = vld [vmem:[%s7 + $0xe8] sm:$0xf]
        %v622 = vld [vmem:[%s7 + $0xec] sm:$0xf]
        %v623 = vld [vmem:[%s7 + $0xf0] sm:$0xf]
        %v624 = vld [vmem:[%s7 + $0xf4] sm:$0xf]
        %v625 = vld [vmem:[%s7 + $0xf8] sm:$0xf]
        %v626 = vld [vmem:[%s7 + $0xfc] sm:$0xf]
        %v627 = vld [vmem:[%s7 + $0x100] sm:$0xf]
        %v628 = vld [vmem:[%s7 + $0x104] sm:$0xf]
        %v629 = vld [vmem:[%s7 + $0x108] sm:$0xf]
        %v630 = vld [vmem:[%s7 + $0x10c] sm:$0xf]
        %v631 = vld [vmem:[%s7 + $0x110] sm:$0xf]
        %v632 = vld [vmem:[%s7 + $0x114] sm:$0xf]
        %v633 = vld [vmem:[%s7 + $0x118] sm:$0xf]
        %v634 = vld [vmem:[%s7 + $0x11c] sm:$0xf]
        %v635 = vld [vmem:[%s7 + $0x120] sm:$0xf]
        %v636 = vld [vmem:[%s7 + $0x124] sm:$0xf]
        %v637 = vld [vmem:[%s7 + $0x128] sm:$0xf]
        %v638 = vld [vmem:[%s7 + $0x12c] sm:$0xf]
        %v639 = vld [vmem:[%s7 + $0x130] sm:$0xf]
        %v640 = vld [vmem:[%s7 + $0x134] sm:$0xf]
        %v641 = vld [vmem:[%s7 + $0x138] sm:$0xf]
        %v642 = vld [vmem:[%s7 + $0x13c] sm:$0xf]
        %v643 = vld [vmem:[%s7 + $0x140] sm:$0xf]
        %v644 = vld [vmem:[%s7 + $0x144] sm:$0xf]
        %v645 = vld [vmem:[%s7 + $0x148] sm:$0xf]
        %v646 = vld [vmem:[%s7 + $0x14c] sm:$0xf]
        %v647 = vld [vmem:[%s7 + $0x150] sm:$0xf]
        %v648 = vld [vmem:[%s7 + $0x154] sm:$0xf]
        %v649 = vld [vmem:[%s7 + $0x158] sm:$0xf]
        %v650 = vld [vmem:[%s7 + $0x15c] sm:$0xf]
        %v651 = vld [vmem:[%s7 + $0x160] sm:$0xf]
        %v652 = vld [vmem:[%s7 + $0x164] sm:$0xf]
        %v653 = vld [vmem:[%s7 + $0x168] sm:$0xf]
        %v654 = vld [vmem:[%s7 + $0x16c] sm:$0xf]
        %v655 = vld [vmem:[%s7 + $0x170] sm:$0xf]
        %v656 = vld [vmem:[%s7 + $0x174] sm:$0xf]
        %v657 = vld [vmem:[%s7 + $0x178] sm:$0xf]
        %v658 = vld [vmem:[%s7 + $0x17c] sm:$0xf]
        %v659 = vld [vmem:[%s7 + $0x180] sm:$0xf]
        %v660 = vld [vmem:[%s7 + $0x184] sm:$0xf]
        %v661 = vld [vmem:[%s7 + $0x188] sm:$0xf]
        %v662 = vld [vmem:[%s7 + $0x18c] sm:$0xf]
        %v663 = vld [vmem:[%s7 + $0x190] sm:$0xf]
        %v664 = vld [vmem:[%s7 + $0x194] sm:$0xf]
        %v665 = vld [vmem:[%s7 + $0x198] sm:$0xf]
        %v666 = vld [vmem:[%s7 + $0x19c] sm:$0xf]
        %v667 = vld [vmem:[%s7 + $0x1a0] sm:$0xf]
        %v668 = vld [vmem:[%s7 + $0x1a4] sm:$0xf]
        %v669 = vld [vmem:[%s7 + $0x1a8] sm:$0xf]
        %v670 = vld [vmem:[%s7 + $0x1ac] sm:$0xf]
        %v671 = vld [vmem:[%s7 + $0x1b0] sm:$0xf]
        %v672 = vld [vmem:[%s7 + $0x1b4] sm:$0xf]
        %v673 = vld [vmem:[%s7 + $0x1b8] sm:$0xf]
        %v674 = vld [vmem:[%s7 + $0x1bc] sm:$0xf]
        %v675 = vld [vmem:[%s7 + $0x1c0] sm:$0xf]
        %v676 = vld [vmem:[%s7 + $0x1c4] sm:$0xf]
        %v677 = vld [vmem:[%s7 + $0x1c8] sm:$0xf]
        %v678 = vld [vmem:[%s7 + $0x1cc] sm:$0xf]
        %v679 = vld [vmem:[%s7 + $0x1d0] sm:$0xf]
        %v680 = vld [vmem:[%s7 + $0x1d4] sm:$0xf]
        %v681 = vld [vmem:[%s7 + $0x1d8] sm:$0xf]
        %v682 = vld [vmem:[%s7 + $0x1dc] sm:$0xf]
        %v683 = vld [vmem:[%s7 + $0x1e0] sm:$0xf]
        %v684 = vld [vmem:[%s7 + $0x1e4] sm:$0xf]
        %v685 = vld [vmem:[%s7 + $0x1e8] sm:$0xf]
        %v686 = vld [vmem:[%s7 + $0x1ec] sm:$0xf]
        %v687 = vld [vmem:[%s7 + $0x1f0] sm:$0xf]
        %v688 = vld [vmem:[%s7 + $0x1f4] sm:$0xf]
        %v689 = vld [vmem:[%s7 + $0x1f8] sm:$0xf]
        %v690 = vld [vmem:[%s7 + $0x1fc] sm:$0xf]
        %v691 = vld [vmem:[%s8] sm:$0xf]
        %v692 = vld [vmem:[%s8 + $0x4] sm:$0xf]
        %v693 = vld [vmem:[%s8 + $0x8] sm:$0xf]
        %v694 = vld [vmem:[%s8 + $0xc] sm:$0xf]
        %v695 = vld [vmem:[%s8 + $0x10] sm:$0xf]
        %v696 = vld [vmem:[%s8 + $0x14] sm:$0xf]
        %v697 = vld [vmem:[%s8 + $0x18] sm:$0xf]
        %v698 = vld [vmem:[%s8 + $0x1c] sm:$0xf]
        %v699 = vld [vmem:[%s8 + $0x20] sm:$0xf]
        %v700 = vld [vmem:[%s8 + $0x24] sm:$0xf]
        %v701 = vld [vmem:[%s8 + $0x28] sm:$0xf]
        %v702 = vld [vmem:[%s8 + $0x2c] sm:$0xf]
        %v703 = vld [vmem:[%s8 + $0x30] sm:$0xf]
        %v704 = vld [vmem:[%s8 + $0x34] sm:$0xf]
        %v705 = vld [vmem:[%s8 + $0x38] sm:$0xf]
        %v706 = vld [vmem:[%s8 + $0x3c] sm:$0xf]
        %v707 = vld [vmem:[%s8 + $0x40] sm:$0xf]
        %v708 = vld [vmem:[%s8 + $0x44] sm:$0xf]
        %v709 = vld [vmem:[%s8 + $0x48] sm:$0xf]
        %v710 = vld [vmem:[%s8 + $0x4c] sm:$0xf]
        %v711 = vld [vmem:[%s8 + $0x50] sm:$0xf]
        %v712 = vld [vmem:[%s8 + $0x54] sm:$0xf]
        %v713 = vld [vmem:[%s8 + $0x58] sm:$0xf]
        %v714 = vld [vmem:[%s8 + $0x5c] sm:$0xf]
        %v715 = vld [vmem:[%s8 + $0x60] sm:$0xf]
        %v716 = vld [vmem:[%s8 + $0x64] sm:$0xf]
        %v717 = vld [vmem:[%s8 + $0x68] sm:$0xf]
        %v718 = vld [vmem:[%s8 + $0x6c] sm:$0xf]
        %v719 = vld [vmem:[%s8 + $0x70] sm:$0xf]
        %v720 = vld [vmem:[%s8 + $0x74] sm:$0xf]
        %v721 = vld [vmem:[%s8 + $0x78] sm:$0xf]
        %v722 = vld [vmem:[%s8 + $0x7c] sm:$0xf]
        %v723 = vld [vmem:[%s8 + $0x80] sm:$0xf]
        %v724 = vld [vmem:[%s8 + $0x84] sm:$0xf]
        %v725 = vld [vmem:[%s8 + $0x88] sm:$0xf]
        %v726 = vld [vmem:[%s8 + $0x8c] sm:$0xf]
        %v727 = vld [vmem:[%s8 + $0x90] sm:$0xf]
        %v728 = vld [vmem:[%s8 + $0x94] sm:$0xf]
        %v729 = vld [vmem:[%s8 + $0x98] sm:$0xf]
        %v730 = vld [vmem:[%s8 + $0x9c] sm:$0xf]
        %v731 = vld [vmem:[%s8 + $0xa0] sm:$0xf]
        %v732 = vld [vmem:[%s8 + $0xa4] sm:$0xf]
        %v733 = vld [vmem:[%s8 + $0xa8] sm:$0xf]
        %v734 = vld [vmem:[%s8 + $0xac] sm:$0xf]
        %v735 = vld [vmem:[%s8 + $0xb0] sm:$0xf]
        %v736 = vld [vmem:[%s8 + $0xb4] sm:$0xf]
        %v737 = vld [vmem:[%s8 + $0xb8] sm:$0xf]
        %v738 = vld [vmem:[%s8 + $0xbc] sm:$0xf]
        %v739 = vld [vmem:[%s8 + $0xc0] sm:$0xf]
        %v740 = vld [vmem:[%s8 + $0xc4] sm:$0xf]
        %v741 = vld [vmem:[%s8 + $0xc8] sm:$0xf]
        %v742 = vld [vmem:[%s8 + $0xcc] sm:$0xf]
        %v743 = vld [vmem:[%s8 + $0xd0] sm:$0xf]
        %v744 = vld [vmem:[%s8 + $0xd4] sm:$0xf]
        %v745 = vld [vmem:[%s8 + $0xd8] sm:$0xf]
        %v746 = vld [vmem:[%s8 + $0xdc] sm:$0xf]
        %v747 = vld [vmem:[%s8 + $0xe0] sm:$0xf]
        %v748 = vld [vmem:[%s8 + $0xe4] sm:$0xf]
        %v749 = vld [vmem:[%s8 + $0xe8] sm:$0xf]
        %v750 = vld [vmem:[%s8 + $0xec] sm:$0xf]
        %v751 = vld [vmem:[%s8 + $0xf0] sm:$0xf]
        %v752 = vld [vmem:[%s8 + $0xf4] sm:$0xf]
        %v753 = vld [vmem:[%s8 + $0xf8] sm:$0xf]
        %v754 = vld [vmem:[%s8 + $0xfc] sm:$0xf]
        %v755 = vld [vmem:[%s8 + $0x100] sm:$0xf]
        %v756 = vld [vmem:[%s8 + $0x104] sm:$0xf]
        %v757 = vld [vmem:[%s8 + $0x108] sm:$0xf]
        %v758 = vld [vmem:[%s8 + $0x10c] sm:$0xf]
        %v759 = vld [vmem:[%s8 + $0x110] sm:$0xf]
        %v760 = vld [vmem:[%s8 + $0x114] sm:$0xf]
        %v761 = vld [vmem:[%s8 + $0x118] sm:$0xf]
        %v762 = vld [vmem:[%s8 + $0x11c] sm:$0xf]
        %v763 = vld [vmem:[%s8 + $0x120] sm:$0xf]
        %v764 = vld [vmem:[%s8 + $0x124] sm:$0xf]
        %v765 = vld [vmem:[%s8 + $0x128] sm:$0xf]
        %v766 = vld [vmem:[%s8 + $0x12c] sm:$0xf]
        %v767 = vld [vmem:[%s8 + $0x130] sm:$0xf]
        %v768 = vld [vmem:[%s8 + $0x134] sm:$0xf]
        %v769 = vld [vmem:[%s8 + $0x138] sm:$0xf]
        %v770 = vld [vmem:[%s8 + $0x13c] sm:$0xf]
        %v771 = vld [vmem:[%s8 + $0x140] sm:$0xf]
        %v772 = vld [vmem:[%s8 + $0x144] sm:$0xf]
        %v773 = vld [vmem:[%s8 + $0x148] sm:$0xf]
        %v774 = vld [vmem:[%s8 + $0x14c] sm:$0xf]
        %v775 = vld [vmem:[%s8 + $0x150] sm:$0xf]
        %v776 = vld [vmem:[%s8 + $0x154] sm:$0xf]
        %v777 = vld [vmem:[%s8 + $0x158] sm:$0xf]
        %v778 = vld [vmem:[%s8 + $0x15c] sm:$0xf]
        %v779 = vld [vmem:[%s8 + $0x160] sm:$0xf]
        %v780 = vld [vmem:[%s8 + $0x164] sm:$0xf]
        %v781 = vld [vmem:[%s8 + $0x168] sm:$0xf]
        %v782 = vld [vmem:[%s8 + $0x16c] sm:$0xf]
        %v783 = vld [vmem:[%s8 + $0x170] sm:$0xf]
        %v784 = vld [vmem:[%s8 + $0x174] sm:$0xf]
        %v785 = vld [vmem:[%s8 + $0x178] sm:$0xf]
        %v786 = vld [vmem:[%s8 + $0x17c] sm:$0xf]
        %v787 = vld [vmem:[%s8 + $0x180] sm:$0xf]
        %v788 = vld [vmem:[%s8 + $0x184] sm:$0xf]
        %v789 = vld [vmem:[%s8 + $0x188] sm:$0xf]
        %v790 = vld [vmem:[%s8 + $0x18c] sm:$0xf]
        %v791 = vld [vmem:[%s8 + $0x190] sm:$0xf]
        %v792 = vld [vmem:[%s8 + $0x194] sm:$0xf]
        %v793 = vld [vmem:[%s8 + $0x198] sm:$0xf]
        %v794 = vld [vmem:[%s8 + $0x19c] sm:$0xf]
        %v795 = vld [vmem:[%s8 + $0x1a0] sm:$0xf]
        %v796 = vld [vmem:[%s8 + $0x1a4] sm:$0xf]
        %v797 = vld [vmem:[%s8 + $0x1a8] sm:$0xf]
        %v798 = vld [vmem:[%s8 + $0x1ac] sm:$0xf]
        %v799 = vld [vmem:[%s8 + $0x1b0] sm:$0xf]
        %v800 = vld [vmem:[%s8 + $0x1b4] sm:$0xf]
        %v801 = vld [vmem:[%s8 + $0x1b8] sm:$0xf]
        %v802 = vld [vmem:[%s8 + $0x1bc] sm:$0xf]
        %v803 = vld [vmem:[%s8 + $0x1c0] sm:$0xf]
        %v804 = vld [vmem:[%s8 + $0x1c4] sm:$0xf]
        %v805 = vld [vmem:[%s8 + $0x1c8] sm:$0xf]
        %v806 = vld [vmem:[%s8 + $0x1cc] sm:$0xf]
        %v807 = vld [vmem:[%s8 + $0x1d0] sm:$0xf]
        %v808 = vld [vmem:[%s8 + $0x1d4] sm:$0xf]
        %v809 = vld [vmem:[%s8 + $0x1d8] sm:$0xf]
        %v810 = vld [vmem:[%s8 + $0x1dc] sm:$0xf]
        %v811 = vld [vmem:[%s8 + $0x1e0] sm:$0xf]
        %v812 = vld [vmem:[%s8 + $0x1e4] sm:$0xf]
        %v813 = vld [vmem:[%s8 + $0x1e8] sm:$0xf]
        %v814 = vld [vmem:[%s8 + $0x1ec] sm:$0xf]
        %v815 = vld [vmem:[%s8 + $0x1f0] sm:$0xf]
        %v816 = vld [vmem:[%s8 + $0x1f4] sm:$0xf]
        %v817 = vld [vmem:[%s8 + $0x1f8] sm:$0xf]
        %v818 = vld [vmem:[%s8 + $0x1fc] sm:$0xf]
        %v819 = vld [vmem:[%s9] sm:$0xf]
        %v820 = vld [vmem:[%s9 + $0x4] sm:$0xf]
        %v821 = vld [vmem:[%s9 + $0x8] sm:$0xf]
        %v822 = vld [vmem:[%s9 + $0xc] sm:$0xf]
        %v823 = vld [vmem:[%s9 + $0x10] sm:$0xf]
        %v824 = vld [vmem:[%s9 + $0x14] sm:$0xf]
        %v825 = vld [vmem:[%s9 + $0x18] sm:$0xf]
        %v826 = vld [vmem:[%s9 + $0x1c] sm:$0xf]
        %v827 = vld [vmem:[%s9 + $0x20] sm:$0xf]
        %v828 = vld [vmem:[%s9 + $0x24] sm:$0xf]
        %v829 = vld [vmem:[%s9 + $0x28] sm:$0xf]
        %v830 = vld [vmem:[%s9 + $0x2c] sm:$0xf]
        %v831 = vld [vmem:[%s9 + $0x30] sm:$0xf]
        %v832 = vld [vmem:[%s9 + $0x34] sm:$0xf]
        %v833 = vld [vmem:[%s9 + $0x38] sm:$0xf]
        %v834 = vld [vmem:[%s9 + $0x3c] sm:$0xf]
        %v835 = vld [vmem:[%s9 + $0x40] sm:$0xf]
        %v836 = vld [vmem:[%s9 + $0x44] sm:$0xf]
        %v837 = vld [vmem:[%s9 + $0x48] sm:$0xf]
        %v838 = vld [vmem:[%s9 + $0x4c] sm:$0xf]
        %v839 = vld [vmem:[%s9 + $0x50] sm:$0xf]
        %v840 = vld [vmem:[%s9 + $0x54] sm:$0xf]
        %v841 = vld [vmem:[%s9 + $0x58] sm:$0xf]
        %v842 = vld [vmem:[%s9 + $0x5c] sm:$0xf]
        %v843 = vld [vmem:[%s9 + $0x60] sm:$0xf]
        %v844 = vld [vmem:[%s9 + $0x64] sm:$0xf]
        %v845 = vld [vmem:[%s9 + $0x68] sm:$0xf]
        %v846 = vld [vmem:[%s9 + $0x6c] sm:$0xf]
        %v847 = vld [vmem:[%s9 + $0x70] sm:$0xf]
        %v848 = vld [vmem:[%s9 + $0x74] sm:$0xf]
        %v849 = vld [vmem:[%s9 + $0x78] sm:$0xf]
        %v850 = vld [vmem:[%s9 + $0x7c] sm:$0xf]
        %v851 = vld [vmem:[%s9 + $0x80] sm:$0xf]
        %v852 = vld [vmem:[%s9 + $0x84] sm:$0xf]
        %v853 = vld [vmem:[%s9 + $0x88] sm:$0xf]
        %v854 = vld [vmem:[%s9 + $0x8c] sm:$0xf]
        %v855 = vld [vmem:[%s9 + $0x90] sm:$0xf]
        %v856 = vld [vmem:[%s9 + $0x94] sm:$0xf]
        %v857 = vld [vmem:[%s9 + $0x98] sm:$0xf]
        %v858 = vld [vmem:[%s9 + $0x9c] sm:$0xf]
        %v859 = vld [vmem:[%s9 + $0xa0] sm:$0xf]
        %v860 = vld [vmem:[%s9 + $0xa4] sm:$0xf]
        %v861 = vld [vmem:[%s9 + $0xa8] sm:$0xf]
        %v862 = vld [vmem:[%s9 + $0xac] sm:$0xf]
        %v863 = vld [vmem:[%s9 + $0xb0] sm:$0xf]
        %v864 = vld [vmem:[%s9 + $0xb4] sm:$0xf]
        %v865 = vld [vmem:[%s9 + $0xb8] sm:$0xf]
        %v866 = vld [vmem:[%s9 + $0xbc] sm:$0xf]
        %v867 = vld [vmem:[%s9 + $0xc0] sm:$0xf]
        %v868 = vld [vmem:[%s9 + $0xc4] sm:$0xf]
        %v869 = vld [vmem:[%s9 + $0xc8] sm:$0xf]
        %v870 = vld [vmem:[%s9 + $0xcc] sm:$0xf]
        %v871 = vld [vmem:[%s9 + $0xd0] sm:$0xf]
        %v872 = vld [vmem:[%s9 + $0xd4] sm:$0xf]
        %v873 = vld [vmem:[%s9 + $0xd8] sm:$0xf]
        %v874 = vld [vmem:[%s9 + $0xdc] sm:$0xf]
        %v875 = vld [vmem:[%s9 + $0xe0] sm:$0xf]
        %v876 = vld [vmem:[%s9 + $0xe4] sm:$0xf]
        %v877 = vld [vmem:[%s9 + $0xe8] sm:$0xf]
        %v878 = vld [vmem:[%s9 + $0xec] sm:$0xf]
        %v879 = vld [vmem:[%s9 + $0xf0] sm:$0xf]
        %v880 = vld [vmem:[%s9 + $0xf4] sm:$0xf]
        %v881 = vld [vmem:[%s9 + $0xf8] sm:$0xf]
        %v882 = vld [vmem:[%s9 + $0xfc] sm:$0xf]
        %v883 = vld [vmem:[%s9 + $0x100] sm:$0xf]
        %v884 = vld [vmem:[%s9 + $0x104] sm:$0xf]
        %v885 = vld [vmem:[%s9 + $0x108] sm:$0xf]
        %v886 = vld [vmem:[%s9 + $0x10c] sm:$0xf]
        %v887 = vld [vmem:[%s9 + $0x110] sm:$0xf]
        %v888 = vld [vmem:[%s9 + $0x114] sm:$0xf]
        %v889 = vld [vmem:[%s9 + $0x118] sm:$0xf]
        %v890 = vld [vmem:[%s9 + $0x11c] sm:$0xf]
        %v891 = vld [vmem:[%s9 + $0x120] sm:$0xf]
        %v892 = vld [vmem:[%s9 + $0x124] sm:$0xf]
        %v893 = vld [vmem:[%s9 + $0x128] sm:$0xf]
        %v894 = vld [vmem:[%s9 + $0x12c] sm:$0xf]
        %v895 = vld [vmem:[%s9 + $0x130] sm:$0xf]
        %v896 = vld [vmem:[%s9 + $0x134] sm:$0xf]
        %v897 = vld [vmem:[%s9 + $0x138] sm:$0xf]
        %v898 = vld [vmem:[%s9 + $0x13c] sm:$0xf]
        %v899 = vld [vmem:[%s9 + $0x140] sm:$0xf]
        %v900 = vld [vmem:[%s9 + $0x144] sm:$0xf]
        %v901 = vld [vmem:[%s9 + $0x148] sm:$0xf]
        %v902 = vld [vmem:[%s9 + $0x14c] sm:$0xf]
        %v903 = vld [vmem:[%s9 + $0x150] sm:$0xf]
        %v904 = vld [vmem:[%s9 + $0x154] sm:$0xf]
        %v905 = vld [vmem:[%s9 + $0x158] sm:$0xf]
        %v906 = vld [vmem:[%s9 + $0x15c] sm:$0xf]
        %v907 = vld [vmem:[%s9 + $0x160] sm:$0xf]
        %v908 = vld [vmem:[%s9 + $0x164] sm:$0xf]
        %v909 = vld [vmem:[%s9 + $0x168] sm:$0xf]
        %v910 = vld [vmem:[%s9 + $0x16c] sm:$0xf]
        %v911 = vld [vmem:[%s9 + $0x170] sm:$0xf]
        %v912 = vld [vmem:[%s9 + $0x174] sm:$0xf]
        %v913 = vld [vmem:[%s9 + $0x178] sm:$0xf]
        %v914 = vld [vmem:[%s9 + $0x17c] sm:$0xf]
        %v915 = vld [vmem:[%s9 + $0x180] sm:$0xf]
        %v916 = vld [vmem:[%s9 + $0x184] sm:$0xf]
        %v917 = vld [vmem:[%s9 + $0x188] sm:$0xf]
        %v918 = vld [vmem:[%s9 + $0x18c] sm:$0xf]
        %v919 = vld [vmem:[%s9 + $0x190] sm:$0xf]
        %v920 = vld [vmem:[%s9 + $0x194] sm:$0xf]
        %v921 = vld [vmem:[%s9 + $0x198] sm:$0xf]
        %v922 = vld [vmem:[%s9 + $0x19c] sm:$0xf]
        %v923 = vld [vmem:[%s9 + $0x1a0] sm:$0xf]
        %v924 = vld [vmem:[%s9 + $0x1a4] sm:$0xf]
        %v925 = vld [vmem:[%s9 + $0x1a8] sm:$0xf]
        %v926 = vld [vmem:[%s9 + $0x1ac] sm:$0xf]
        %v927 = vld [vmem:[%s9 + $0x1b0] sm:$0xf]
        %v928 = vld [vmem:[%s9 + $0x1b4] sm:$0xf]
        %v929 = vld [vmem:[%s9 + $0x1b8] sm:$0xf]
        %v930 = vld [vmem:[%s9 + $0x1bc] sm:$0xf]
        %v931 = vld [vmem:[%s9 + $0x1c0] sm:$0xf]
        %v932 = vld [vmem:[%s9 + $0x1c4] sm:$0xf]
        %v933 = vld [vmem:[%s9 + $0x1c8] sm:$0xf]
        %v934 = vld [vmem:[%s9 + $0x1cc] sm:$0xf]
        %v935 = vld [vmem:[%s9 + $0x1d0] sm:$0xf]
        %v936 = vld [vmem:[%s9 + $0x1d4] sm:$0xf]
        %v937 = vld [vmem:[%s9 + $0x1d8] sm:$0xf]
        %v938 = vld [vmem:[%s9 + $0x1dc] sm:$0xf]
        %v939 = vld [vmem:[%s9 + $0x1e0] sm:$0xf]
        %v940 = vld [vmem:[%s9 + $0x1e4] sm:$0xf]
        %v941 = vld [vmem:[%s9 + $0x1e8] sm:$0xf]
        %v942 = vld [vmem:[%s9 + $0x1ec] sm:$0xf]
        %v943 = vld [vmem:[%s9 + $0x1f0] sm:$0xf]
        %v944 = vld [vmem:[%s9 + $0x1f4] sm:$0xf]
        %v945 = vld [vmem:[%s9 + $0x1f8] sm:$0xf]
        %v946 = vld [vmem:[%s9 + $0x1fc] sm:$0xf]
        %v947 = vld [vmem:[%s10] sm:$0xff]
        %v948 = vld [vmem:[%s10 + $0x8] sm:$0xff]
        %v949 = vld [vmem:[%s10 + $0x10] sm:$0xff]
        %v950 = vld [vmem:[%s10 + $0x18] sm:$0xff]
        %v951 = vld [vmem:[%s10 + $0x20] sm:$0xff]
        %v952 = vld [vmem:[%s10 + $0x28] sm:$0xff]
        %v953 = vld [vmem:[%s10 + $0x30] sm:$0xff]
        %v954 = vld [vmem:[%s10 + $0x38] sm:$0xff]
        %v955 = vld [vmem:[%s10 + $0x40] sm:$0xff]
        %v956 = vld [vmem:[%s10 + $0x48] sm:$0xff]
        %v957 = vld [vmem:[%s10 + $0x50] sm:$0xff]
        %v958 = vld [vmem:[%s10 + $0x58] sm:$0xff]
        %v959 = vld [vmem:[%s10 + $0x60] sm:$0xff]
        %v960 = vld [vmem:[%s10 + $0x68] sm:$0xff]
        %v961 = vld [vmem:[%s10 + $0x70] sm:$0xff]
        %v962 = vld [vmem:[%s10 + $0x78] sm:$0xff]
        %v963 = vld [vmem:[%s10 + $0x80] sm:$0xff]
        %v964 = vld [vmem:[%s10 + $0x88] sm:$0xff]
        %v965 = vld [vmem:[%s10 + $0x90] sm:$0xff]
        %v966 = vld [vmem:[%s10 + $0x98] sm:$0xff]
        %v967 = vld [vmem:[%s10 + $0xa0] sm:$0xff]
        %v968 = vld [vmem:[%s10 + $0xa8] sm:$0xff]
        %v969 = vld [vmem:[%s10 + $0xb0] sm:$0xff]
        %v970 = vld [vmem:[%s10 + $0xb8] sm:$0xff]
        %v971 = vld [vmem:[%s10 + $0xc0] sm:$0xff]
        %v972 = vld [vmem:[%s10 + $0xc8] sm:$0xff]
        %v973 = vld [vmem:[%s10 + $0xd0] sm:$0xff]
        %v974 = vld [vmem:[%s10 + $0xd8] sm:$0xff]
        %v975 = vld [vmem:[%s10 + $0xe0] sm:$0xff]
        %v976 = vld [vmem:[%s10 + $0xe8] sm:$0xff]
        %v977 = vld [vmem:[%s10 + $0xf0] sm:$0xff]
        %v978 = vld [vmem:[%s10 + $0xf8] sm:$0xff]
        %v979 = vld [vmem:[%s11] sm:$0x3]
        %v980 = vadd.f32 %v555, %v557
        %981 = vadd.xlane.f32.xlu0 %v980
        %v982 = vpop.xlane.xlu0 %981
        %v983 = vrcp.pop 256.0
        %v984 = vmul.f32 %v982, %v983
        %v985 = vsub.f32 %v555, %v984
        %v986 = vsub.f32 %v557, %v984
        %v987 = vmul.f32 %v985, %v985
        %v988 = vmul.f32 %v986, %v986
        %v989 = vadd.f32 %v987, %v988
        %990 = vadd.xlane.f32.xlu0 %v989
        %v991 = vpop.xlane.xlu0 %990
        %v992 = vmul.f32 %v991, %v983
        %v993 = vadd.f32 %v992, 1e-05
        %v994 = vrsqrt.pop %v993
        %v995 = vmul.f32 %v985, %v994
        %v996 = vmul.f32 %v986, %v994
        %v998 = vlaneseq
        %v999 = vshrl.u32 %v998, 7
        %v1000 = vsub.s32 0, %v999
        %v1001 = vrot.slane %v561, %v1000
        %v1002 = vlaneseq
        %v1003 = vshrl.u32 %v1002, 7
        %v1004 = vsub.s32 1, %v1003
        %v1005 = vrot.slane %v561, %v1004
        %v1008 = vmul.f32 %v995, %v1001
        %v1009 = vmul.f32 %v996, %v1005
        %v1011 = vlaneseq
        %v1012 = vshrl.u32 %v1011, 7
        %v1013 = vsub.s32 0, %v1012
        %v1014 = vrot.slane %v562, %v1013
        %v1015 = vlaneseq
        %v1016 = vshrl.u32 %v1015, 7
        %v1017 = vsub.s32 1, %v1016
        %v1018 = vrot.slane %v562, %v1017
        %v1021 = vadd.f32 %v1008, %v1014
        %v1022 = vadd.f32 %v1009, %v1018
        %v1023 = vpack.c.bf16 %v1021, %v1021
        %v1024 = vpack.c.bf16 %v1022, %v1022
        %v1057 = vunpack.c.l.b16 %v563
        %v1058 = vunpack.c.l.b16 %v564
        %v1059 = vunpack.c.l.b16 %v565
        %v1060 = vunpack.c.l.b16 %v566
        %v1061 = vunpack.c.l.b16 %v567
        %v1062 = vunpack.c.l.b16 %v568
        %v1063 = vunpack.c.l.b16 %v569
        %v1064 = vunpack.c.l.b16 %v570
        %v1065 = vunpack.c.l.b16 %v571
        %v1066 = vunpack.c.l.b16 %v572
        %v1067 = vunpack.c.l.b16 %v573
        %v1068 = vunpack.c.l.b16 %v574
        %v1069 = vunpack.c.l.b16 %v575
        %v1070 = vunpack.c.l.b16 %v576
        %v1071 = vunpack.c.l.b16 %v577
        %v1072 = vunpack.c.l.b16 %v578
        %v1073 = vunpack.c.l.b16 %v579
        %v1074 = vunpack.c.l.b16 %v580
        %v1075 = vunpack.c.l.b16 %v581
        %v1076 = vunpack.c.l.b16 %v582
        %v1077 = vunpack.c.l.b16 %v583
        %v1078 = vunpack.c.l.b16 %v584
        %v1079 = vunpack.c.l.b16 %v585
        %v1080 = vunpack.c.l.b16 %v586
        %v1081 = vunpack.c.l.b16 %v587
        %v1082 = vunpack.c.l.b16 %v588
        %v1083 = vunpack.c.l.b16 %v589
        %v1084 = vunpack.c.l.b16 %v590
        %v1085 = vunpack.c.l.b16 %v591
        %v1086 = vunpack.c.l.b16 %v592
        %v1087 = vunpack.c.l.b16 %v593
        %v1088 = vunpack.c.l.b16 %v594
        %v1089 = vpack.c.b16 %v1058, %v1057
        %v1090 = vpack.c.b16 %v1060, %v1059
        %v1091 = vpack.c.b16 %v1062, %v1061
        %v1092 = vpack.c.b16 %v1064, %v1063
        %v1093 = vpack.c.b16 %v1066, %v1065
        %v1094 = vpack.c.b16 %v1068, %v1067
        %v1095 = vpack.c.b16 %v1070, %v1069
        %v1096 = vpack.c.b16 %v1072, %v1071
        %v1097 = vpack.c.b16 %v1074, %v1073
        %v1098 = vpack.c.b16 %v1076, %v1075
        %v1099 = vpack.c.b16 %v1078, %v1077
        %v1100 = vpack.c.b16 %v1080, %v1079
        %v1101 = vpack.c.b16 %v1082, %v1081
        %v1102 = vpack.c.b16 %v1084, %v1083
        %v1103 = vpack.c.b16 %v1086, %v1085
        %v1104 = vpack.c.b16 %v1088, %v1087
        %1121 = vmatprep.subr.bf16.mxu0 0
        %1122 = vmatpush1.bf16.msra.mxu0 %v1096
        %1123 = vmatprep.subr.bf16.mxu0 0
        %1124 = vmatpush1.bf16.msra.mxu0 %v1095
        %1125 = vmatprep.subr.bf16.mxu0 0
        %1126 = vmatpush1.bf16.msra.mxu0 %v1094
        %1127 = vmatprep.subr.bf16.mxu0 0
        %1128 = vmatpush1.bf16.msra.mxu0 %v1093
        %1129 = vmatprep.subr.bf16.mxu0 0
        %1130 = vmatpush1.bf16.msra.mxu0 %v1092
        %1131 = vmatprep.subr.bf16.mxu0 0
        %1132 = vmatpush1.bf16.msra.mxu0 %v1091
        %1133 = vmatprep.subr.bf16.mxu0 0
        %1134 = vmatpush1.bf16.msra.mxu0 %v1090
        %1135 = vmatprep.subr.bf16.mxu0 0
        %1136 = vmatpush1.bf16.msra.mxu0 %v1089
        %1137 = vmatprep.subr.bf16.mxu0 0
        %1138 = vmatpush2.bf16.msra.mxu0 %v1104
        %1139 = vmatprep.subr.bf16.mxu0 0
        %1140 = vmatpush2.bf16.msra.mxu0 %v1103
        %1141 = vmatprep.subr.bf16.mxu0 0
        %1142 = vmatpush2.bf16.msra.mxu0 %v1102
        %1143 = vmatprep.subr.bf16.mxu0 0
        %1144 = vmatpush2.bf16.msra.mxu0 %v1101
        %1145 = vmatprep.subr.bf16.mxu0 0
        %1146 = vmatpush2.bf16.msra.mxu0 %v1100
        %1147 = vmatprep.subr.bf16.mxu0 0
        %1148 = vmatpush2.bf16.msra.mxu0 %v1099
        %1149 = vmatprep.subr.bf16.mxu0 0
        %1150 = vmatpush2.bf16.msra.mxu0 %v1098
        %1151 = vmatprep.subr.bf16.mxu0 0
        %1152 = vmatpush2.bf16.msra.mxu0 %v1097
        %1153 = vmatprep.mubr.bf16.mxu0 %v1024
        %1154 = vmatmul.mubr.bf16.gmra.mxu0 %v1023
        %v1155 = vpop.f32.mrf.mxu0
        %v1156 = vadd.f32 0.0, %v1155
        %v1157 = vpop.f32.mrf.mxu0
        %v1158 = vpop.f32.mrf.mxu0
        %v1159 = vpop.f32.mrf.mxu0
        %1160 = vdwg.mxu0
        %v1193 = vunpack.c.l.b16 %v595
        %v1194 = vunpack.c.l.b16 %v596
        %v1195 = vunpack.c.l.b16 %v597
        %v1196 = vunpack.c.l.b16 %v598
        %v1197 = vunpack.c.l.b16 %v599
        %v1198 = vunpack.c.l.b16 %v600
        %v1199 = vunpack.c.l.b16 %v601
        %v1200 = vunpack.c.l.b16 %v602
        %v1201 = vunpack.c.l.b16 %v603
        %v1202 = vunpack.c.l.b16 %v604
        %v1203 = vunpack.c.l.b16 %v605
        %v1204 = vunpack.c.l.b16 %v606
        %v1205 = vunpack.c.l.b16 %v607
        %v1206 = vunpack.c.l.b16 %v608
        %v1207 = vunpack.c.l.b16 %v609
        %v1208 = vunpack.c.l.b16 %v610
        %v1209 = vunpack.c.l.b16 %v611
        %v1210 = vunpack.c.l.b16 %v612
        %v1211 = vunpack.c.l.b16 %v613
        %v1212 = vunpack.c.l.b16 %v614
        %v1213 = vunpack.c.l.b16 %v615
        %v1214 = vunpack.c.l.b16 %v616
        %v1215 = vunpack.c.l.b16 %v617
        %v1216 = vunpack.c.l.b16 %v618
        %v1217 = vunpack.c.l.b16 %v619
        %v1218 = vunpack.c.l.b16 %v620
        %v1219 = vunpack.c.l.b16 %v621
        %v1220 = vunpack.c.l.b16 %v622
        %v1221 = vunpack.c.l.b16 %v623
        %v1222 = vunpack.c.l.b16 %v624
        %v1223 = vunpack.c.l.b16 %v625
        %v1224 = vunpack.c.l.b16 %v626
        %v1225 = vpack.c.b16 %v1194, %v1193
        %v1226 = vpack.c.b16 %v1196, %v1195
        %v1227 = vpack.c.b16 %v1198, %v1197
        %v1228 = vpack.c.b16 %v1200, %v1199
        %v1229 = vpack.c.b16 %v1202, %v1201
        %v1230 = vpack.c.b16 %v1204, %v1203
        %v1231 = vpack.c.b16 %v1206, %v1205
        %v1232 = vpack.c.b16 %v1208, %v1207
        %v1233 = vpack.c.b16 %v1210, %v1209
        %v1234 = vpack.c.b16 %v1212, %v1211
        %v1235 = vpack.c.b16 %v1214, %v1213
        %v1236 = vpack.c.b16 %v1216, %v1215
        %v1237 = vpack.c.b16 %v1218, %v1217
        %v1238 = vpack.c.b16 %v1220, %v1219
        %v1239 = vpack.c.b16 %v1222, %v1221
        %v1240 = vpack.c.b16 %v1224, %v1223
        %1257 = vmatprep.subr.bf16.mxu0 0
        %1258 = vmatpush1.bf16.msra.mxu0 %v1232
        %1259 = vmatprep.subr.bf16.mxu0 0
        %1260 = vmatpush1.bf16.msra.mxu0 %v1231
        %1261 = vmatprep.subr.bf16.mxu0 0
        %1262 = vmatpush1.bf16.msra.mxu0 %v1230
        %1263 = vmatprep.subr.bf16.mxu0 0
        %1264 = vmatpush1.bf16.msra.mxu0 %v1229
        %1265 = vmatprep.subr.bf16.mxu0 0
        %1266 = vmatpush1.bf16.msra.mxu0 %v1228
        %1267 = vmatprep.subr.bf16.mxu0 0
        %1268 = vmatpush1.bf16.msra.mxu0 %v1227
        %1269 = vmatprep.subr.bf16.mxu0 0
        %1270 = vmatpush1.bf16.msra.mxu0 %v1226
        %1271 = vmatprep.subr.bf16.mxu0 0
        %1272 = vmatpush1.bf16.msra.mxu0 %v1225
        %1273 = vmatprep.subr.bf16.mxu0 0
        %1274 = vmatpush2.bf16.msra.mxu0 %v1240
        %1275 = vmatprep.subr.bf16.mxu0 0
        %1276 = vmatpush2.bf16.msra.mxu0 %v1239
        %1277 = vmatprep.subr.bf16.mxu0 0
        %1278 = vmatpush2.bf16.msra.mxu0 %v1238
        %1279 = vmatprep.subr.bf16.mxu0 0
        %1280 = vmatpush2.bf16.msra.mxu0 %v1237
        %1281 = vmatprep.subr.bf16.mxu0 0
        %1282 = vmatpush2.bf16.msra.mxu0 %v1236
        %1283 = vmatprep.subr.bf16.mxu0 0
        %1284 = vmatpush2.bf16.msra.mxu0 %v1235
        %1285 = vmatprep.subr.bf16.mxu0 0
        %1286 = vmatpush2.bf16.msra.mxu0 %v1234
        %1287 = vmatprep.subr.bf16.mxu0 0
        %1288 = vmatpush2.bf16.msra.mxu0 %v1233
        %1289 = vmatprep.mubr.bf16.mxu0 %v1024
        %1290 = vmatmul.mubr.bf16.gmra.mxu0 %v1023
        %v1291 = vpop.f32.mrf.mxu0
        %v1292 = vadd.f32 0.0, %v1291
        %v1293 = vpop.f32.mrf.mxu0
        %v1294 = vpop.f32.mrf.mxu0
        %v1295 = vpop.f32.mrf.mxu0
        %1296 = vdwg.mxu0
        %v1329 = vunpack.c.l.b16 %v627
        %v1330 = vunpack.c.l.b16 %v628
        %v1331 = vunpack.c.l.b16 %v629
        %v1332 = vunpack.c.l.b16 %v630
        %v1333 = vunpack.c.l.b16 %v631
        %v1334 = vunpack.c.l.b16 %v632
        %v1335 = vunpack.c.l.b16 %v633
        %v1336 = vunpack.c.l.b16 %v634
        %v1337 = vunpack.c.l.b16 %v635
        %v1338 = vunpack.c.l.b16 %v636
        %v1339 = vunpack.c.l.b16 %v637
        %v1340 = vunpack.c.l.b16 %v638
        %v1341 = vunpack.c.l.b16 %v639
        %v1342 = vunpack.c.l.b16 %v640
        %v1343 = vunpack.c.l.b16 %v641
        %v1344 = vunpack.c.l.b16 %v642
        %v1345 = vunpack.c.l.b16 %v643
        %v1346 = vunpack.c.l.b16 %v644
        %v1347 = vunpack.c.l.b16 %v645
        %v1348 = vunpack.c.l.b16 %v646
        %v1349 = vunpack.c.l.b16 %v647
        %v1350 = vunpack.c.l.b16 %v648
        %v1351 = vunpack.c.l.b16 %v649
        %v1352 = vunpack.c.l.b16 %v650
        %v1353 = vunpack.c.l.b16 %v651
        %v1354 = vunpack.c.l.b16 %v652
        %v1355 = vunpack.c.l.b16 %v653
        %v1356 = vunpack.c.l.b16 %v654
        %v1357 = vunpack.c.l.b16 %v655
        %v1358 = vunpack.c.l.b16 %v656
        %v1359 = vunpack.c.l.b16 %v657
        %v1360 = vunpack.c.l.b16 %v658
        %v1361 = vpack.c.b16 %v1330, %v1329
        %v1362 = vpack.c.b16 %v1332, %v1331
        %v1363 = vpack.c.b16 %v1334, %v1333
        %v1364 = vpack.c.b16 %v1336, %v1335
        %v1365 = vpack.c.b16 %v1338, %v1337
        %v1366 = vpack.c.b16 %v1340, %v1339
        %v1367 = vpack.c.b16 %v1342, %v1341
        %v1368 = vpack.c.b16 %v1344, %v1343
        %v1369 = vpack.c.b16 %v1346, %v1345
        %v1370 = vpack.c.b16 %v1348, %v1347
        %v1371 = vpack.c.b16 %v1350, %v1349
        %v1372 = vpack.c.b16 %v1352, %v1351
        %v1373 = vpack.c.b16 %v1354, %v1353
        %v1374 = vpack.c.b16 %v1356, %v1355
        %v1375 = vpack.c.b16 %v1358, %v1357
        %v1376 = vpack.c.b16 %v1360, %v1359
        %1393 = vmatprep.subr.bf16.mxu0 0
        %1394 = vmatpush1.bf16.msra.mxu0 %v1368
        %1395 = vmatprep.subr.bf16.mxu0 0
        %1396 = vmatpush1.bf16.msra.mxu0 %v1367
        %1397 = vmatprep.subr.bf16.mxu0 0
        %1398 = vmatpush1.bf16.msra.mxu0 %v1366
        %1399 = vmatprep.subr.bf16.mxu0 0
        %1400 = vmatpush1.bf16.msra.mxu0 %v1365
        %1401 = vmatprep.subr.bf16.mxu0 0
        %1402 = vmatpush1.bf16.msra.mxu0 %v1364
        %1403 = vmatprep.subr.bf16.mxu0 0
        %1404 = vmatpush1.bf16.msra.mxu0 %v1363
        %1405 = vmatprep.subr.bf16.mxu0 0
        %1406 = vmatpush1.bf16.msra.mxu0 %v1362
        %1407 = vmatprep.subr.bf16.mxu0 0
        %1408 = vmatpush1.bf16.msra.mxu0 %v1361
        %1409 = vmatprep.subr.bf16.mxu0 0
        %1410 = vmatpush2.bf16.msra.mxu0 %v1376
        %1411 = vmatprep.subr.bf16.mxu0 0
        %1412 = vmatpush2.bf16.msra.mxu0 %v1375
        %1413 = vmatprep.subr.bf16.mxu0 0
        %1414 = vmatpush2.bf16.msra.mxu0 %v1374
        %1415 = vmatprep.subr.bf16.mxu0 0
        %1416 = vmatpush2.bf16.msra.mxu0 %v1373
        %1417 = vmatprep.subr.bf16.mxu0 0
        %1418 = vmatpush2.bf16.msra.mxu0 %v1372
        %1419 = vmatprep.subr.bf16.mxu0 0
        %1420 = vmatpush2.bf16.msra.mxu0 %v1371
        %1421 = vmatprep.subr.bf16.mxu0 0
        %1422 = vmatpush2.bf16.msra.mxu0 %v1370
        %1423 = vmatprep.subr.bf16.mxu0 0
        %1424 = vmatpush2.bf16.msra.mxu0 %v1369
        %1425 = vmatprep.mubr.bf16.mxu0 %v1024
        %1426 = vmatmul.mubr.bf16.gmra.mxu0 %v1023
        %v1427 = vpop.f32.mrf.mxu0
        %v1428 = vadd.f32 0.0, %v1427
        %v1429 = vpop.f32.mrf.mxu0
        %v1430 = vpop.f32.mrf.mxu0
        %v1431 = vpop.f32.mrf.mxu0
        %1432 = vdwg.mxu0
        %v1465 = vunpack.c.l.b16 %v659
        %v1466 = vunpack.c.l.b16 %v660
        %v1467 = vunpack.c.l.b16 %v661
        %v1468 = vunpack.c.l.b16 %v662
        %v1469 = vunpack.c.l.b16 %v663
        %v1470 = vunpack.c.l.b16 %v664
        %v1471 = vunpack.c.l.b16 %v665
        %v1472 = vunpack.c.l.b16 %v666
        %v1473 = vunpack.c.l.b16 %v667
        %v1474 = vunpack.c.l.b16 %v668
        %v1475 = vunpack.c.l.b16 %v669
        %v1476 = vunpack.c.l.b16 %v670
        %v1477 = vunpack.c.l.b16 %v671
        %v1478 = vunpack.c.l.b16 %v672
        %v1479 = vunpack.c.l.b16 %v673
        %v1480 = vunpack.c.l.b16 %v674
        %v1481 = vunpack.c.l.b16 %v675
        %v1482 = vunpack.c.l.b16 %v676
        %v1483 = vunpack.c.l.b16 %v677
        %v1484 = vunpack.c.l.b16 %v678
        %v1485 = vunpack.c.l.b16 %v679
        %v1486 = vunpack.c.l.b16 %v680
        %v1487 = vunpack.c.l.b16 %v681
        %v1488 = vunpack.c.l.b16 %v682
        %v1489 = vunpack.c.l.b16 %v683
        %v1490 = vunpack.c.l.b16 %v684
        %v1491 = vunpack.c.l.b16 %v685
        %v1492 = vunpack.c.l.b16 %v686
        %v1493 = vunpack.c.l.b16 %v687
        %v1494 = vunpack.c.l.b16 %v688
        %v1495 = vunpack.c.l.b16 %v689
        %v1496 = vunpack.c.l.b16 %v690
        %v1497 = vpack.c.b16 %v1466, %v1465
        %v1498 = vpack.c.b16 %v1468, %v1467
        %v1499 = vpack.c.b16 %v1470, %v1469
        %v1500 = vpack.c.b16 %v1472, %v1471
        %v1501 = vpack.c.b16 %v1474, %v1473
        %v1502 = vpack.c.b16 %v1476, %v1475
        %v1503 = vpack.c.b16 %v1478, %v1477
        %v1504 = vpack.c.b16 %v1480, %v1479
        %v1505 = vpack.c.b16 %v1482, %v1481
        %v1506 = vpack.c.b16 %v1484, %v1483
        %v1507 = vpack.c.b16 %v1486, %v1485
        %v1508 = vpack.c.b16 %v1488, %v1487
        %v1509 = vpack.c.b16 %v1490, %v1489
        %v1510 = vpack.c.b16 %v1492, %v1491
        %v1511 = vpack.c.b16 %v1494, %v1493
        %v1512 = vpack.c.b16 %v1496, %v1495
        %1529 = vmatprep.subr.bf16.mxu0 0
        %1530 = vmatpush1.bf16.msra.mxu0 %v1504
        %1531 = vmatprep.subr.bf16.mxu0 0
        %1532 = vmatpush1.bf16.msra.mxu0 %v1503
        %1533 = vmatprep.subr.bf16.mxu0 0
        %1534 = vmatpush1.bf16.msra.mxu0 %v1502
        %1535 = vmatprep.subr.bf16.mxu0 0
        %1536 = vmatpush1.bf16.msra.mxu0 %v1501
        %1537 = vmatprep.subr.bf16.mxu0 0
        %1538 = vmatpush1.bf16.msra.mxu0 %v1500
        %1539 = vmatprep.subr.bf16.mxu0 0
        %1540 = vmatpush1.bf16.msra.mxu0 %v1499
        %1541 = vmatprep.subr.bf16.mxu0 0
        %1542 = vmatpush1.bf16.msra.mxu0 %v1498
        %1543 = vmatprep.subr.bf16.mxu0 0
        %1544 = vmatpush1.bf16.msra.mxu0 %v1497
        %1545 = vmatprep.subr.bf16.mxu0 0
        %1546 = vmatpush2.bf16.msra.mxu0 %v1512
        %1547 = vmatprep.subr.bf16.mxu0 0
        %1548 = vmatpush2.bf16.msra.mxu0 %v1511
        %1549 = vmatprep.subr.bf16.mxu0 0
        %1550 = vmatpush2.bf16.msra.mxu0 %v1510
        %1551 = vmatprep.subr.bf16.mxu0 0
        %1552 = vmatpush2.bf16.msra.mxu0 %v1509
        %1553 = vmatprep.subr.bf16.mxu0 0
        %1554 = vmatpush2.bf16.msra.mxu0 %v1508
        %1555 = vmatprep.subr.bf16.mxu0 0
        %1556 = vmatpush2.bf16.msra.mxu0 %v1507
        %1557 = vmatprep.subr.bf16.mxu0 0
        %1558 = vmatpush2.bf16.msra.mxu0 %v1506
        %1559 = vmatprep.subr.bf16.mxu0 0
        %1560 = vmatpush2.bf16.msra.mxu0 %v1505
        %1561 = vmatprep.mubr.bf16.mxu0 %v1024
        %1562 = vmatmul.mubr.bf16.gmra.mxu0 %v1023
        %v1563 = vpop.f32.mrf.mxu0
        %v1564 = vadd.f32 0.0, %v1563
        %v1565 = vpop.f32.mrf.mxu0
        %v1566 = vpop.f32.mrf.mxu0
        %v1567 = vpop.f32.mrf.mxu0
        %1568 = vdwg.mxu0
        %v1601 = vunpack.c.l.b16 %v691
        %v1602 = vunpack.c.l.b16 %v692
        %v1603 = vunpack.c.l.b16 %v693
        %v1604 = vunpack.c.l.b16 %v694
        %v1605 = vunpack.c.l.b16 %v695
        %v1606 = vunpack.c.l.b16 %v696
        %v1607 = vunpack.c.l.b16 %v697
        %v1608 = vunpack.c.l.b16 %v698
        %v1609 = vunpack.c.l.b16 %v699
        %v1610 = vunpack.c.l.b16 %v700
        %v1611 = vunpack.c.l.b16 %v701
        %v1612 = vunpack.c.l.b16 %v702
        %v1613 = vunpack.c.l.b16 %v703
        %v1614 = vunpack.c.l.b16 %v704
        %v1615 = vunpack.c.l.b16 %v705
        %v1616 = vunpack.c.l.b16 %v706
        %v1617 = vunpack.c.l.b16 %v707
        %v1618 = vunpack.c.l.b16 %v708
        %v1619 = vunpack.c.l.b16 %v709
        %v1620 = vunpack.c.l.b16 %v710
        %v1621 = vunpack.c.l.b16 %v711
        %v1622 = vunpack.c.l.b16 %v712
        %v1623 = vunpack.c.l.b16 %v713
        %v1624 = vunpack.c.l.b16 %v714
        %v1625 = vunpack.c.l.b16 %v715
        %v1626 = vunpack.c.l.b16 %v716
        %v1627 = vunpack.c.l.b16 %v717
        %v1628 = vunpack.c.l.b16 %v718
        %v1629 = vunpack.c.l.b16 %v719
        %v1630 = vunpack.c.l.b16 %v720
        %v1631 = vunpack.c.l.b16 %v721
        %v1632 = vunpack.c.l.b16 %v722
        %v1633 = vpack.c.b16 %v1602, %v1601
        %v1634 = vpack.c.b16 %v1604, %v1603
        %v1635 = vpack.c.b16 %v1606, %v1605
        %v1636 = vpack.c.b16 %v1608, %v1607
        %v1637 = vpack.c.b16 %v1610, %v1609
        %v1638 = vpack.c.b16 %v1612, %v1611
        %v1639 = vpack.c.b16 %v1614, %v1613
        %v1640 = vpack.c.b16 %v1616, %v1615
        %v1641 = vpack.c.b16 %v1618, %v1617
        %v1642 = vpack.c.b16 %v1620, %v1619
        %v1643 = vpack.c.b16 %v1622, %v1621
        %v1644 = vpack.c.b16 %v1624, %v1623
        %v1645 = vpack.c.b16 %v1626, %v1625
        %v1646 = vpack.c.b16 %v1628, %v1627
        %v1647 = vpack.c.b16 %v1630, %v1629
        %v1648 = vpack.c.b16 %v1632, %v1631
        %1665 = vmatprep.subr.bf16.mxu0 0
        %1666 = vmatpush1.bf16.msra.mxu0 %v1640
        %1667 = vmatprep.subr.bf16.mxu0 0
        %1668 = vmatpush1.bf16.msra.mxu0 %v1639
        %1669 = vmatprep.subr.bf16.mxu0 0
        %1670 = vmatpush1.bf16.msra.mxu0 %v1638
        %1671 = vmatprep.subr.bf16.mxu0 0
        %1672 = vmatpush1.bf16.msra.mxu0 %v1637
        %1673 = vmatprep.subr.bf16.mxu0 0
        %1674 = vmatpush1.bf16.msra.mxu0 %v1636
        %1675 = vmatprep.subr.bf16.mxu0 0
        %1676 = vmatpush1.bf16.msra.mxu0 %v1635
        %1677 = vmatprep.subr.bf16.mxu0 0
        %1678 = vmatpush1.bf16.msra.mxu0 %v1634
        %1679 = vmatprep.subr.bf16.mxu0 0
        %1680 = vmatpush1.bf16.msra.mxu0 %v1633
        %1681 = vmatprep.subr.bf16.mxu0 0
        %1682 = vmatpush2.bf16.msra.mxu0 %v1648
        %1683 = vmatprep.subr.bf16.mxu0 0
        %1684 = vmatpush2.bf16.msra.mxu0 %v1647
        %1685 = vmatprep.subr.bf16.mxu0 0
        %1686 = vmatpush2.bf16.msra.mxu0 %v1646
        %1687 = vmatprep.subr.bf16.mxu0 0
        %1688 = vmatpush2.bf16.msra.mxu0 %v1645
        %1689 = vmatprep.subr.bf16.mxu0 0
        %1690 = vmatpush2.bf16.msra.mxu0 %v1644
        %1691 = vmatprep.subr.bf16.mxu0 0
        %1692 = vmatpush2.bf16.msra.mxu0 %v1643
        %1693 = vmatprep.subr.bf16.mxu0 0
        %1694 = vmatpush2.bf16.msra.mxu0 %v1642
        %1695 = vmatprep.subr.bf16.mxu0 0
        %1696 = vmatpush2.bf16.msra.mxu0 %v1641
        %1697 = vmatprep.mubr.bf16.mxu0 %v1024
        %1698 = vmatmul.mubr.bf16.gmra.mxu0 %v1023
        %v1699 = vpop.f32.mrf.mxu0
        %v1700 = vadd.f32 0.0, %v1699
        %v1701 = vpop.f32.mrf.mxu0
        %v1702 = vpop.f32.mrf.mxu0
        %v1703 = vpop.f32.mrf.mxu0
        %1704 = vdwg.mxu0
        %v1737 = vunpack.c.l.b16 %v723
        %v1738 = vunpack.c.l.b16 %v724
        %v1739 = vunpack.c.l.b16 %v725
        %v1740 = vunpack.c.l.b16 %v726
        %v1741 = vunpack.c.l.b16 %v727
        %v1742 = vunpack.c.l.b16 %v728
        %v1743 = vunpack.c.l.b16 %v729
        %v1744 = vunpack.c.l.b16 %v730
        %v1745 = vunpack.c.l.b16 %v731
        %v1746 = vunpack.c.l.b16 %v732
        %v1747 = vunpack.c.l.b16 %v733
        %v1748 = vunpack.c.l.b16 %v734
        %v1749 = vunpack.c.l.b16 %v735
        %v1750 = vunpack.c.l.b16 %v736
        %v1751 = vunpack.c.l.b16 %v737
        %v1752 = vunpack.c.l.b16 %v738
        %v1753 = vunpack.c.l.b16 %v739
        %v1754 = vunpack.c.l.b16 %v740
        %v1755 = vunpack.c.l.b16 %v741
        %v1756 = vunpack.c.l.b16 %v742
        %v1757 = vunpack.c.l.b16 %v743
        %v1758 = vunpack.c.l.b16 %v744
        %v1759 = vunpack.c.l.b16 %v745
        %v1760 = vunpack.c.l.b16 %v746
        %v1761 = vunpack.c.l.b16 %v747
        %v1762 = vunpack.c.l.b16 %v748
        %v1763 = vunpack.c.l.b16 %v749
        %v1764 = vunpack.c.l.b16 %v750
        %v1765 = vunpack.c.l.b16 %v751
        %v1766 = vunpack.c.l.b16 %v752
        %v1767 = vunpack.c.l.b16 %v753
        %v1768 = vunpack.c.l.b16 %v754
        %v1769 = vpack.c.b16 %v1738, %v1737
        %v1770 = vpack.c.b16 %v1740, %v1739
        %v1771 = vpack.c.b16 %v1742, %v1741
        %v1772 = vpack.c.b16 %v1744, %v1743
        %v1773 = vpack.c.b16 %v1746, %v1745
        %v1774 = vpack.c.b16 %v1748, %v1747
        %v1775 = vpack.c.b16 %v1750, %v1749
        %v1776 = vpack.c.b16 %v1752, %v1751
        %v1777 = vpack.c.b16 %v1754, %v1753
        %v1778 = vpack.c.b16 %v1756, %v1755
        %v1779 = vpack.c.b16 %v1758, %v1757
        %v1780 = vpack.c.b16 %v1760, %v1759
        %v1781 = vpack.c.b16 %v1762, %v1761
        %v1782 = vpack.c.b16 %v1764, %v1763
        %v1783 = vpack.c.b16 %v1766, %v1765
        %v1784 = vpack.c.b16 %v1768, %v1767
        %1801 = vmatprep.subr.bf16.mxu0 0
        %1802 = vmatpush1.bf16.msra.mxu0 %v1776
        %1803 = vmatprep.subr.bf16.mxu0 0
        %1804 = vmatpush1.bf16.msra.mxu0 %v1775
        %1805 = vmatprep.subr.bf16.mxu0 0
        %1806 = vmatpush1.bf16.msra.mxu0 %v1774
        %1807 = vmatprep.subr.bf16.mxu0 0
        %1808 = vmatpush1.bf16.msra.mxu0 %v1773
        %1809 = vmatprep.subr.bf16.mxu0 0
        %1810 = vmatpush1.bf16.msra.mxu0 %v1772
        %1811 = vmatprep.subr.bf16.mxu0 0
        %1812 = vmatpush1.bf16.msra.mxu0 %v1771
        %1813 = vmatprep.subr.bf16.mxu0 0
        %1814 = vmatpush1.bf16.msra.mxu0 %v1770
        %1815 = vmatprep.subr.bf16.mxu0 0
        %1816 = vmatpush1.bf16.msra.mxu0 %v1769
        %1817 = vmatprep.subr.bf16.mxu0 0
        %1818 = vmatpush2.bf16.msra.mxu0 %v1784
        %1819 = vmatprep.subr.bf16.mxu0 0
        %1820 = vmatpush2.bf16.msra.mxu0 %v1783
        %1821 = vmatprep.subr.bf16.mxu0 0
        %1822 = vmatpush2.bf16.msra.mxu0 %v1782
        %1823 = vmatprep.subr.bf16.mxu0 0
        %1824 = vmatpush2.bf16.msra.mxu0 %v1781
        %1825 = vmatprep.subr.bf16.mxu0 0
        %1826 = vmatpush2.bf16.msra.mxu0 %v1780
        %1827 = vmatprep.subr.bf16.mxu0 0
        %1828 = vmatpush2.bf16.msra.mxu0 %v1779
        %1829 = vmatprep.subr.bf16.mxu0 0
        %1830 = vmatpush2.bf16.msra.mxu0 %v1778
        %1831 = vmatprep.subr.bf16.mxu0 0
        %1832 = vmatpush2.bf16.msra.mxu0 %v1777
        %1833 = vmatprep.mubr.bf16.mxu0 %v1024
        %1834 = vmatmul.mubr.bf16.gmra.mxu0 %v1023
        %v1835 = vpop.f32.mrf.mxu0
        %v1836 = vadd.f32 0.0, %v1835
        %v1837 = vpop.f32.mrf.mxu0
        %v1838 = vpop.f32.mrf.mxu0
        %v1839 = vpop.f32.mrf.mxu0
        %1840 = vdwg.mxu0
        %v1873 = vunpack.c.l.b16 %v755
        %v1874 = vunpack.c.l.b16 %v756
        %v1875 = vunpack.c.l.b16 %v757
        %v1876 = vunpack.c.l.b16 %v758
        %v1877 = vunpack.c.l.b16 %v759
        %v1878 = vunpack.c.l.b16 %v760
        %v1879 = vunpack.c.l.b16 %v761
        %v1880 = vunpack.c.l.b16 %v762
        %v1881 = vunpack.c.l.b16 %v763
        %v1882 = vunpack.c.l.b16 %v764
        %v1883 = vunpack.c.l.b16 %v765
        %v1884 = vunpack.c.l.b16 %v766
        %v1885 = vunpack.c.l.b16 %v767
        %v1886 = vunpack.c.l.b16 %v768
        %v1887 = vunpack.c.l.b16 %v769
        %v1888 = vunpack.c.l.b16 %v770
        %v1889 = vunpack.c.l.b16 %v771
        %v1890 = vunpack.c.l.b16 %v772
        %v1891 = vunpack.c.l.b16 %v773
        %v1892 = vunpack.c.l.b16 %v774
        %v1893 = vunpack.c.l.b16 %v775
        %v1894 = vunpack.c.l.b16 %v776
        %v1895 = vunpack.c.l.b16 %v777
        %v1896 = vunpack.c.l.b16 %v778
        %v1897 = vunpack.c.l.b16 %v779
        %v1898 = vunpack.c.l.b16 %v780
        %v1899 = vunpack.c.l.b16 %v781
        %v1900 = vunpack.c.l.b16 %v782
        %v1901 = vunpack.c.l.b16 %v783
        %v1902 = vunpack.c.l.b16 %v784
        %v1903 = vunpack.c.l.b16 %v785
        %v1904 = vunpack.c.l.b16 %v786
        %v1905 = vpack.c.b16 %v1874, %v1873
        %v1906 = vpack.c.b16 %v1876, %v1875
        %v1907 = vpack.c.b16 %v1878, %v1877
        %v1908 = vpack.c.b16 %v1880, %v1879
        %v1909 = vpack.c.b16 %v1882, %v1881
        %v1910 = vpack.c.b16 %v1884, %v1883
        %v1911 = vpack.c.b16 %v1886, %v1885
        %v1912 = vpack.c.b16 %v1888, %v1887
        %v1913 = vpack.c.b16 %v1890, %v1889
        %v1914 = vpack.c.b16 %v1892, %v1891
        %v1915 = vpack.c.b16 %v1894, %v1893
        %v1916 = vpack.c.b16 %v1896, %v1895
        %v1917 = vpack.c.b16 %v1898, %v1897
        %v1918 = vpack.c.b16 %v1900, %v1899
        %v1919 = vpack.c.b16 %v1902, %v1901
        %v1920 = vpack.c.b16 %v1904, %v1903
        %1937 = vmatprep.subr.bf16.mxu0 0
        %1938 = vmatpush1.bf16.msra.mxu0 %v1912
        %1939 = vmatprep.subr.bf16.mxu0 0
        %1940 = vmatpush1.bf16.msra.mxu0 %v1911
        %1941 = vmatprep.subr.bf16.mxu0 0
        %1942 = vmatpush1.bf16.msra.mxu0 %v1910
        %1943 = vmatprep.subr.bf16.mxu0 0
        %1944 = vmatpush1.bf16.msra.mxu0 %v1909
        %1945 = vmatprep.subr.bf16.mxu0 0
        %1946 = vmatpush1.bf16.msra.mxu0 %v1908
        %1947 = vmatprep.subr.bf16.mxu0 0
        %1948 = vmatpush1.bf16.msra.mxu0 %v1907
        %1949 = vmatprep.subr.bf16.mxu0 0
        %1950 = vmatpush1.bf16.msra.mxu0 %v1906
        %1951 = vmatprep.subr.bf16.mxu0 0
        %1952 = vmatpush1.bf16.msra.mxu0 %v1905
        %1953 = vmatprep.subr.bf16.mxu0 0
        %1954 = vmatpush2.bf16.msra.mxu0 %v1920
        %1955 = vmatprep.subr.bf16.mxu0 0
        %1956 = vmatpush2.bf16.msra.mxu0 %v1919
        %1957 = vmatprep.subr.bf16.mxu0 0
        %1958 = vmatpush2.bf16.msra.mxu0 %v1918
        %1959 = vmatprep.subr.bf16.mxu0 0
        %1960 = vmatpush2.bf16.msra.mxu0 %v1917
        %1961 = vmatprep.subr.bf16.mxu0 0
        %1962 = vmatpush2.bf16.msra.mxu0 %v1916
        %1963 = vmatprep.subr.bf16.mxu0 0
        %1964 = vmatpush2.bf16.msra.mxu0 %v1915
        %1965 = vmatprep.subr.bf16.mxu0 0
        %1966 = vmatpush2.bf16.msra.mxu0 %v1914
        %1967 = vmatprep.subr.bf16.mxu0 0
        %1968 = vmatpush2.bf16.msra.mxu0 %v1913
        %1969 = vmatprep.mubr.bf16.mxu0 %v1024
        %1970 = vmatmul.mubr.bf16.gmra.mxu0 %v1023
        %v1971 = vpop.f32.mrf.mxu0
        %v1972 = vadd.f32 0.0, %v1971
        %v1973 = vpop.f32.mrf.mxu0
        %v1974 = vpop.f32.mrf.mxu0
        %v1975 = vpop.f32.mrf.mxu0
        %1976 = vdwg.mxu0
        %v2009 = vunpack.c.l.b16 %v787
        %v2010 = vunpack.c.l.b16 %v788
        %v2011 = vunpack.c.l.b16 %v789
        %v2012 = vunpack.c.l.b16 %v790
        %v2013 = vunpack.c.l.b16 %v791
        %v2014 = vunpack.c.l.b16 %v792
        %v2015 = vunpack.c.l.b16 %v793
        %v2016 = vunpack.c.l.b16 %v794
        %v2017 = vunpack.c.l.b16 %v795
        %v2018 = vunpack.c.l.b16 %v796
        %v2019 = vunpack.c.l.b16 %v797
        %v2020 = vunpack.c.l.b16 %v798
        %v2021 = vunpack.c.l.b16 %v799
        %v2022 = vunpack.c.l.b16 %v800
        %v2023 = vunpack.c.l.b16 %v801
        %v2024 = vunpack.c.l.b16 %v802
        %v2025 = vunpack.c.l.b16 %v803
        %v2026 = vunpack.c.l.b16 %v804
        %v2027 = vunpack.c.l.b16 %v805
        %v2028 = vunpack.c.l.b16 %v806
        %v2029 = vunpack.c.l.b16 %v807
        %v2030 = vunpack.c.l.b16 %v808
        %v2031 = vunpack.c.l.b16 %v809
        %v2032 = vunpack.c.l.b16 %v810
        %v2033 = vunpack.c.l.b16 %v811
        %v2034 = vunpack.c.l.b16 %v812
        %v2035 = vunpack.c.l.b16 %v813
        %v2036 = vunpack.c.l.b16 %v814
        %v2037 = vunpack.c.l.b16 %v815
        %v2038 = vunpack.c.l.b16 %v816
        %v2039 = vunpack.c.l.b16 %v817
        %v2040 = vunpack.c.l.b16 %v818
        %v2041 = vpack.c.b16 %v2010, %v2009
        %v2042 = vpack.c.b16 %v2012, %v2011
        %v2043 = vpack.c.b16 %v2014, %v2013
        %v2044 = vpack.c.b16 %v2016, %v2015
        %v2045 = vpack.c.b16 %v2018, %v2017
        %v2046 = vpack.c.b16 %v2020, %v2019
        %v2047 = vpack.c.b16 %v2022, %v2021
        %v2048 = vpack.c.b16 %v2024, %v2023
        %v2049 = vpack.c.b16 %v2026, %v2025
        %v2050 = vpack.c.b16 %v2028, %v2027
        %v2051 = vpack.c.b16 %v2030, %v2029
        %v2052 = vpack.c.b16 %v2032, %v2031
        %v2053 = vpack.c.b16 %v2034, %v2033
        %v2054 = vpack.c.b16 %v2036, %v2035
        %v2055 = vpack.c.b16 %v2038, %v2037
        %v2056 = vpack.c.b16 %v2040, %v2039
        %2073 = vmatprep.subr.bf16.mxu0 0
        %2074 = vmatpush1.bf16.msra.mxu0 %v2048
        %2075 = vmatprep.subr.bf16.mxu0 0
        %2076 = vmatpush1.bf16.msra.mxu0 %v2047
        %2077 = vmatprep.subr.bf16.mxu0 0
        %2078 = vmatpush1.bf16.msra.mxu0 %v2046
        %2079 = vmatprep.subr.bf16.mxu0 0
        %2080 = vmatpush1.bf16.msra.mxu0 %v2045
        %2081 = vmatprep.subr.bf16.mxu0 0
        %2082 = vmatpush1.bf16.msra.mxu0 %v2044
        %2083 = vmatprep.subr.bf16.mxu0 0
        %2084 = vmatpush1.bf16.msra.mxu0 %v2043
        %2085 = vmatprep.subr.bf16.mxu0 0
        %2086 = vmatpush1.bf16.msra.mxu0 %v2042
        %2087 = vmatprep.subr.bf16.mxu0 0
        %2088 = vmatpush1.bf16.msra.mxu0 %v2041
        %2089 = vmatprep.subr.bf16.mxu0 0
        %2090 = vmatpush2.bf16.msra.mxu0 %v2056
        %2091 = vmatprep.subr.bf16.mxu0 0
        %2092 = vmatpush2.bf16.msra.mxu0 %v2055
        %2093 = vmatprep.subr.bf16.mxu0 0
        %2094 = vmatpush2.bf16.msra.mxu0 %v2054
        %2095 = vmatprep.subr.bf16.mxu0 0
        %2096 = vmatpush2.bf16.msra.mxu0 %v2053
        %2097 = vmatprep.subr.bf16.mxu0 0
        %2098 = vmatpush2.bf16.msra.mxu0 %v2052
        %2099 = vmatprep.subr.bf16.mxu0 0
        %2100 = vmatpush2.bf16.msra.mxu0 %v2051
        %2101 = vmatprep.subr.bf16.mxu0 0
        %2102 = vmatpush2.bf16.msra.mxu0 %v2050
        %2103 = vmatprep.subr.bf16.mxu0 0
        %2104 = vmatpush2.bf16.msra.mxu0 %v2049
        %2105 = vmatprep.mubr.bf16.mxu0 %v1024
        %2106 = vmatmul.mubr.bf16.gmra.mxu0 %v1023
        %v2107 = vpop.f32.mrf.mxu0
        %v2108 = vadd.f32 0.0, %v2107
        %v2109 = vpop.f32.mrf.mxu0
        %v2110 = vpop.f32.mrf.mxu0
        %v2111 = vpop.f32.mrf.mxu0
        %2112 = vdwg.mxu0
        %v2145 = vunpack.c.l.b16 %v819
        %v2146 = vunpack.c.l.b16 %v820
        %v2147 = vunpack.c.l.b16 %v821
        %v2148 = vunpack.c.l.b16 %v822
        %v2149 = vunpack.c.l.b16 %v823
        %v2150 = vunpack.c.l.b16 %v824
        %v2151 = vunpack.c.l.b16 %v825
        %v2152 = vunpack.c.l.b16 %v826
        %v2153 = vunpack.c.l.b16 %v827
        %v2154 = vunpack.c.l.b16 %v828
        %v2155 = vunpack.c.l.b16 %v829
        %v2156 = vunpack.c.l.b16 %v830
        %v2157 = vunpack.c.l.b16 %v831
        %v2158 = vunpack.c.l.b16 %v832
        %v2159 = vunpack.c.l.b16 %v833
        %v2160 = vunpack.c.l.b16 %v834
        %v2161 = vunpack.c.l.b16 %v835
        %v2162 = vunpack.c.l.b16 %v836
        %v2163 = vunpack.c.l.b16 %v837
        %v2164 = vunpack.c.l.b16 %v838
        %v2165 = vunpack.c.l.b16 %v839
        %v2166 = vunpack.c.l.b16 %v840
        %v2167 = vunpack.c.l.b16 %v841
        %v2168 = vunpack.c.l.b16 %v842
        %v2169 = vunpack.c.l.b16 %v843
        %v2170 = vunpack.c.l.b16 %v844
        %v2171 = vunpack.c.l.b16 %v845
        %v2172 = vunpack.c.l.b16 %v846
        %v2173 = vunpack.c.l.b16 %v847
        %v2174 = vunpack.c.l.b16 %v848
        %v2175 = vunpack.c.l.b16 %v849
        %v2176 = vunpack.c.l.b16 %v850
        %v2177 = vpack.c.b16 %v2146, %v2145
        %v2178 = vpack.c.b16 %v2148, %v2147
        %v2179 = vpack.c.b16 %v2150, %v2149
        %v2180 = vpack.c.b16 %v2152, %v2151
        %v2181 = vpack.c.b16 %v2154, %v2153
        %v2182 = vpack.c.b16 %v2156, %v2155
        %v2183 = vpack.c.b16 %v2158, %v2157
        %v2184 = vpack.c.b16 %v2160, %v2159
        %v2185 = vpack.c.b16 %v2162, %v2161
        %v2186 = vpack.c.b16 %v2164, %v2163
        %v2187 = vpack.c.b16 %v2166, %v2165
        %v2188 = vpack.c.b16 %v2168, %v2167
        %v2189 = vpack.c.b16 %v2170, %v2169
        %v2190 = vpack.c.b16 %v2172, %v2171
        %v2191 = vpack.c.b16 %v2174, %v2173
        %v2192 = vpack.c.b16 %v2176, %v2175
        %2209 = vmatprep.subr.bf16.mxu0 0
        %2210 = vmatpush1.bf16.msra.mxu0 %v2184
        %2211 = vmatprep.subr.bf16.mxu0 0
        %2212 = vmatpush1.bf16.msra.mxu0 %v2183
        %2213 = vmatprep.subr.bf16.mxu0 0
        %2214 = vmatpush1.bf16.msra.mxu0 %v2182
        %2215 = vmatprep.subr.bf16.mxu0 0
        %2216 = vmatpush1.bf16.msra.mxu0 %v2181
        %2217 = vmatprep.subr.bf16.mxu0 0
        %2218 = vmatpush1.bf16.msra.mxu0 %v2180
        %2219 = vmatprep.subr.bf16.mxu0 0
        %2220 = vmatpush1.bf16.msra.mxu0 %v2179
        %2221 = vmatprep.subr.bf16.mxu0 0
        %2222 = vmatpush1.bf16.msra.mxu0 %v2178
        %2223 = vmatprep.subr.bf16.mxu0 0
        %2224 = vmatpush1.bf16.msra.mxu0 %v2177
        %2225 = vmatprep.subr.bf16.mxu0 0
        %2226 = vmatpush2.bf16.msra.mxu0 %v2192
        %2227 = vmatprep.subr.bf16.mxu0 0
        %2228 = vmatpush2.bf16.msra.mxu0 %v2191
        %2229 = vmatprep.subr.bf16.mxu0 0
        %2230 = vmatpush2.bf16.msra.mxu0 %v2190
        %2231 = vmatprep.subr.bf16.mxu0 0
        %2232 = vmatpush2.bf16.msra.mxu0 %v2189
        %2233 = vmatprep.subr.bf16.mxu0 0
        %2234 = vmatpush2.bf16.msra.mxu0 %v2188
        %2235 = vmatprep.subr.bf16.mxu0 0
        %2236 = vmatpush2.bf16.msra.mxu0 %v2187
        %2237 = vmatprep.subr.bf16.mxu0 0
        %2238 = vmatpush2.bf16.msra.mxu0 %v2186
        %2239 = vmatprep.subr.bf16.mxu0 0
        %2240 = vmatpush2.bf16.msra.mxu0 %v2185
        %2241 = vmatprep.mubr.bf16.mxu0 %v1024
        %2242 = vmatmul.mubr.bf16.gmra.mxu0 %v1023
        %v2243 = vpop.f32.mrf.mxu0
        %v2244 = vadd.f32 0.0, %v2243
        %v2245 = vpop.f32.mrf.mxu0
        %v2246 = vpop.f32.mrf.mxu0
        %v2247 = vpop.f32.mrf.mxu0
        %2248 = vdwg.mxu0
        %v2281 = vunpack.c.l.b16 %v851
        %v2282 = vunpack.c.l.b16 %v852
        %v2283 = vunpack.c.l.b16 %v853
        %v2284 = vunpack.c.l.b16 %v854
        %v2285 = vunpack.c.l.b16 %v855
        %v2286 = vunpack.c.l.b16 %v856
        %v2287 = vunpack.c.l.b16 %v857
        %v2288 = vunpack.c.l.b16 %v858
        %v2289 = vunpack.c.l.b16 %v859
        %v2290 = vunpack.c.l.b16 %v860
        %v2291 = vunpack.c.l.b16 %v861
        %v2292 = vunpack.c.l.b16 %v862
        %v2293 = vunpack.c.l.b16 %v863
        %v2294 = vunpack.c.l.b16 %v864
        %v2295 = vunpack.c.l.b16 %v865
        %v2296 = vunpack.c.l.b16 %v866
        %v2297 = vunpack.c.l.b16 %v867
        %v2298 = vunpack.c.l.b16 %v868
        %v2299 = vunpack.c.l.b16 %v869
        %v2300 = vunpack.c.l.b16 %v870
        %v2301 = vunpack.c.l.b16 %v871
        %v2302 = vunpack.c.l.b16 %v872
        %v2303 = vunpack.c.l.b16 %v873
        %v2304 = vunpack.c.l.b16 %v874
        %v2305 = vunpack.c.l.b16 %v875
        %v2306 = vunpack.c.l.b16 %v876
        %v2307 = vunpack.c.l.b16 %v877
        %v2308 = vunpack.c.l.b16 %v878
        %v2309 = vunpack.c.l.b16 %v879
        %v2310 = vunpack.c.l.b16 %v880
        %v2311 = vunpack.c.l.b16 %v881
        %v2312 = vunpack.c.l.b16 %v882
        %v2313 = vpack.c.b16 %v2282, %v2281
        %v2314 = vpack.c.b16 %v2284, %v2283
        %v2315 = vpack.c.b16 %v2286, %v2285
        %v2316 = vpack.c.b16 %v2288, %v2287
        %v2317 = vpack.c.b16 %v2290, %v2289
        %v2318 = vpack.c.b16 %v2292, %v2291
        %v2319 = vpack.c.b16 %v2294, %v2293
        %v2320 = vpack.c.b16 %v2296, %v2295
        %v2321 = vpack.c.b16 %v2298, %v2297
        %v2322 = vpack.c.b16 %v2300, %v2299
        %v2323 = vpack.c.b16 %v2302, %v2301
        %v2324 = vpack.c.b16 %v2304, %v2303
        %v2325 = vpack.c.b16 %v2306, %v2305
        %v2326 = vpack.c.b16 %v2308, %v2307
        %v2327 = vpack.c.b16 %v2310, %v2309
        %v2328 = vpack.c.b16 %v2312, %v2311
        %2345 = vmatprep.subr.bf16.mxu0 0
        %2346 = vmatpush1.bf16.msra.mxu0 %v2320
        %2347 = vmatprep.subr.bf16.mxu0 0
        %2348 = vmatpush1.bf16.msra.mxu0 %v2319
        %2349 = vmatprep.subr.bf16.mxu0 0
        %2350 = vmatpush1.bf16.msra.mxu0 %v2318
        %2351 = vmatprep.subr.bf16.mxu0 0
        %2352 = vmatpush1.bf16.msra.mxu0 %v2317
        %2353 = vmatprep.subr.bf16.mxu0 0
        %2354 = vmatpush1.bf16.msra.mxu0 %v2316
        %2355 = vmatprep.subr.bf16.mxu0 0
        %2356 = vmatpush1.bf16.msra.mxu0 %v2315
        %2357 = vmatprep.subr.bf16.mxu0 0
        %2358 = vmatpush1.bf16.msra.mxu0 %v2314
        %2359 = vmatprep.subr.bf16.mxu0 0
        %2360 = vmatpush1.bf16.msra.mxu0 %v2313
        %2361 = vmatprep.subr.bf16.mxu0 0
        %2362 = vmatpush2.bf16.msra.mxu0 %v2328
        %2363 = vmatprep.subr.bf16.mxu0 0
        %2364 = vmatpush2.bf16.msra.mxu0 %v2327
        %2365 = vmatprep.subr.bf16.mxu0 0
        %2366 = vmatpush2.bf16.msra.mxu0 %v2326
        %2367 = vmatprep.subr.bf16.mxu0 0
        %2368 = vmatpush2.bf16.msra.mxu0 %v2325
        %2369 = vmatprep.subr.bf16.mxu0 0
        %2370 = vmatpush2.bf16.msra.mxu0 %v2324
        %2371 = vmatprep.subr.bf16.mxu0 0
        %2372 = vmatpush2.bf16.msra.mxu0 %v2323
        %2373 = vmatprep.subr.bf16.mxu0 0
        %2374 = vmatpush2.bf16.msra.mxu0 %v2322
        %2375 = vmatprep.subr.bf16.mxu0 0
        %2376 = vmatpush2.bf16.msra.mxu0 %v2321
        %2377 = vmatprep.mubr.bf16.mxu0 %v1024
        %2378 = vmatmul.mubr.bf16.gmra.mxu0 %v1023
        %v2379 = vpop.f32.mrf.mxu0
        %v2380 = vadd.f32 0.0, %v2379
        %v2381 = vpop.f32.mrf.mxu0
        %v2382 = vpop.f32.mrf.mxu0
        %v2383 = vpop.f32.mrf.mxu0
        %2384 = vdwg.mxu0
        %v2417 = vunpack.c.l.b16 %v883
        %v2418 = vunpack.c.l.b16 %v884
        %v2419 = vunpack.c.l.b16 %v885
        %v2420 = vunpack.c.l.b16 %v886
        %v2421 = vunpack.c.l.b16 %v887
        %v2422 = vunpack.c.l.b16 %v888
        %v2423 = vunpack.c.l.b16 %v889
        %v2424 = vunpack.c.l.b16 %v890
        %v2425 = vunpack.c.l.b16 %v891
        %v2426 = vunpack.c.l.b16 %v892
        %v2427 = vunpack.c.l.b16 %v893
        %v2428 = vunpack.c.l.b16 %v894
        %v2429 = vunpack.c.l.b16 %v895
        %v2430 = vunpack.c.l.b16 %v896
        %v2431 = vunpack.c.l.b16 %v897
        %v2432 = vunpack.c.l.b16 %v898
        %v2433 = vunpack.c.l.b16 %v899
        %v2434 = vunpack.c.l.b16 %v900
        %v2435 = vunpack.c.l.b16 %v901
        %v2436 = vunpack.c.l.b16 %v902
        %v2437 = vunpack.c.l.b16 %v903
        %v2438 = vunpack.c.l.b16 %v904
        %v2439 = vunpack.c.l.b16 %v905
        %v2440 = vunpack.c.l.b16 %v906
        %v2441 = vunpack.c.l.b16 %v907
        %v2442 = vunpack.c.l.b16 %v908
        %v2443 = vunpack.c.l.b16 %v909
        %v2444 = vunpack.c.l.b16 %v910
        %v2445 = vunpack.c.l.b16 %v911
        %v2446 = vunpack.c.l.b16 %v912
        %v2447 = vunpack.c.l.b16 %v913
        %v2448 = vunpack.c.l.b16 %v914
        %v2449 = vpack.c.b16 %v2418, %v2417
        %v2450 = vpack.c.b16 %v2420, %v2419
        %v2451 = vpack.c.b16 %v2422, %v2421
        %v2452 = vpack.c.b16 %v2424, %v2423
        %v2453 = vpack.c.b16 %v2426, %v2425
        %v2454 = vpack.c.b16 %v2428, %v2427
        %v2455 = vpack.c.b16 %v2430, %v2429
        %v2456 = vpack.c.b16 %v2432, %v2431
        %v2457 = vpack.c.b16 %v2434, %v2433
        %v2458 = vpack.c.b16 %v2436, %v2435
        %v2459 = vpack.c.b16 %v2438, %v2437
        %v2460 = vpack.c.b16 %v2440, %v2439
        %v2461 = vpack.c.b16 %v2442, %v2441
        %v2462 = vpack.c.b16 %v2444, %v2443
        %v2463 = vpack.c.b16 %v2446, %v2445
        %v2464 = vpack.c.b16 %v2448, %v2447
        %2481 = vmatprep.subr.bf16.mxu0 0
        %2482 = vmatpush1.bf16.msra.mxu0 %v2456
        %2483 = vmatprep.subr.bf16.mxu0 0
        %2484 = vmatpush1.bf16.msra.mxu0 %v2455
        %2485 = vmatprep.subr.bf16.mxu0 0
        %2486 = vmatpush1.bf16.msra.mxu0 %v2454
        %2487 = vmatprep.subr.bf16.mxu0 0
        %2488 = vmatpush1.bf16.msra.mxu0 %v2453
        %2489 = vmatprep.subr.bf16.mxu0 0
        %2490 = vmatpush1.bf16.msra.mxu0 %v2452
        %2491 = vmatprep.subr.bf16.mxu0 0
        %2492 = vmatpush1.bf16.msra.mxu0 %v2451
        %2493 = vmatprep.subr.bf16.mxu0 0
        %2494 = vmatpush1.bf16.msra.mxu0 %v2450
        %2495 = vmatprep.subr.bf16.mxu0 0
        %2496 = vmatpush1.bf16.msra.mxu0 %v2449
        %2497 = vmatprep.subr.bf16.mxu0 0
        %2498 = vmatpush2.bf16.msra.mxu0 %v2464
        %2499 = vmatprep.subr.bf16.mxu0 0
        %2500 = vmatpush2.bf16.msra.mxu0 %v2463
        %2501 = vmatprep.subr.bf16.mxu0 0
        %2502 = vmatpush2.bf16.msra.mxu0 %v2462
        %2503 = vmatprep.subr.bf16.mxu0 0
        %2504 = vmatpush2.bf16.msra.mxu0 %v2461
        %2505 = vmatprep.subr.bf16.mxu0 0
        %2506 = vmatpush2.bf16.msra.mxu0 %v2460
        %2507 = vmatprep.subr.bf16.mxu0 0
        %2508 = vmatpush2.bf16.msra.mxu0 %v2459
        %2509 = vmatprep.subr.bf16.mxu0 0
        %2510 = vmatpush2.bf16.msra.mxu0 %v2458
        %2511 = vmatprep.subr.bf16.mxu0 0
        %2512 = vmatpush2.bf16.msra.mxu0 %v2457
        %2513 = vmatprep.mubr.bf16.mxu0 %v1024
        %2514 = vmatmul.mubr.bf16.gmra.mxu0 %v1023
        %v2515 = vpop.f32.mrf.mxu0
        %v2516 = vadd.f32 0.0, %v2515
        %v2517 = vpop.f32.mrf.mxu0
        %v2518 = vpop.f32.mrf.mxu0
        %v2519 = vpop.f32.mrf.mxu0
        %2520 = vdwg.mxu0
        %v2553 = vunpack.c.l.b16 %v915
        %v2554 = vunpack.c.l.b16 %v916
        %v2555 = vunpack.c.l.b16 %v917
        %v2556 = vunpack.c.l.b16 %v918
        %v2557 = vunpack.c.l.b16 %v919
        %v2558 = vunpack.c.l.b16 %v920
        %v2559 = vunpack.c.l.b16 %v921
        %v2560 = vunpack.c.l.b16 %v922
        %v2561 = vunpack.c.l.b16 %v923
        %v2562 = vunpack.c.l.b16 %v924
        %v2563 = vunpack.c.l.b16 %v925
        %v2564 = vunpack.c.l.b16 %v926
        %v2565 = vunpack.c.l.b16 %v927
        %v2566 = vunpack.c.l.b16 %v928
        %v2567 = vunpack.c.l.b16 %v929
        %v2568 = vunpack.c.l.b16 %v930
        %v2569 = vunpack.c.l.b16 %v931
        %v2570 = vunpack.c.l.b16 %v932
        %v2571 = vunpack.c.l.b16 %v933
        %v2572 = vunpack.c.l.b16 %v934
        %v2573 = vunpack.c.l.b16 %v935
        %v2574 = vunpack.c.l.b16 %v936
        %v2575 = vunpack.c.l.b16 %v937
        %v2576 = vunpack.c.l.b16 %v938
        %v2577 = vunpack.c.l.b16 %v939
        %v2578 = vunpack.c.l.b16 %v940
        %v2579 = vunpack.c.l.b16 %v941
        %v2580 = vunpack.c.l.b16 %v942
        %v2581 = vunpack.c.l.b16 %v943
        %v2582 = vunpack.c.l.b16 %v944
        %v2583 = vunpack.c.l.b16 %v945
        %v2584 = vunpack.c.l.b16 %v946
        %v2585 = vpack.c.b16 %v2554, %v2553
        %v2586 = vpack.c.b16 %v2556, %v2555
        %v2587 = vpack.c.b16 %v2558, %v2557
        %v2588 = vpack.c.b16 %v2560, %v2559
        %v2589 = vpack.c.b16 %v2562, %v2561
        %v2590 = vpack.c.b16 %v2564, %v2563
        %v2591 = vpack.c.b16 %v2566, %v2565
        %v2592 = vpack.c.b16 %v2568, %v2567
        %v2593 = vpack.c.b16 %v2570, %v2569
        %v2594 = vpack.c.b16 %v2572, %v2571
        %v2595 = vpack.c.b16 %v2574, %v2573
        %v2596 = vpack.c.b16 %v2576, %v2575
        %v2597 = vpack.c.b16 %v2578, %v2577
        %v2598 = vpack.c.b16 %v2580, %v2579
        %v2599 = vpack.c.b16 %v2582, %v2581
        %v2600 = vpack.c.b16 %v2584, %v2583
        %2617 = vmatprep.subr.bf16.mxu0 0
        %2618 = vmatpush1.bf16.msra.mxu0 %v2592
        %2619 = vmatprep.subr.bf16.mxu0 0
        %2620 = vmatpush1.bf16.msra.mxu0 %v2591
        %2621 = vmatprep.subr.bf16.mxu0 0
        %2622 = vmatpush1.bf16.msra.mxu0 %v2590
        %2623 = vmatprep.subr.bf16.mxu0 0
        %2624 = vmatpush1.bf16.msra.mxu0 %v2589
        %2625 = vmatprep.subr.bf16.mxu0 0
        %2626 = vmatpush1.bf16.msra.mxu0 %v2588
        %2627 = vmatprep.subr.bf16.mxu0 0
        %2628 = vmatpush1.bf16.msra.mxu0 %v2587
        %2629 = vmatprep.subr.bf16.mxu0 0
        %2630 = vmatpush1.bf16.msra.mxu0 %v2586
        %2631 = vmatprep.subr.bf16.mxu0 0
        %2632 = vmatpush1.bf16.msra.mxu0 %v2585
        %2633 = vmatprep.subr.bf16.mxu0 0
        %2634 = vmatpush2.bf16.msra.mxu0 %v2600
        %2635 = vmatprep.subr.bf16.mxu0 0
        %2636 = vmatpush2.bf16.msra.mxu0 %v2599
        %2637 = vmatprep.subr.bf16.mxu0 0
        %2638 = vmatpush2.bf16.msra.mxu0 %v2598
        %2639 = vmatprep.subr.bf16.mxu0 0
        %2640 = vmatpush2.bf16.msra.mxu0 %v2597
        %2641 = vmatprep.subr.bf16.mxu0 0
        %2642 = vmatpush2.bf16.msra.mxu0 %v2596
        %2643 = vmatprep.subr.bf16.mxu0 0
        %2644 = vmatpush2.bf16.msra.mxu0 %v2595
        %2645 = vmatprep.subr.bf16.mxu0 0
        %2646 = vmatpush2.bf16.msra.mxu0 %v2594
        %2647 = vmatprep.subr.bf16.mxu0 0
        %2648 = vmatpush2.bf16.msra.mxu0 %v2593
        %2649 = vmatprep.mubr.bf16.mxu0 %v1024
        %2650 = vmatmul.mubr.bf16.gmra.mxu0 %v1023
        %v2651 = vpop.f32.mrf.mxu0
        %v2652 = vadd.f32 0.0, %v2651
        %v2653 = vpop.f32.mrf.mxu0
        %v2654 = vpop.f32.mrf.mxu0
        %v2655 = vpop.f32.mrf.mxu0
        %2656 = vdwg.mxu0
        %v2657 = vpack.c.bf16 %v1156, %v1156
        %v2658 = vpack.c.bf16 %v1292, %v1292
        %v2659 = vpack.c.bf16 %v1428, %v1428
        %v2660 = vpack.c.bf16 %v1564, %v1564
        %v2661 = vpack.c.bf16 %v1700, %v1700
        %v2662 = vpack.c.bf16 %v1836, %v1836
        %v2663 = vpack.c.bf16 %v1972, %v1972
        %v2664 = vpack.c.bf16 %v2108, %v2108
        %vm2665 = vcmask 523264
        %v2667 = vsel %vm2665, %v2657, 0
        %v2670 = vsel %vm2665, %v2661, 0
        %2672 = vmatprep.subr.bf16.mxu0 0
        %2673 = vmatpush1.bf16.xpose.msra.mxu0 0
        %2674 = vmatprep.subr.bf16.mxu0 0
        %2675 = vmatpush1.bf16.xpose.msra.mxu0 0
        %2676 = vmatprep.subr.bf16.mxu0 0
        %2677 = vmatpush1.bf16.xpose.msra.mxu0 0
        %2678 = vmatprep.subr.bf16.mxu0 0
        %2679 = vmatpush1.bf16.xpose.msra.mxu0 0
        %2680 = vmatprep.subr.bf16.mxu0 0
        %2681 = vmatpush1.bf16.xpose.msra.mxu0 0
        %2682 = vmatprep.subr.bf16.mxu0 0
        %2683 = vmatpush1.bf16.xpose.msra.mxu0 0
        %2684 = vmatprep.subr.bf16.mxu0 0
        %2685 = vmatpush1.bf16.xpose.msra.mxu0 0
        %2686 = vmatprep.subr.bf16.mxu0 0
        %2687 = vmatpush1.bf16.xpose.msra.mxu0 %v2670
        %2688 = vmatprep.subr.bf16.mxu0 0
        %2689 = vmatpush2.bf16.xpose.msra.mxu0 0
        %2690 = vmatprep.subr.bf16.mxu0 0
        %2691 = vmatpush2.bf16.xpose.msra.mxu0 0
        %2692 = vmatprep.subr.bf16.mxu0 0
        %2693 = vmatpush2.bf16.xpose.msra.mxu0 0
        %2694 = vmatprep.subr.bf16.mxu0 0
        %2695 = vmatpush2.bf16.xpose.msra.mxu0 0
        %2696 = vmatprep.subr.bf16.mxu0 0
        %2697 = vmatpush2.bf16.xpose.msra.mxu0 0
        %2698 = vmatprep.subr.bf16.mxu0 0
        %2699 = vmatpush2.bf16.xpose.msra.mxu0 0
        %2700 = vmatprep.subr.bf16.mxu0 0
        %2701 = vmatpush2.bf16.xpose.msra.mxu0 0
        %2702 = vmatprep.subr.bf16.mxu0 0
        %2703 = vmatpush2.bf16.xpose.msra.mxu0 0
        %2704 = vmatprep.mubr.bf16.mxu0 0
        %2705 = vmatmul.mubr.bf16.gmra.mxu0 %v2667
        %v2706 = vpop.f32.mrf.mxu0
        %v2707 = vadd.f32 0.0, %v2706
        %v2708 = vpop.f32.mrf.mxu0
        %v2709 = vpop.f32.mrf.mxu0
        %v2710 = vpop.f32.mrf.mxu0
        %2711 = vdwg.mxu0
        %v2713 = vsel %vm2665, %v2658, 0
        %v2716 = vsel %vm2665, %v2662, 0
        %2718 = vmatprep.subr.bf16.mxu0 0
        %2719 = vmatpush1.bf16.xpose.msra.mxu0 0
        %2720 = vmatprep.subr.bf16.mxu0 0
        %2721 = vmatpush1.bf16.xpose.msra.mxu0 0
        %2722 = vmatprep.subr.bf16.mxu0 0
        %2723 = vmatpush1.bf16.xpose.msra.mxu0 0
        %2724 = vmatprep.subr.bf16.mxu0 0
        %2725 = vmatpush1.bf16.xpose.msra.mxu0 0
        %2726 = vmatprep.subr.bf16.mxu0 0
        %2727 = vmatpush1.bf16.xpose.msra.mxu0 0
        %2728 = vmatprep.subr.bf16.mxu0 0
        %2729 = vmatpush1.bf16.xpose.msra.mxu0 0
        %2730 = vmatprep.subr.bf16.mxu0 0
        %2731 = vmatpush1.bf16.xpose.msra.mxu0 0
        %2732 = vmatprep.subr.bf16.mxu0 0
        %2733 = vmatpush1.bf16.xpose.msra.mxu0 %v2716
        %2734 = vmatprep.subr.bf16.mxu0 0
        %2735 = vmatpush2.bf16.xpose.msra.mxu0 0
        %2736 = vmatprep.subr.bf16.mxu0 0
        %2737 = vmatpush2.bf16.xpose.msra.mxu0 0
        %2738 = vmatprep.subr.bf16.mxu0 0
        %2739 = vmatpush2.bf16.xpose.msra.mxu0 0
        %2740 = vmatprep.subr.bf16.mxu0 0
        %2741 = vmatpush2.bf16.xpose.msra.mxu0 0
        %2742 = vmatprep.subr.bf16.mxu0 0
        %2743 = vmatpush2.bf16.xpose.msra.mxu0 0
        %2744 = vmatprep.subr.bf16.mxu0 0
        %2745 = vmatpush2.bf16.xpose.msra.mxu0 0
        %2746 = vmatprep.subr.bf16.mxu0 0
        %2747 = vmatpush2.bf16.xpose.msra.mxu0 0
        %2748 = vmatprep.subr.bf16.mxu0 0
        %2749 = vmatpush2.bf16.xpose.msra.mxu0 0
        %2750 = vmatprep.mubr.bf16.mxu0 0
        %2751 = vmatmul.mubr.bf16.gmra.mxu0 %v2713
        %v2752 = vpop.f32.mrf.mxu0
        %v2753 = vadd.f32 0.0, %v2752
        %v2754 = vpop.f32.mrf.mxu0
        %v2755 = vpop.f32.mrf.mxu0
        %v2756 = vpop.f32.mrf.mxu0
        %2757 = vdwg.mxu0
        %v2759 = vsel %vm2665, %v2659, 0
        %v2762 = vsel %vm2665, %v2663, 0
        %2764 = vmatprep.subr.bf16.mxu0 0
        %2765 = vmatpush1.bf16.xpose.msra.mxu0 0
        %2766 = vmatprep.subr.bf16.mxu0 0
        %2767 = vmatpush1.bf16.xpose.msra.mxu0 0
        %2768 = vmatprep.subr.bf16.mxu0 0
        %2769 = vmatpush1.bf16.xpose.msra.mxu0 0
        %2770 = vmatprep.subr.bf16.mxu0 0
        %2771 = vmatpush1.bf16.xpose.msra.mxu0 0
        %2772 = vmatprep.subr.bf16.mxu0 0
        %2773 = vmatpush1.bf16.xpose.msra.mxu0 0
        %2774 = vmatprep.subr.bf16.mxu0 0
        %2775 = vmatpush1.bf16.xpose.msra.mxu0 0
        %2776 = vmatprep.subr.bf16.mxu0 0
        %2777 = vmatpush1.bf16.xpose.msra.mxu0 0
        %2778 = vmatprep.subr.bf16.mxu0 0
        %2779 = vmatpush1.bf16.xpose.msra.mxu0 %v2762
        %2780 = vmatprep.subr.bf16.mxu0 0
        %2781 = vmatpush2.bf16.xpose.msra.mxu0 0
        %2782 = vmatprep.subr.bf16.mxu0 0
        %2783 = vmatpush2.bf16.xpose.msra.mxu0 0
        %2784 = vmatprep.subr.bf16.mxu0 0
        %2785 = vmatpush2.bf16.xpose.msra.mxu0 0
        %2786 = vmatprep.subr.bf16.mxu0 0
        %2787 = vmatpush2.bf16.xpose.msra.mxu0 0
        %2788 = vmatprep.subr.bf16.mxu0 0
        %2789 = vmatpush2.bf16.xpose.msra.mxu0 0
        %2790 = vmatprep.subr.bf16.mxu0 0
        %2791 = vmatpush2.bf16.xpose.msra.mxu0 0
        %2792 = vmatprep.subr.bf16.mxu0 0
        %2793 = vmatpush2.bf16.xpose.msra.mxu0 0
        %2794 = vmatprep.subr.bf16.mxu0 0
        %2795 = vmatpush2.bf16.xpose.msra.mxu0 0
        %2796 = vmatprep.mubr.bf16.mxu0 0
        %2797 = vmatmul.mubr.bf16.gmra.mxu0 %v2759
        %v2798 = vpop.f32.mrf.mxu0
        %v2799 = vadd.f32 0.0, %v2798
        %v2800 = vpop.f32.mrf.mxu0
        %v2801 = vpop.f32.mrf.mxu0
        %v2802 = vpop.f32.mrf.mxu0
        %2803 = vdwg.mxu0
        %v2805 = vsel %vm2665, %v2660, 0
        %v2808 = vsel %vm2665, %v2664, 0
        %2810 = vmatprep.subr.bf16.mxu0 0
        %2811 = vmatpush1.bf16.xpose.msra.mxu0 0
        %2812 = vmatprep.subr.bf16.mxu0 0
        %2813 = vmatpush1.bf16.xpose.msra.mxu0 0
        %2814 = vmatprep.subr.bf16.mxu0 0
        %2815 = vmatpush1.bf16.xpose.msra.mxu0 0
        %2816 = vmatprep.subr.bf16.mxu0 0
        %2817 = vmatpush1.bf16.xpose.msra.mxu0 0
        %2818 = vmatprep.subr.bf16.mxu0 0
        %2819 = vmatpush1.bf16.xpose.msra.mxu0 0
        %2820 = vmatprep.subr.bf16.mxu0 0
        %2821 = vmatpush1.bf16.xpose.msra.mxu0 0
        %2822 = vmatprep.subr.bf16.mxu0 0
        %2823 = vmatpush1.bf16.xpose.msra.mxu0 0
        %2824 = vmatprep.subr.bf16.mxu0 0
        %2825 = vmatpush1.bf16.xpose.msra.mxu0 %v2808
        %2826 = vmatprep.subr.bf16.mxu0 0
        %2827 = vmatpush2.bf16.xpose.msra.mxu0 0
        %2828 = vmatprep.subr.bf16.mxu0 0
        %2829 = vmatpush2.bf16.xpose.msra.mxu0 0
        %2830 = vmatprep.subr.bf16.mxu0 0
        %2831 = vmatpush2.bf16.xpose.msra.mxu0 0
        %2832 = vmatprep.subr.bf16.mxu0 0
        %2833 = vmatpush2.bf16.xpose.msra.mxu0 0
        %2834 = vmatprep.subr.bf16.mxu0 0
        %2835 = vmatpush2.bf16.xpose.msra.mxu0 0
        %2836 = vmatprep.subr.bf16.mxu0 0
        %2837 = vmatpush2.bf16.xpose.msra.mxu0 0
        %2838 = vmatprep.subr.bf16.mxu0 0
        %2839 = vmatpush2.bf16.xpose.msra.mxu0 0
        %2840 = vmatprep.subr.bf16.mxu0 0
        %2841 = vmatpush2.bf16.xpose.msra.mxu0 0
        %2842 = vmatprep.mubr.bf16.mxu0 0
        %2843 = vmatmul.mubr.bf16.gmra.mxu0 %v2805
        %v2844 = vpop.f32.mrf.mxu0
        %v2845 = vadd.f32 0.0, %v2844
        %v2846 = vpop.f32.mrf.mxu0
        %v2847 = vpop.f32.mrf.mxu0
        %v2848 = vpop.f32.mrf.mxu0
        %2849 = vdwg.mxu0
        %vm2850 = vcmask 64512
        %v2851 = vsel %vm2850, %v2707, -inf
        %2852 = vmax.xlane.f32.xlu0 %v2851
        %v2853 = vpop.xlane.xlu0 %2852
        %v2854 = vsel %vm2850, %v2753, -inf
        %2855 = vmax.xlane.f32.xlu0 %v2854
        %v2856 = vpop.xlane.xlu0 %2855
        %v2857 = vsel %vm2850, %v2799, -inf
        %2858 = vmax.xlane.f32.xlu0 %v2857
        %v2859 = vpop.xlane.xlu0 %2858
        %v2860 = vsel %vm2850, %v2845, -inf
        %2861 = vmax.xlane.f32.xlu0 %v2860
        %v2862 = vpop.xlane.xlu0 %2861
        %v2863 = vsub.f32 %v2707, %v2853
        %v2864 = vsub.f32 %v2753, %v2856
        %v2865 = vsub.f32 %v2799, %v2859
        %v2866 = vsub.f32 %v2845, %v2862
        %v2867 = vmul.f32 %v2863, 1.442695
        %v2868 = vpow.pop %v2867
        %v2869 = vmul.f32 %v2864, 1.442695
        %v2870 = vpow.pop %v2869
        %v2871 = vmul.f32 %v2865, 1.442695
        %v2872 = vpow.pop %v2871
        %v2873 = vmul.f32 %v2866, 1.442695
        %v2874 = vpow.pop %v2873
        %v2875 = vsel %vm2850, %v2868, 0.0
        %2876 = vadd.xlane.f32.xlu0 %v2875
        %v2877 = vpop.xlane.xlu0 %2876
        %v2878 = vsel %vm2850, %v2870, 0.0
        %2879 = vadd.xlane.f32.xlu0 %v2878
        %v2880 = vpop.xlane.xlu0 %2879
        %v2881 = vsel %vm2850, %v2872, 0.0
        %2882 = vadd.xlane.f32.xlu0 %v2881
        %v2883 = vpop.xlane.xlu0 %2882
        %v2884 = vsel %vm2850, %v2874, 0.0
        %2885 = vadd.xlane.f32.xlu0 %v2884
        %v2886 = vpop.xlane.xlu0 %2885
        %v2887 = vrcp.pop %v2877
        %v2888 = vrcp.pop %v2880
        %v2889 = vrcp.pop %v2883
        %v2890 = vrcp.pop %v2886
        %v2891 = vmul.f32 %v2868, %v2887
        %v2892 = vmul.f32 %v2870, %v2888
        %v2893 = vmul.f32 %v2872, %v2889
        %v2894 = vmul.f32 %v2874, %v2890
        %v2895 = vpack.c.bf16 %v2891, %v2891
        %v2896 = vpack.c.bf16 %v2892, %v2892
        %v2897 = vpack.c.bf16 %v2893, %v2893
        %v2898 = vpack.c.bf16 %v2894, %v2894
        %v2899 = vpack.c.bf16 %v2244, %v2244
        %v2900 = vpack.c.bf16 %v2380, %v2380
        %v2901 = vpack.c.bf16 %v2516, %v2516
        %v2902 = vpack.c.bf16 %v2652, %v2652
        %v2904 = vsel %vm2850, %v2895, 0
        %vm2906 = vcmask 1043456
        %v2908 = vsel %vm2906, %v2899, 0
        %2910 = vmatprep.subr.bf16.mxu0 0
        %2911 = vmatpush1.bf16.msra.mxu0 0
        %2912 = vmatprep.subr.bf16.mxu0 0
        %2913 = vmatpush1.bf16.msra.mxu0 0
        %2914 = vmatprep.subr.bf16.mxu0 0
        %2915 = vmatpush1.bf16.msra.mxu0 0
        %2916 = vmatprep.subr.bf16.mxu0 0
        %2917 = vmatpush1.bf16.msra.mxu0 0
        %2918 = vmatprep.subr.bf16.mxu0 0
        %2919 = vmatpush1.bf16.msra.mxu0 0
        %2920 = vmatprep.subr.bf16.mxu0 0
        %2921 = vmatpush1.bf16.msra.mxu0 0
        %2922 = vmatprep.subr.bf16.mxu0 0
        %2923 = vmatpush1.bf16.msra.mxu0 0
        %2924 = vmatprep.subr.bf16.mxu0 0
        %2925 = vmatpush1.bf16.msra.mxu0 %v2908
        %2926 = vmatprep.subr.bf16.mxu0 0
        %2927 = vmatpush2.bf16.msra.mxu0 0
        %2928 = vmatprep.subr.bf16.mxu0 0
        %2929 = vmatpush2.bf16.msra.mxu0 0
        %2930 = vmatprep.subr.bf16.mxu0 0
        %2931 = vmatpush2.bf16.msra.mxu0 0
        %2932 = vmatprep.subr.bf16.mxu0 0
        %2933 = vmatpush2.bf16.msra.mxu0 0
        %2934 = vmatprep.subr.bf16.mxu0 0
        %2935 = vmatpush2.bf16.msra.mxu0 0
        %2936 = vmatprep.subr.bf16.mxu0 0
        %2937 = vmatpush2.bf16.msra.mxu0 0
        %2938 = vmatprep.subr.bf16.mxu0 0
        %2939 = vmatpush2.bf16.msra.mxu0 0
        %2940 = vmatprep.subr.bf16.mxu0 0
        %2941 = vmatpush2.bf16.msra.mxu0 0
        %2942 = vmatprep.mubr.bf16.mxu0 0
        %2943 = vmatmul.mubr.bf16.gmra.mxu0 %v2904
        %v2944 = vpop.f32.mrf.mxu0
        %v2945 = vadd.f32 0.0, %v2944
        %v2946 = vpop.f32.mrf.mxu0
        %v2947 = vpop.f32.mrf.mxu0
        %v2948 = vpop.f32.mrf.mxu0
        %2949 = vdwg.mxu0
        %v2951 = vsel %vm2850, %v2896, 0
        %v2954 = vsel %vm2906, %v2900, 0
        %2956 = vmatprep.subr.bf16.mxu0 0
        %2957 = vmatpush1.bf16.msra.mxu0 0
        %2958 = vmatprep.subr.bf16.mxu0 0
        %2959 = vmatpush1.bf16.msra.mxu0 0
        %2960 = vmatprep.subr.bf16.mxu0 0
        %2961 = vmatpush1.bf16.msra.mxu0 0
        %2962 = vmatprep.subr.bf16.mxu0 0
        %2963 = vmatpush1.bf16.msra.mxu0 0
        %2964 = vmatprep.subr.bf16.mxu0 0
        %2965 = vmatpush1.bf16.msra.mxu0 0
        %2966 = vmatprep.subr.bf16.mxu0 0
        %2967 = vmatpush1.bf16.msra.mxu0 0
        %2968 = vmatprep.subr.bf16.mxu0 0
        %2969 = vmatpush1.bf16.msra.mxu0 0
        %2970 = vmatprep.subr.bf16.mxu0 0
        %2971 = vmatpush1.bf16.msra.mxu0 %v2954
        %2972 = vmatprep.subr.bf16.mxu0 0
        %2973 = vmatpush2.bf16.msra.mxu0 0
        %2974 = vmatprep.subr.bf16.mxu0 0
        %2975 = vmatpush2.bf16.msra.mxu0 0
        %2976 = vmatprep.subr.bf16.mxu0 0
        %2977 = vmatpush2.bf16.msra.mxu0 0
        %2978 = vmatprep.subr.bf16.mxu0 0
        %2979 = vmatpush2.bf16.msra.mxu0 0
        %2980 = vmatprep.subr.bf16.mxu0 0
        %2981 = vmatpush2.bf16.msra.mxu0 0
        %2982 = vmatprep.subr.bf16.mxu0 0
        %2983 = vmatpush2.bf16.msra.mxu0 0
        %2984 = vmatprep.subr.bf16.mxu0 0
        %2985 = vmatpush2.bf16.msra.mxu0 0
        %2986 = vmatprep.subr.bf16.mxu0 0
        %2987 = vmatpush2.bf16.msra.mxu0 0
        %2988 = vmatprep.mubr.bf16.mxu0 0
        %2989 = vmatmul.mubr.bf16.gmra.mxu0 %v2951
        %v2990 = vpop.f32.mrf.mxu0
        %v2991 = vadd.f32 0.0, %v2990
        %v2992 = vpop.f32.mrf.mxu0
        %v2993 = vpop.f32.mrf.mxu0
        %v2994 = vpop.f32.mrf.mxu0
        %2995 = vdwg.mxu0
        %v2997 = vsel %vm2850, %v2897, 0
        %v3000 = vsel %vm2906, %v2901, 0
        %3002 = vmatprep.subr.bf16.mxu0 0
        %3003 = vmatpush1.bf16.msra.mxu0 0
        %3004 = vmatprep.subr.bf16.mxu0 0
        %3005 = vmatpush1.bf16.msra.mxu0 0
        %3006 = vmatprep.subr.bf16.mxu0 0
        %3007 = vmatpush1.bf16.msra.mxu0 0
        %3008 = vmatprep.subr.bf16.mxu0 0
        %3009 = vmatpush1.bf16.msra.mxu0 0
        %3010 = vmatprep.subr.bf16.mxu0 0
        %3011 = vmatpush1.bf16.msra.mxu0 0
        %3012 = vmatprep.subr.bf16.mxu0 0
        %3013 = vmatpush1.bf16.msra.mxu0 0
        %3014 = vmatprep.subr.bf16.mxu0 0
        %3015 = vmatpush1.bf16.msra.mxu0 0
        %3016 = vmatprep.subr.bf16.mxu0 0
        %3017 = vmatpush1.bf16.msra.mxu0 %v3000
        %3018 = vmatprep.subr.bf16.mxu0 0
        %3019 = vmatpush2.bf16.msra.mxu0 0
        %3020 = vmatprep.subr.bf16.mxu0 0
        %3021 = vmatpush2.bf16.msra.mxu0 0
        %3022 = vmatprep.subr.bf16.mxu0 0
        %3023 = vmatpush2.bf16.msra.mxu0 0
        %3024 = vmatprep.subr.bf16.mxu0 0
        %3025 = vmatpush2.bf16.msra.mxu0 0
        %3026 = vmatprep.subr.bf16.mxu0 0
        %3027 = vmatpush2.bf16.msra.mxu0 0
        %3028 = vmatprep.subr.bf16.mxu0 0
        %3029 = vmatpush2.bf16.msra.mxu0 0
        %3030 = vmatprep.subr.bf16.mxu0 0
        %3031 = vmatpush2.bf16.msra.mxu0 0
        %3032 = vmatprep.subr.bf16.mxu0 0
        %3033 = vmatpush2.bf16.msra.mxu0 0
        %3034 = vmatprep.mubr.bf16.mxu0 0
        %3035 = vmatmul.mubr.bf16.gmra.mxu0 %v2997
        %v3036 = vpop.f32.mrf.mxu0
        %v3037 = vadd.f32 0.0, %v3036
        %v3038 = vpop.f32.mrf.mxu0
        %v3039 = vpop.f32.mrf.mxu0
        %v3040 = vpop.f32.mrf.mxu0
        %3041 = vdwg.mxu0
        %v3043 = vsel %vm2850, %v2898, 0
        %v3046 = vsel %vm2906, %v2902, 0
        %3048 = vmatprep.subr.bf16.mxu0 0
        %3049 = vmatpush1.bf16.msra.mxu0 0
        %3050 = vmatprep.subr.bf16.mxu0 0
        %3051 = vmatpush1.bf16.msra.mxu0 0
        %3052 = vmatprep.subr.bf16.mxu0 0
        %3053 = vmatpush1.bf16.msra.mxu0 0
        %3054 = vmatprep.subr.bf16.mxu0 0
        %3055 = vmatpush1.bf16.msra.mxu0 0
        %3056 = vmatprep.subr.bf16.mxu0 0
        %3057 = vmatpush1.bf16.msra.mxu0 0
        %3058 = vmatprep.subr.bf16.mxu0 0
        %3059 = vmatpush1.bf16.msra.mxu0 0
        %3060 = vmatprep.subr.bf16.mxu0 0
        %3061 = vmatpush1.bf16.msra.mxu0 0
        %3062 = vmatprep.subr.bf16.mxu0 0
        %3063 = vmatpush1.bf16.msra.mxu0 %v3046
        %3064 = vmatprep.subr.bf16.mxu0 0
        %3065 = vmatpush2.bf16.msra.mxu0 0
        %3066 = vmatprep.subr.bf16.mxu0 0
        %3067 = vmatpush2.bf16.msra.mxu0 0
        %3068 = vmatprep.subr.bf16.mxu0 0
        %3069 = vmatpush2.bf16.msra.mxu0 0
        %3070 = vmatprep.subr.bf16.mxu0 0
        %3071 = vmatpush2.bf16.msra.mxu0 0
        %3072 = vmatprep.subr.bf16.mxu0 0
        %3073 = vmatpush2.bf16.msra.mxu0 0
        %3074 = vmatprep.subr.bf16.mxu0 0
        %3075 = vmatpush2.bf16.msra.mxu0 0
        %3076 = vmatprep.subr.bf16.mxu0 0
        %3077 = vmatpush2.bf16.msra.mxu0 0
        %3078 = vmatprep.subr.bf16.mxu0 0
        %3079 = vmatpush2.bf16.msra.mxu0 0
        %3080 = vmatprep.mubr.bf16.mxu0 0
        %3081 = vmatmul.mubr.bf16.gmra.mxu0 %v3043
        %v3082 = vpop.f32.mrf.mxu0
        %v3083 = vadd.f32 0.0, %v3082
        %v3084 = vpop.f32.mrf.mxu0
        %v3085 = vpop.f32.mrf.mxu0
        %v3086 = vpop.f32.mrf.mxu0
        %3087 = vdwg.mxu0
        %v3088 = vpack.c.bf16 %v2945, %v2945
        %v3089 = vpack.c.bf16 %v2991, %v2991
        %v3090 = vpack.c.bf16 %v3037, %v3037
        %v3091 = vpack.c.bf16 %v3083, %v3083
        %v3100 = vunpack.c.l.b16 %v947
        %v3101 = vunpack.c.h.b16 %v947
        %v3102 = vunpack.c.l.b16 %v948
        %v3103 = vunpack.c.h.b16 %v948
        %v3104 = vunpack.c.l.b16 %v949
        %v3105 = vunpack.c.h.b16 %v949
        %v3106 = vunpack.c.l.b16 %v950
        %v3107 = vunpack.c.h.b16 %v950
        %v3108 = vunpack.c.l.b16 %v951
        %v3109 = vunpack.c.h.b16 %v951
        %v3110 = vunpack.c.l.b16 %v952
        %v3111 = vunpack.c.h.b16 %v952
        %v3112 = vunpack.c.l.b16 %v953
        %v3113 = vunpack.c.h.b16 %v953
        %v3114 = vunpack.c.l.b16 %v954
        %v3115 = vunpack.c.h.b16 %v954
        %v3116 = vpack.c.b16 %v3102, %v3100
        %v3117 = vpack.c.b16 %v3103, %v3101
        %v3118 = vpack.c.b16 %v3106, %v3104
        %v3119 = vpack.c.b16 %v3107, %v3105
        %v3120 = vpack.c.b16 %v3110, %v3108
        %v3121 = vpack.c.b16 %v3111, %v3109
        %v3122 = vpack.c.b16 %v3114, %v3112
        %v3123 = vpack.c.b16 %v3115, %v3113
        %v3133 = vsel %vm2665, %v3088, 0
        %3135 = vmatprep.subr.bf16.mxu0 0
        %3136 = vmatpush1.bf16.msra.mxu0 0
        %3137 = vmatprep.subr.bf16.mxu0 0
        %3138 = vmatpush1.bf16.msra.mxu0 0
        %3139 = vmatprep.subr.bf16.mxu0 0
        %3140 = vmatpush1.bf16.msra.mxu0 0
        %3141 = vmatprep.subr.bf16.mxu0 0
        %3142 = vmatpush1.bf16.msra.mxu0 0
        %3143 = vmatprep.subr.bf16.mxu0 %v3123
        %3144 = vmatpush1.bf16.msra.mxu0 %v3122
        %3145 = vmatprep.subr.bf16.mxu0 %v3121
        %3146 = vmatpush1.bf16.msra.mxu0 %v3120
        %3147 = vmatprep.subr.bf16.mxu0 %v3119
        %3148 = vmatpush1.bf16.msra.mxu0 %v3118
        %3149 = vmatprep.subr.bf16.mxu0 %v3117
        %3150 = vmatpush1.bf16.msra.mxu0 %v3116
        %3151 = vmatprep.subr.bf16.mxu0 0
        %3152 = vmatpush2.bf16.msra.mxu0 0
        %3153 = vmatprep.subr.bf16.mxu0 0
        %3154 = vmatpush2.bf16.msra.mxu0 0
        %3155 = vmatprep.subr.bf16.mxu0 0
        %3156 = vmatpush2.bf16.msra.mxu0 0
        %3157 = vmatprep.subr.bf16.mxu0 0
        %3158 = vmatpush2.bf16.msra.mxu0 0
        %3159 = vmatprep.subr.bf16.mxu0 0
        %3160 = vmatpush2.bf16.msra.mxu0 0
        %3161 = vmatprep.subr.bf16.mxu0 0
        %3162 = vmatpush2.bf16.msra.mxu0 0
        %3163 = vmatprep.subr.bf16.mxu0 0
        %3164 = vmatpush2.bf16.msra.mxu0 0
        %3165 = vmatprep.subr.bf16.mxu0 0
        %3166 = vmatpush2.bf16.msra.mxu0 0
        %3167 = vmatprep.mubr.bf16.mxu0 0
        %3168 = vmatmul.mubr.bf16.gmra.mxu0 %v3133
        %v3169 = vpop.f32.mrf.mxu0
        %v3170 = vadd.f32 0.0, %v3169
        %v3171 = vpop.f32.mrf.mxu0
        %v3172 = vadd.f32 0.0, %v3171
        %v3173 = vpop.f32.mrf.mxu0
        %v3174 = vpop.f32.mrf.mxu0
        %3175 = vdwg.mxu0
        %v3184 = vunpack.c.l.b16 %v955
        %v3185 = vunpack.c.h.b16 %v955
        %v3186 = vunpack.c.l.b16 %v956
        %v3187 = vunpack.c.h.b16 %v956
        %v3188 = vunpack.c.l.b16 %v957
        %v3189 = vunpack.c.h.b16 %v957
        %v3190 = vunpack.c.l.b16 %v958
        %v3191 = vunpack.c.h.b16 %v958
        %v3192 = vunpack.c.l.b16 %v959
        %v3193 = vunpack.c.h.b16 %v959
        %v3194 = vunpack.c.l.b16 %v960
        %v3195 = vunpack.c.h.b16 %v960
        %v3196 = vunpack.c.l.b16 %v961
        %v3197 = vunpack.c.h.b16 %v961
        %v3198 = vunpack.c.l.b16 %v962
        %v3199 = vunpack.c.h.b16 %v962
        %v3200 = vpack.c.b16 %v3186, %v3184
        %v3201 = vpack.c.b16 %v3187, %v3185
        %v3202 = vpack.c.b16 %v3190, %v3188
        %v3203 = vpack.c.b16 %v3191, %v3189
        %v3204 = vpack.c.b16 %v3194, %v3192
        %v3205 = vpack.c.b16 %v3195, %v3193
        %v3206 = vpack.c.b16 %v3198, %v3196
        %v3207 = vpack.c.b16 %v3199, %v3197
        %v3217 = vsel %vm2665, %v3089, 0
        %3219 = vmatprep.subr.bf16.mxu0 0
        %3220 = vmatpush1.bf16.msra.mxu0 0
        %3221 = vmatprep.subr.bf16.mxu0 0
        %3222 = vmatpush1.bf16.msra.mxu0 0
        %3223 = vmatprep.subr.bf16.mxu0 0
        %3224 = vmatpush1.bf16.msra.mxu0 0
        %3225 = vmatprep.subr.bf16.mxu0 0
        %3226 = vmatpush1.bf16.msra.mxu0 0
        %3227 = vmatprep.subr.bf16.mxu0 %v3207
        %3228 = vmatpush1.bf16.msra.mxu0 %v3206
        %3229 = vmatprep.subr.bf16.mxu0 %v3205
        %3230 = vmatpush1.bf16.msra.mxu0 %v3204
        %3231 = vmatprep.subr.bf16.mxu0 %v3203
        %3232 = vmatpush1.bf16.msra.mxu0 %v3202
        %3233 = vmatprep.subr.bf16.mxu0 %v3201
        %3234 = vmatpush1.bf16.msra.mxu0 %v3200
        %3235 = vmatprep.subr.bf16.mxu0 0
        %3236 = vmatpush2.bf16.msra.mxu0 0
        %3237 = vmatprep.subr.bf16.mxu0 0
        %3238 = vmatpush2.bf16.msra.mxu0 0
        %3239 = vmatprep.subr.bf16.mxu0 0
        %3240 = vmatpush2.bf16.msra.mxu0 0
        %3241 = vmatprep.subr.bf16.mxu0 0
        %3242 = vmatpush2.bf16.msra.mxu0 0
        %3243 = vmatprep.subr.bf16.mxu0 0
        %3244 = vmatpush2.bf16.msra.mxu0 0
        %3245 = vmatprep.subr.bf16.mxu0 0
        %3246 = vmatpush2.bf16.msra.mxu0 0
        %3247 = vmatprep.subr.bf16.mxu0 0
        %3248 = vmatpush2.bf16.msra.mxu0 0
        %3249 = vmatprep.subr.bf16.mxu0 0
        %3250 = vmatpush2.bf16.msra.mxu0 0
        %3251 = vmatprep.mubr.bf16.mxu0 0
        %3252 = vmatmul.mubr.bf16.gmra.mxu0 %v3217
        %v3253 = vpop.f32.mrf.mxu0
        %v3254 = vadd.f32 0.0, %v3253
        %v3255 = vpop.f32.mrf.mxu0
        %v3256 = vadd.f32 0.0, %v3255
        %v3257 = vpop.f32.mrf.mxu0
        %v3258 = vpop.f32.mrf.mxu0
        %3259 = vdwg.mxu0
        %v3268 = vunpack.c.l.b16 %v963
        %v3269 = vunpack.c.h.b16 %v963
        %v3270 = vunpack.c.l.b16 %v964
        %v3271 = vunpack.c.h.b16 %v964
        %v3272 = vunpack.c.l.b16 %v965
        %v3273 = vunpack.c.h.b16 %v965
        %v3274 = vunpack.c.l.b16 %v966
        %v3275 = vunpack.c.h.b16 %v966
        %v3276 = vunpack.c.l.b16 %v967
        %v3277 = vunpack.c.h.b16 %v967
        %v3278 = vunpack.c.l.b16 %v968
        %v3279 = vunpack.c.h.b16 %v968
        %v3280 = vunpack.c.l.b16 %v969
        %v3281 = vunpack.c.h.b16 %v969
        %v3282 = vunpack.c.l.b16 %v970
        %v3283 = vunpack.c.h.b16 %v970
        %v3284 = vpack.c.b16 %v3270, %v3268
        %v3285 = vpack.c.b16 %v3271, %v3269
        %v3286 = vpack.c.b16 %v3274, %v3272
        %v3287 = vpack.c.b16 %v3275, %v3273
        %v3288 = vpack.c.b16 %v3278, %v3276
        %v3289 = vpack.c.b16 %v3279, %v3277
        %v3290 = vpack.c.b16 %v3282, %v3280
        %v3291 = vpack.c.b16 %v3283, %v3281
        %v3301 = vsel %vm2665, %v3090, 0
        %3303 = vmatprep.subr.bf16.mxu0 0
        %3304 = vmatpush1.bf16.msra.mxu0 0
        %3305 = vmatprep.subr.bf16.mxu0 0
        %3306 = vmatpush1.bf16.msra.mxu0 0
        %3307 = vmatprep.subr.bf16.mxu0 0
        %3308 = vmatpush1.bf16.msra.mxu0 0
        %3309 = vmatprep.subr.bf16.mxu0 0
        %3310 = vmatpush1.bf16.msra.mxu0 0
        %3311 = vmatprep.subr.bf16.mxu0 %v3291
        %3312 = vmatpush1.bf16.msra.mxu0 %v3290
        %3313 = vmatprep.subr.bf16.mxu0 %v3289
        %3314 = vmatpush1.bf16.msra.mxu0 %v3288
        %3315 = vmatprep.subr.bf16.mxu0 %v3287
        %3316 = vmatpush1.bf16.msra.mxu0 %v3286
        %3317 = vmatprep.subr.bf16.mxu0 %v3285
        %3318 = vmatpush1.bf16.msra.mxu0 %v3284
        %3319 = vmatprep.subr.bf16.mxu0 0
        %3320 = vmatpush2.bf16.msra.mxu0 0
        %3321 = vmatprep.subr.bf16.mxu0 0
        %3322 = vmatpush2.bf16.msra.mxu0 0
        %3323 = vmatprep.subr.bf16.mxu0 0
        %3324 = vmatpush2.bf16.msra.mxu0 0
        %3325 = vmatprep.subr.bf16.mxu0 0
        %3326 = vmatpush2.bf16.msra.mxu0 0
        %3327 = vmatprep.subr.bf16.mxu0 0
        %3328 = vmatpush2.bf16.msra.mxu0 0
        %3329 = vmatprep.subr.bf16.mxu0 0
        %3330 = vmatpush2.bf16.msra.mxu0 0
        %3331 = vmatprep.subr.bf16.mxu0 0
        %3332 = vmatpush2.bf16.msra.mxu0 0
        %3333 = vmatprep.subr.bf16.mxu0 0
        %3334 = vmatpush2.bf16.msra.mxu0 0
        %3335 = vmatprep.mubr.bf16.mxu0 0
        %3336 = vmatmul.mubr.bf16.gmra.mxu0 %v3301
        %v3337 = vpop.f32.mrf.mxu0
        %v3338 = vadd.f32 0.0, %v3337
        %v3339 = vpop.f32.mrf.mxu0
        %v3340 = vadd.f32 0.0, %v3339
        %v3341 = vpop.f32.mrf.mxu0
        %v3342 = vpop.f32.mrf.mxu0
        %3343 = vdwg.mxu0
        %v3352 = vunpack.c.l.b16 %v971
        %v3353 = vunpack.c.h.b16 %v971
        %v3354 = vunpack.c.l.b16 %v972
        %v3355 = vunpack.c.h.b16 %v972
        %v3356 = vunpack.c.l.b16 %v973
        %v3357 = vunpack.c.h.b16 %v973
        %v3358 = vunpack.c.l.b16 %v974
        %v3359 = vunpack.c.h.b16 %v974
        %v3360 = vunpack.c.l.b16 %v975
        %v3361 = vunpack.c.h.b16 %v975
        %v3362 = vunpack.c.l.b16 %v976
        %v3363 = vunpack.c.h.b16 %v976
        %v3364 = vunpack.c.l.b16 %v977
        %v3365 = vunpack.c.h.b16 %v977
        %v3366 = vunpack.c.l.b16 %v978
        %v3367 = vunpack.c.h.b16 %v978
        %v3368 = vpack.c.b16 %v3354, %v3352
        %v3369 = vpack.c.b16 %v3355, %v3353
        %v3370 = vpack.c.b16 %v3358, %v3356
        %v3371 = vpack.c.b16 %v3359, %v3357
        %v3372 = vpack.c.b16 %v3362, %v3360
        %v3373 = vpack.c.b16 %v3363, %v3361
        %v3374 = vpack.c.b16 %v3366, %v3364
        %v3375 = vpack.c.b16 %v3367, %v3365
        %v3385 = vsel %vm2665, %v3091, 0
        %3387 = vmatprep.subr.bf16.mxu0 0
        %3388 = vmatpush1.bf16.msra.mxu0 0
        %3389 = vmatprep.subr.bf16.mxu0 0
        %3390 = vmatpush1.bf16.msra.mxu0 0
        %3391 = vmatprep.subr.bf16.mxu0 0
        %3392 = vmatpush1.bf16.msra.mxu0 0
        %3393 = vmatprep.subr.bf16.mxu0 0
        %3394 = vmatpush1.bf16.msra.mxu0 0
        %3395 = vmatprep.subr.bf16.mxu0 %v3375
        %3396 = vmatpush1.bf16.msra.mxu0 %v3374
        %3397 = vmatprep.subr.bf16.mxu0 %v3373
        %3398 = vmatpush1.bf16.msra.mxu0 %v3372
        %3399 = vmatprep.subr.bf16.mxu0 %v3371
        %3400 = vmatpush1.bf16.msra.mxu0 %v3370
        %3401 = vmatprep.subr.bf16.mxu0 %v3369
        %3402 = vmatpush1.bf16.msra.mxu0 %v3368
        %3403 = vmatprep.subr.bf16.mxu0 0
        %3404 = vmatpush2.bf16.msra.mxu0 0
        %3405 = vmatprep.subr.bf16.mxu0 0
        %3406 = vmatpush2.bf16.msra.mxu0 0
        %3407 = vmatprep.subr.bf16.mxu0 0
        %3408 = vmatpush2.bf16.msra.mxu0 0
        %3409 = vmatprep.subr.bf16.mxu0 0
        %3410 = vmatpush2.bf16.msra.mxu0 0
        %3411 = vmatprep.subr.bf16.mxu0 0
        %3412 = vmatpush2.bf16.msra.mxu0 0
        %3413 = vmatprep.subr.bf16.mxu0 0
        %3414 = vmatpush2.bf16.msra.mxu0 0
        %3415 = vmatprep.subr.bf16.mxu0 0
        %3416 = vmatpush2.bf16.msra.mxu0 0
        %3417 = vmatprep.subr.bf16.mxu0 0
        %3418 = vmatpush2.bf16.msra.mxu0 0
        %3419 = vmatprep.mubr.bf16.mxu0 0
        %3420 = vmatmul.mubr.bf16.gmra.mxu0 %v3385
        %v3421 = vpop.f32.mrf.mxu0
        %v3422 = vadd.f32 0.0, %v3421
        %v3423 = vpop.f32.mrf.mxu0
        %v3424 = vadd.f32 0.0, %v3423
        %v3425 = vpop.f32.mrf.mxu0
        %v3426 = vpop.f32.mrf.mxu0
        %3427 = vdwg.mxu0
        %v3428 = vadd.f32 %v3170, %v3254
        %v3429 = vadd.f32 %v3428, %v3338
        %v3430 = vadd.f32 %v3429, %v3422
        %v3431 = vadd.f32 %v3172, %v3256
        %v3432 = vadd.f32 %v3431, %v3340
        %v3433 = vadd.f32 %v3432, %v3424
        %v3435 = vlaneseq
        %v3436 = vshrl.u32 %v3435, 7
        %v3437 = vsub.s32 0, %v3436
        %v3438 = vrot.slane %v979, %v3437
        %v3439 = vlaneseq
        %v3440 = vshrl.u32 %v3439, 7
        %v3441 = vsub.s32 1, %v3440
        %v3442 = vrot.slane %v979, %v3441
        %v3445 = vadd.f32 %v3430, %v3438
        %v3446 = vadd.f32 %v3433, %v3442
        %v3447 = vpack.c.bf16 %v3445, %v3445
        %v3448 = vpack.c.bf16 %v3446, %v3446
        %v3449 = vld [vmem:[%s3] sm:$0xf]
        %v3450 = vld [vmem:[%s3 + $0x4] sm:$0xf]
        %v3451 = vld [vmem:[%s3 + $0x8] sm:$0xf]
        %v3452 = vld [vmem:[%s3 + $0xc] sm:$0xf]
        %v3453 = vld [vmem:[%s3 + $0x10] sm:$0xf]
        %v3454 = vld [vmem:[%s3 + $0x14] sm:$0xf]
        %v3455 = vld [vmem:[%s3 + $0x18] sm:$0xf]
        %v3456 = vld [vmem:[%s3 + $0x1c] sm:$0xf]
        %v3457 = vld [vmem:[%s3 + $0x20] sm:$0xf]
        %v3458 = vld [vmem:[%s3 + $0x24] sm:$0xf]
        %v3459 = vld [vmem:[%s3 + $0x28] sm:$0xf]
        %v3460 = vld [vmem:[%s3 + $0x2c] sm:$0xf]
        %v3461 = vld [vmem:[%s3 + $0x30] sm:$0xf]
        %v3462 = vld [vmem:[%s3 + $0x34] sm:$0xf]
        %v3463 = vld [vmem:[%s3 + $0x38] sm:$0xf]
        %v3464 = vld [vmem:[%s3 + $0x3c] sm:$0xf]
        %v3465 = vld [vmem:[%s3 + $0x40] sm:$0xf]
        %v3466 = vld [vmem:[%s3 + $0x44] sm:$0xf]
        %v3467 = vld [vmem:[%s3 + $0x48] sm:$0xf]
        %v3468 = vld [vmem:[%s3 + $0x4c] sm:$0xf]
        %v3469 = vld [vmem:[%s3 + $0x50] sm:$0xf]
        %v3470 = vld [vmem:[%s3 + $0x54] sm:$0xf]
        %v3471 = vld [vmem:[%s3 + $0x58] sm:$0xf]
        %v3472 = vld [vmem:[%s3 + $0x5c] sm:$0xf]
        %v3473 = vld [vmem:[%s3 + $0x60] sm:$0xf]
        %v3474 = vld [vmem:[%s3 + $0x64] sm:$0xf]
        %v3475 = vld [vmem:[%s3 + $0x68] sm:$0xf]
        %v3476 = vld [vmem:[%s3 + $0x6c] sm:$0xf]
        %v3477 = vld [vmem:[%s3 + $0x70] sm:$0xf]
        %v3478 = vld [vmem:[%s3 + $0x74] sm:$0xf]
        %v3479 = vld [vmem:[%s3 + $0x78] sm:$0xf]
        %v3480 = vld [vmem:[%s3 + $0x7c] sm:$0xf]
        %v3481 = vld [vmem:[%s4] sm:$0x1]
        %v3483 = vlaneseq
        %v3484 = vshrl.u32 %v3483, 7
        %v3485 = vsub.s32 0, %v3484
        %v3486 = vrot.slane %v3481, %v3485
        %v3520 = vunpack.c.l.b16 %v3449
        %v3521 = vunpack.c.l.b16 %v3450
        %v3522 = vunpack.c.l.b16 %v3451
        %v3523 = vunpack.c.l.b16 %v3452
        %v3524 = vunpack.c.l.b16 %v3453
        %v3525 = vunpack.c.l.b16 %v3454
        %v3526 = vunpack.c.l.b16 %v3455
        %v3527 = vunpack.c.l.b16 %v3456
        %v3528 = vunpack.c.l.b16 %v3457
        %v3529 = vunpack.c.l.b16 %v3458
        %v3530 = vunpack.c.l.b16 %v3459
        %v3531 = vunpack.c.l.b16 %v3460
        %v3532 = vunpack.c.l.b16 %v3461
        %v3533 = vunpack.c.l.b16 %v3462
        %v3534 = vunpack.c.l.b16 %v3463
        %v3535 = vunpack.c.l.b16 %v3464
        %v3536 = vunpack.c.l.b16 %v3465
        %v3537 = vunpack.c.l.b16 %v3466
        %v3538 = vunpack.c.l.b16 %v3467
        %v3539 = vunpack.c.l.b16 %v3468
        %v3540 = vunpack.c.l.b16 %v3469
        %v3541 = vunpack.c.l.b16 %v3470
        %v3542 = vunpack.c.l.b16 %v3471
        %v3543 = vunpack.c.l.b16 %v3472
        %v3544 = vunpack.c.l.b16 %v3473
        %v3545 = vunpack.c.l.b16 %v3474
        %v3546 = vunpack.c.l.b16 %v3475
        %v3547 = vunpack.c.l.b16 %v3476
        %v3548 = vunpack.c.l.b16 %v3477
        %v3549 = vunpack.c.l.b16 %v3478
        %v3550 = vunpack.c.l.b16 %v3479
        %v3551 = vunpack.c.l.b16 %v3480
        %v3552 = vpack.c.b16 %v3521, %v3520
        %v3553 = vpack.c.b16 %v3523, %v3522
        %v3554 = vpack.c.b16 %v3525, %v3524
        %v3555 = vpack.c.b16 %v3527, %v3526
        %v3556 = vpack.c.b16 %v3529, %v3528
        %v3557 = vpack.c.b16 %v3531, %v3530
        %v3558 = vpack.c.b16 %v3533, %v3532
        %v3559 = vpack.c.b16 %v3535, %v3534
        %v3560 = vpack.c.b16 %v3537, %v3536
        %v3561 = vpack.c.b16 %v3539, %v3538
        %v3562 = vpack.c.b16 %v3541, %v3540
        %v3563 = vpack.c.b16 %v3543, %v3542
        %v3564 = vpack.c.b16 %v3545, %v3544
        %v3565 = vpack.c.b16 %v3547, %v3546
        %v3566 = vpack.c.b16 %v3549, %v3548
        %v3567 = vpack.c.b16 %v3551, %v3550
        %3584 = vmatprep.subr.bf16.mxu0 0
        %3585 = vmatpush1.bf16.msra.mxu0 %v3559
        %3586 = vmatprep.subr.bf16.mxu0 0
        %3587 = vmatpush1.bf16.msra.mxu0 %v3558
        %3588 = vmatprep.subr.bf16.mxu0 0
        %3589 = vmatpush1.bf16.msra.mxu0 %v3557
        %3590 = vmatprep.subr.bf16.mxu0 0
        %3591 = vmatpush1.bf16.msra.mxu0 %v3556
        %3592 = vmatprep.subr.bf16.mxu0 0
        %3593 = vmatpush1.bf16.msra.mxu0 %v3555
        %3594 = vmatprep.subr.bf16.mxu0 0
        %3595 = vmatpush1.bf16.msra.mxu0 %v3554
        %3596 = vmatprep.subr.bf16.mxu0 0
        %3597 = vmatpush1.bf16.msra.mxu0 %v3553
        %3598 = vmatprep.subr.bf16.mxu0 0
        %3599 = vmatpush1.bf16.msra.mxu0 %v3552
        %3600 = vmatprep.subr.bf16.mxu0 0
        %3601 = vmatpush2.bf16.msra.mxu0 %v3567
        %3602 = vmatprep.subr.bf16.mxu0 0
        %3603 = vmatpush2.bf16.msra.mxu0 %v3566
        %3604 = vmatprep.subr.bf16.mxu0 0
        %3605 = vmatpush2.bf16.msra.mxu0 %v3565
        %3606 = vmatprep.subr.bf16.mxu0 0
        %3607 = vmatpush2.bf16.msra.mxu0 %v3564
        %3608 = vmatprep.subr.bf16.mxu0 0
        %3609 = vmatpush2.bf16.msra.mxu0 %v3563
        %3610 = vmatprep.subr.bf16.mxu0 0
        %3611 = vmatpush2.bf16.msra.mxu0 %v3562
        %3612 = vmatprep.subr.bf16.mxu0 0
        %3613 = vmatpush2.bf16.msra.mxu0 %v3561
        %3614 = vmatprep.subr.bf16.mxu0 0
        %3615 = vmatpush2.bf16.msra.mxu0 %v3560
        %3616 = vmatprep.mubr.bf16.mxu0 %v3448
        %3617 = vmatmul.mubr.bf16.gmra.mxu0 %v3447
        %v3618 = vpop.f32.mrf.mxu0
        %v3619 = vadd.f32 %v3486, %v3618
        %v3620 = vpop.f32.mrf.mxu0
        %v3621 = vpop.f32.mrf.mxu0
        %v3622 = vpop.f32.mrf.mxu0
        %3623 = vdwg.mxu0
        %3624 = vst [vmem:[%s404] sm:$0xff] %v3619
        %s3625 = sand.u32 %s291, 1
        %s3626 = scalar_lea.sflag [#allocation3], %s3625
        %s3627 = sand.u32 %s291, 1
        %s3628 = smul.addr %s3627, 8
        %s3629 = scalar_lea.vmem [#allocation2], %s3628
        // Predicated region
        $region69: #{_lambda_.1} parent=67 // pred_check
          %p3630 = pneg %p301
        $region70: #{_lambda_.1} parent=67 // pred_check_branch
          %3632 = sbr.rel (%p3630) target = $region72
        $region71: #{_lambda_.1} parent=67 // pred_region
          %s3634 = ssub.s32 128, 128
          %3635 = vsyncadd %s3626, %s3634
          %s3636 = smul.addr %s26, 128
          %s3637 = scalar_lea.hbm %s12, %s3636
          %s3639 = sshll.u32 %s3629, 4
          %s3640 = int_to_ptr.vmem [resolvable:$true] %s3639
          %3642 = dma.vmem_to_hbm [thread:$0]  %s3640, 128, %s3637, %s3626
        $region72: #{_lambda_.1} parent=67 // pred_fallthru
          _
      $region68: #{_lambda_.1} parent=5 // pred_fallthru
        _
      %p3643 = scmp.le.s32.totalorder 2, %s21
      // Predicated region
      $region73: #{_lambda_.1} parent=5 // pred_check
        %p3644 = pneg %p3643
      $region74: #{_lambda_.1} parent=5 // pred_check_branch
        %3646 = sbr.rel (%p3644) target = $region76
      $region75: #{_lambda_.1} parent=5 // pred_region
        %s3647 = ssub.s32 %s21, 2
        // Predicated region
        $region77: #{_lambda_.1} parent=75 // pred_check
          %p3648 = pneg %p307
        $region78: #{_lambda_.1} parent=75 // pred_check_branch
          %3650 = sbr.rel (%p3648) target = $region80
        $region79: #{_lambda_.1} parent=75 // pred_region
          %s3651 = sand.u32 %s292, 1
          %s3652 = scalar_lea.sflag [#allocation3], %s3651
          %s3653 = sand.u32 %s292, 1
          %s3654 = smul.addr %s3653, 8
          %s3655 = scalar_lea.vmem [#allocation2], %s3654
          %3656 = dma.done %s3652, 128
        $region80: #{_lambda_.1} parent=75 // pred_fallthru
          _
      $region76: #{_lambda_.1} parent=5 // pred_fallthru
        _
    $region6: #{_lambda_.1} parent=1 // loop_footer
      %s25 = sadd.s32 1, %s21
    $region7: #{_lambda_.1} parent=1 // loop_footer_branch
      %20 = sbr.rel target = $region3
    $region8: #{_lambda_.1} parent=1 // loop_exit
      _
    %3657 = vsyncpa [#allocation3], 1
    %s3658 = scalar_lea.sflag [#allocation3], 1
    %3659 = vsyncpa %s3658, 1

</llo_original>
